<compile_context>
chip_gen: v5e
topology: v5e:2x2
jax: 0.10.0
libtpu: 0.0.40
codegen_flags: <defaults>
</compile_context>

<pallas_src>
import functools

import jax
import jax.numpy as jnp
from jax.experimental import pallas as pl
from jax.experimental.pallas import tpu as pltpu


def _round_up(x, m):
    return (x + m - 1) // m * m


def _vmem_limit_bytes():
    # Generation-aware budget: ~3/4 of physical VMEM, capped at 96 MiB.
    # v5e/v6e (128 MiB physical) -> 96 MiB; v7x (64 MiB physical) -> 48 MiB.
    try:
        cap = int(getattr(pltpu.get_tpu_info(), "vmem_capacity_bytes", 0))
    except Exception:
        cap = 0
    if cap <= 0:
        return 48 * 1024 * 1024          # safe fallback on every generation
    return min(cap - cap // 4, 96 * 1024 * 1024)


_VMEM_LIMIT = _vmem_limit_bytes()


# ----------------------------------------------------------------------------- kernels

def _conv_gn_relu_pool_kernel(x_ref, w_ref, p_ref, o_ref, *,
                              pooled_rows, num_groups, cout, eps):
    """Fused im2col-conv -> GroupNorm -> ReLU -> MaxPool(2,2) for one image.

    x_ref : (1, M, Kp)   bf16 im2col patches; rows ordered as four contiguous
                         pool-phase blocks of `pooled_rows` rows each, followed
                         by leftover (unpooled) rows for odd OH/OW.
    w_ref : (Kp, Cp)     bf16 conv weights (zero-padded along K and Cout).
    p_ref : (3, Cp)      f32 rows = [conv bias, gn gamma, gn beta] (zero-padded).
    o_ref : (1, pooled_rows, Cp) f32 pooled output (padded channels stay 0).
    """
    x = x_ref[0]                                      # (M, Kp) bf16
    M = x.shape[0]
    cp = w_ref.shape[1]
    cg = cout // num_groups

    # Single full-depth MXU matmul (K >= 128 for both stages).
    acc = jnp.dot(x, w_ref[...], preferred_element_type=jnp.float32)   # (M, Cp)

    bias, gamma, beta = p_ref[0:1, :], p_ref[1:2, :], p_ref[2:3, :]

    # GroupNorm stats from two column reductions; the conv bias is folded in
    # analytically so there is no separate full (M, Cp) bias-add pass.
    colsum = jnp.sum(acc, axis=0, keepdims=True)                       # (1, Cp)
    colsum2 = jnp.sum(acc * acc, axis=0, keepdims=True)                # (1, Cp)
    cs1 = colsum + float(M) * bias
    cs2 = colsum2 + 2.0 * bias * colsum + float(M) * bias * bias

    lane = jax.lax.broadcasted_iota(jnp.int32, (1, cp), 1)
    inv_n = 1.0 / float(M * cg)
    mean_vec = jnp.zeros((1, cp), jnp.float32)
    inv_vec = jnp.zeros((1, cp), jnp.float32)
    for g in range(num_groups):                       # static, tiny (2 or 4)
        mask = jnp.logical_and(lane >= g * cg, lane < (g + 1) * cg)
        s1 = jnp.sum(jnp.where(mask, cs1, 0.0))
        s2 = jnp.sum(jnp.where(mask, cs2, 0.0))
        mg = s1 * inv_n
        vg = jnp.maximum(s2 * inv_n - mg * mg, 0.0)
        ig = jax.lax.rsqrt(vg + eps)
        mean_vec = mean_vec + jnp.where(mask, mg, 0.0)
        inv_vec = inv_vec + jnp.where(mask, ig, 0.0)

    # y = relu((conv + bias - mean) * inv * gamma + beta); padded lanes stay 0.
    scale = inv_vec * gamma
    shift = beta + (bias - mean_vec) * scale
    y = jnp.maximum(acc * scale + shift, 0.0)

    # 2x2 / stride-2 max pool (torch floor semantics): the four pool phases are
    # contiguous row blocks, so the pool is an elementwise max of four
    # unit-stride slices — no reshape / relayout of the activation.
    q = pooled_rows
    o_ref[0] = jnp.maximum(jnp.maximum(y[0:q, :], y[q:2 * q, :]),
                           jnp.maximum(y[2 * q:3 * q, :], y[3 * q:4 * q, :]))


def _matmul_bias_kernel(a_ref, w_ref, b_ref, o_ref, acc_ref):
    # Tiled o = a @ w + b with K-reduction on grid axis 2 (bf16 in, f32 accumulate).
    @pl.when(pl.program_id(2) == 0)
    def _():
        acc_ref[...] = jnp.zeros_like(acc_ref)

    acc_ref[...] += jnp.dot(a_ref[...], w_ref[...], preferred_element_type=jnp.float32)

    @pl.when(pl.program_id(2) == pl.num_programs(2) - 1)
    def _():
        o_ref[...] = acc_ref[...] + b_ref[...]


def _weighted_mse_kernel(p_ref, t_ref, w_ref, o_ref):
    # mean( (pred - target)^2 * weight ) over all elements -> scalar in SMEM.
    d = p_ref[...] - t_ref[...]
    total = jnp.sum(d * d * w_ref[...])
    o_ref[0, 0] = total / float(p_ref.shape[0] * p_ref.shape[1])


# ----------------------------------------------------------------------------- wrappers

def conv_gn_relu_pool(x_nhwc, w, bias, gamma, beta, *, stride, pad, num_groups,
                      cout_pad=128, eps=1e-5):
    """Fused Conv2d(+bias) -> GroupNorm -> ReLU -> MaxPool(2,2) on NHWC input.

    x_nhwc: (B, H, W, C) channels-last activation (channels beyond the conv's
            real Cin, e.g. 128-lane padding from a previous stage, are dropped).
    w:      (Cout, Cin, KH, KW) torch-layout conv weights.
    Returns (out, (POH, POW)) where out is (B, POH*POW, cout_pad) f32 in (h, w)
    row-major order with channels >= Cout zero-filled.
    """
    B, H, W, _ = x_nhwc.shape
    cout, cin, KH, KW = w.shape
    S = stride
    OH = (H + 2 * pad - KH) // S + 1
    OW = (W + 2 * pad - KW) // S + 1
    POH, POW = OH // 2, OW // 2
    OHe, OWe = 2 * POH, 2 * POW
    Mq = POH * POW
    M = OH * OW
    K = KH * KW * cin
    Kp = _round_up(K, 128)

    # --- JAX-level im2col (single XLA relayout, bf16): makes the MXU dot
    # full-depth (K >= 128) and the kernel's minor dim lane-dense.  Rows are
    # ordered so the four 2x2 pool phases are contiguous blocks of Mq rows;
    # leftover rows (odd OH/OW) are appended so GN stats stay exact.
    x = x_nhwc[..., :cin]
    xp = jnp.pad(x, ((0, 0), (pad, pad), (pad, pad), (0, 0)))
    taps = []
    for kh in range(KH):
        for kw in range(KW):
            taps.append(xp[:, kh:kh + S * OH:S, kw:kw + S * OW:S, :])
    col = jnp.concatenate(taps, axis=-1)                       # (B, OH, OW, K)

    pe = col[:, :OHe, :OWe, :].reshape(B, POH, 2, POW, 2, K)
    pe = pe.transpose(0, 2, 4, 1, 3, 5).reshape(B, 4 * Mq, K)  # pool-phase-major
    parts = [pe]
    if OH > OHe:
        parts.append(col[:, OHe:, :, :].reshape(B, (OH - OHe) * OW, K))
    if OW > OWe:
        parts.append(col[:, :OHe, OWe:, :].reshape(B, OHe * (OW - OWe), K))
    colm = parts[0] if len(parts) == 1 else jnp.concatenate(parts, axis=1)
    colm = jnp.pad(colm, ((0, 0), (0, 0), (0, Kp - K))).astype(jnp.bfloat16)

    # Weights: (Cout, Cin, KH, KW) -> (Kp, cout_pad) bf16 matching im2col order.
    w_r = jnp.transpose(w, (2, 3, 1, 0)).reshape(K, cout)
    w_r = jnp.pad(w_r, ((0, Kp - K), (0, cout_pad - cout))).astype(jnp.bfloat16)

    # Tiny per-channel params: conv bias / gamma / beta in one (3, cout_pad) block.
    prm = jnp.stack([jnp.pad(bias, (0, cout_pad - cout)),
                     jnp.pad(gamma, (0, cout_pad - cout)),
                     jnp.pad(beta, (0, cout_pad - cout))]).astype(jnp.float32)

    kernel = functools.partial(_conv_gn_relu_pool_kernel, pooled_rows=Mq,
                               num_groups=num_groups, cout=cout, eps=eps)
    out = pl.pallas_call(
        kernel,
        out_shape=jax.ShapeDtypeStruct((B, Mq, cout_pad), jnp.float32),
        grid_spec=pltpu.PrefetchScalarGridSpec(
            num_scalar_prefetch=0,
            grid=(B,),
            in_specs=[
                pl.BlockSpec((1, M, Kp), lambda b: (b, 0, 0)),
                pl.BlockSpec((Kp, cout_pad), lambda b: (0, 0)),
                pl.BlockSpec((3, cout_pad), lambda b: (0, 0)),
            ],
            out_specs=pl.BlockSpec((1, Mq, cout_pad), lambda b: (b, 0, 0)),
        ),
        compiler_params=pltpu.CompilerParams(
            dimension_semantics=("parallel",),
            vmem_limit_bytes=_VMEM_LIMIT),
    )(colm, w_r, prm)
    return out, (POH, POW)


def matmul_bias(a, w, b, *, tm=128, tn=128, tk=2048):
    """Tiled, pipelined o = a @ w + b (bf16 MXU inputs, f32 accumulation)."""
    M, K = a.shape
    _, N = w.shape
    tm = min(tm, _round_up(M, 8))
    tk = min(tk, _round_up(K, 128))
    tn = min(tn, _round_up(N, 128))
    Mp, Kp, Np = _round_up(M, tm), _round_up(K, tk), _round_up(N, tn)

    a_p = jnp.pad(a, ((0, Mp - M), (0, Kp - K))).astype(jnp.bfloat16)
    w_p = jnp.pad(w, ((0, Kp - K), (0, Np - N))).astype(jnp.bfloat16)
    b_p = jnp.pad(b.reshape(1, N), ((0, 0), (0, Np - N))).astype(jnp.float32)

    out = pl.pallas_call(
        _matmul_bias_kernel,
        out_shape=jax.ShapeDtypeStruct((Mp, Np), jnp.float32),
        grid_spec=pltpu.PrefetchScalarGridSpec(
            num_scalar_prefetch=0,
            grid=(Mp // tm, Np // tn, Kp // tk),
            in_specs=[pl.BlockSpec((tm, tk), lambda i, j, k: (i, k)),
                      pl.BlockSpec((tk, tn), lambda i, j, k: (k, j)),
                      pl.BlockSpec((1, tn), lambda i, j, k: (0, j))],
            out_specs=pl.BlockSpec((tm, tn), lambda i, j, k: (i, j)),
            scratch_shapes=[pltpu.VMEM((tm, tn), jnp.float32)],
        ),
        compiler_params=pltpu.CompilerParams(
            dimension_semantics=("parallel", "parallel", "arbitrary"),
            vmem_limit_bytes=_VMEM_LIMIT),
    )(a_p, w_p, b_p)
    return out[:M, :N]


def weighted_mse_mean(pred, target, weight):
    vmem = pl.BlockSpec(memory_space=pltpu.MemorySpace.VMEM)
    out = pl.pallas_call(
        _weighted_mse_kernel,
        out_shape=jax.ShapeDtypeStruct((1, 1), jnp.float32),
        in_specs=[vmem, vmem, vmem],
        out_specs=pl.BlockSpec(memory_space=pltpu.MemorySpace.SMEM),
    )(pred, target, weight)
    return out[0, 0]


# ----------------------------------------------------------------------------- model

def _spatial_after_backbone(h):
    h = (h + 2 * 3 - 7) // 2 + 1   # conv1 k7 s2 p3
    h = h // 2                     # maxpool 2x2
    h = (h + 2 * 3 - 7) // 2 + 1   # conv2 k7 s2 p3
    h = h // 2                     # maxpool 2x2
    return h


def init_params(key, num_input_channels, num_targets, in_h, in_w):
    oh, ow = _spatial_after_backbone(in_h), _spatial_after_backbone(in_w)
    flat_dim = 32 * oh * ow
    ks = jax.random.split(key, 3)
    return {
        "conv1_w": 0.05 * jax.random.normal(ks[0], (64, num_input_channels, 7, 7), jnp.float32),
        "conv1_b": jnp.zeros((64,), jnp.float32),
        "gn1_g": jnp.ones((64,), jnp.float32),
        "gn1_b": jnp.zeros((64,), jnp.float32),
        "conv2_w": 0.05 * jax.random.normal(ks[1], (32, 64, 7, 7), jnp.float32),
        "conv2_b": jnp.zeros((32,), jnp.float32),
        "gn2_g": jnp.ones((32,), jnp.float32),
        "gn2_b": jnp.zeros((32,), jnp.float32),
        "fc_w": 0.05 * jax.random.normal(ks[2], (flat_dim, num_targets), jnp.float32),
        "fc_b": jnp.zeros((num_targets,), jnp.float32),
    }


def rasterized_planning_forward(params, data_batch, weights_scaling):
    """Eval-mode forward of RasterizedPlanningModel (simple_cnn backbone)."""
    image = data_batch["image"].astype(jnp.float32)             # (B, C, H, W) like torch
    batch_size = image.shape[0]

    # ---- backbone (self.model(image_batch)), channels-last end-to-end ----
    x = jnp.transpose(image, (0, 2, 3, 1))                      # NCHW -> NHWC once
    x1, (p1h, p1w) = conv_gn_relu_pool(
        x, params["conv1_w"], params["conv1_b"], params["gn1_g"], params["gn1_b"],
        stride=2, pad=3, num_groups=4)                          # (B, p1h*p1w, 128)
    x1 = x1.reshape(batch_size, p1h, p1w, 128)
    x2, (p2h, p2w) = conv_gn_relu_pool(
        x1, params["conv2_w"], params["conv2_b"], params["gn2_g"], params["gn2_b"],
        stride=2, pad=3, num_groups=2)                          # (B, p2h*p2w, 128)

    # FC consumes the channel-padded NHWC flatten directly; the fc weights are
    # permuted (c,h,w)->(h,w,c) and zero-padded once at trace time to match
    # torch.flatten(x, 1) of the NCHW feature map.
    flat = x2.reshape(batch_size, p2h * p2w * 128)
    cout2 = params["conv2_w"].shape[0]
    num_targets = params["fc_b"].shape[0]
    w4 = params["fc_w"].reshape(cout2, p2h, p2w, num_targets)
    w4 = jnp.pad(w4, ((0, 128 - cout2), (0, 0), (0, 0), (0, 0)))
    fc_w_nhwc = jnp.transpose(w4, (1, 2, 0, 3)).reshape(p2h * p2w * 128, num_targets)
    outputs = matmul_bias(flat, fc_w_nhwc, params["fc_b"])      # (B, num_targets)

    # ---- eval branch ----
    predicted = outputs.reshape(batch_size, -1, 3)
    pred_positions = predicted[:, :, :2]
    pred_yaws = predicted[:, :, 2:3]

    targets = jnp.concatenate(
        [data_batch["target_positions"], data_batch["target_yaws"]], axis=2
    ).reshape(batch_size, -1)
    target_weights = (
        data_batch["target_availabilities"][..., None] * weights_scaling
    ).reshape(batch_size, -1)

    loss = weighted_mse_mean(outputs, targets, target_weights.astype(jnp.float32))
    return {"loss": loss, "positions": pred_positions, "yaws": pred_yaws}


# ----------------------------------------------------------------------------- main

if __name__ == "__main__":
    key = jax.random.PRNGKey(0)
    B, C_in, H, W = 2, 4, 16, 16
    T = 12                      # future steps -> num_targets = 3 * T
    num_targets = 3 * T

    k_img, k_pos, k_yaw, k_av, k_par = jax.random.split(key, 5)
    data_batch = {
        "image": jax.random.normal(k_img, (B, C_in, H, W), jnp.float32),
        "target_positions": jax.random.normal(k_pos, (B, T, 2), jnp.float32),
        "target_yaws": jax.random.normal(k_yaw, (B, T, 1), jnp.float32),
        "target_availabilities": (jax.random.uniform(k_av, (B, T)) > 0.2).astype(jnp.float32),
    }
    weights_scaling = jnp.array([1.0, 1.0, 1.0], jnp.float32)

    params = init_params(k_par, C_in, num_targets, H, W)

    fwd = jax.jit(rasterized_planning_forward)
    out = fwd(params, data_batch, weights_scaling)
    jax.block_until_ready(out["loss"])
    jax.block_until_ready(out["positions"])
    jax.block_until_ready(out["yaws"])

    assert out["positions"].shape == (B, T, 2)
    assert out["yaws"].shape == (B, T, 1)
    assert bool(jnp.isfinite(out["loss"]))
    print("KERNEL_OK")
</pallas_src>

<mosaic_0001>
module attributes {stable_mosaic.version = 11 : i64} {
  func.func @_conv_gn_relu_pool_kernel(%arg0: i32, %arg1: memref<1x64x256xbf16, #tpu.memory_space<vmem>>, %arg2: memref<256x128xbf16, #tpu.memory_space<vmem>>, %arg3: memref<3x128xf32, #tpu.memory_space<vmem>>, %arg4: memref<1x16x128xf32, #tpu.memory_space<vmem>>) attributes {dimension_semantics = [#tpu.dimension_semantics<parallel>], iteration_bounds = array<i64: 2>, scalar_prefetch = 0 : i64, scratch_operands = 0 : i64, tpu.core_type = #tpu.core_type<tc>, window_params = [{transform_indices = @transform_0, window_bounds = array<i64: 1, 64, 256>}, {pipeline_mode = #tpu.pipeline_mode<synchronous>, transform_indices = @transform_1, window_bounds = array<i64: 256, 128>}, {pipeline_mode = #tpu.pipeline_mode<synchronous>, transform_indices = @transform_2, window_bounds = array<i64: 3, 128>}, {transform_indices = @transform_3, window_bounds = array<i64: 1, 16, 128>}]} {
    %c0 = arith.constant 0 : index
    %c0_0 = arith.constant 0 : index
    %c0_1 = arith.constant 0 : index
    %0 = vector.load %arg1[%c0, %c0_0, %c0_1] : memref<1x64x256xbf16, #tpu.memory_space<vmem>>, vector<1x64x256xbf16>
    %1 = vector.shape_cast %0 : vector<1x64x256xbf16> to vector<64x256xbf16>
    %c0_2 = arith.constant 0 : index
    %c0_3 = arith.constant 0 : index
    %2 = vector.load %arg2[%c0_2, %c0_3] : memref<256x128xbf16, #tpu.memory_space<vmem>>, vector<256x128xbf16>
    %cst = arith.constant dense<0.000000e+00> : vector<64x128xf32>
    %3 = tpu.matmul %1, %2, %cst {dimension_numbers = #tpu.dot_dimension_numbers<[1], [0], [0], [1], [0, 0, 1, 1], [], []>} : vector<64x256xbf16>, vector<256x128xbf16>, vector<64x128xf32> -> vector<64x128xf32>
    %c0_4 = arith.constant 0 : index
    %c0_5 = arith.constant 0 : index
    %4 = vector.load %arg3[%c0_4, %c0_5] : memref<3x128xf32, #tpu.memory_space<vmem>>, vector<1x128xf32>
    %c1 = arith.constant 1 : index
    %c0_6 = arith.constant 0 : index
    %5 = vector.load %arg3[%c1, %c0_6] : memref<3x128xf32, #tpu.memory_space<vmem>>, vector<1x128xf32>
    %c2 = arith.constant 2 : index
    %c0_7 = arith.constant 0 : index
    %6 = vector.load %arg3[%c2, %c0_7] : memref<3x128xf32, #tpu.memory_space<vmem>>, vector<1x128xf32>
    %cst_8 = arith.constant dense<0.000000e+00> : vector<128xf32>
    %7 = vector.multi_reduction <add>, %3, %cst_8 [0] : vector<64x128xf32> to vector<128xf32>
    %8 = vector.shape_cast %7 : vector<128xf32> to vector<1x128xf32>
    %9 = arith.mulf %3, %3 : vector<64x128xf32>
    %cst_9 = arith.constant dense<0.000000e+00> : vector<128xf32>
    %10 = vector.multi_reduction <add>, %9, %cst_9 [0] : vector<64x128xf32> to vector<128xf32>
    %11 = vector.shape_cast %10 : vector<128xf32> to vector<1x128xf32>
    %cst_10 = arith.constant 6.400000e+01 : f32
    %12 = vector.broadcast %cst_10 : f32 to vector<1x128xf32>
    %13 = arith.mulf %12, %4 : vector<1x128xf32>
    %14 = arith.addf %8, %13 : vector<1x128xf32>
    %cst_11 = arith.constant 2.000000e+00 : f32
    %15 = vector.broadcast %cst_11 : f32 to vector<1x128xf32>
    %16 = arith.mulf %15, %4 : vector<1x128xf32>
    %17 = arith.mulf %16, %8 : vector<1x128xf32>
    %18 = arith.addf %11, %17 : vector<1x128xf32>
    %cst_12 = arith.constant 6.400000e+01 : f32
    %19 = vector.broadcast %cst_12 : f32 to vector<1x128xf32>
    %20 = arith.mulf %19, %4 : vector<1x128xf32>
    %21 = arith.mulf %20, %4 : vector<1x128xf32>
    %22 = arith.addf %18, %21 : vector<1x128xf32>
    %23 = tpu.iota {dimensions = array<i32: 1>} : vector<1x128xi32>
    %cst_13 = arith.constant 0.000000e+00 : f32
    %24 = vector.broadcast %cst_13 : f32 to vector<1x128xf32>
    %cst_14 = arith.constant 0.000000e+00 : f32
    %25 = vector.broadcast %cst_14 : f32 to vector<1x128xf32>
    %c0_i32 = arith.constant 0 : i32
    %26 = vector.broadcast %c0_i32 : i32 to vector<1x128xi32>
    %27 = arith.cmpi sge, %23, %26 : vector<1x128xi32>
    %c16_i32 = arith.constant 16 : i32
    %28 = vector.broadcast %c16_i32 : i32 to vector<1x128xi32>
    %29 = arith.cmpi slt, %23, %28 : vector<1x128xi32>
    %30 = arith.andi %27, %29 : vector<1x128xi1>
    %cst_15 = arith.constant 0.000000e+00 : f32
    %31 = vector.broadcast %cst_15 : f32 to vector<1x128xf32>
    %32 = arith.select %30, %14, %31 : vector<1x128xi1>, vector<1x128xf32>
    %33 = vector.shape_cast %32 : vector<1x128xf32> to vector<1x1x128xf32>
    %cst_16 = arith.constant dense<0.000000e+00> : vector<1xf32>
    %34 = vector.multi_reduction <add>, %33, %cst_16 [1, 2] : vector<1x1x128xf32> to vector<1xf32>
    %35 = vector.shape_cast %34 : vector<1xf32> to vector<1x1x1xf32>
    %36 = vector.extract %35[0, 0, 0] : f32 from vector<1x1x1xf32>
    %cst_17 = arith.constant 0.000000e+00 : f32
    %37 = vector.broadcast %cst_17 : f32 to vector<1x128xf32>
    %38 = arith.select %30, %22, %37 : vector<1x128xi1>, vector<1x128xf32>
    %39 = vector.shape_cast %38 : vector<1x128xf32> to vector<1x1x128xf32>
    %cst_18 = arith.constant dense<0.000000e+00> : vector<1xf32>
    %40 = vector.multi_reduction <add>, %39, %cst_18 [1, 2] : vector<1x1x128xf32> to vector<1xf32>
    %41 = vector.shape_cast %40 : vector<1xf32> to vector<1x1x1xf32>
    %42 = vector.extract %41[0, 0, 0] : f32 from vector<1x1x1xf32>
    %cst_19 = arith.constant 9.765625E-4 : f32
    %43 = arith.mulf %36, %cst_19 : f32
    %cst_20 = arith.constant 9.765625E-4 : f32
    %44 = arith.mulf %42, %cst_20 : f32
    %45 = arith.mulf %43, %43 : f32
    %46 = arith.subf %44, %45 : f32
    %cst_21 = arith.constant 0.000000e+00 : f32
    %47 = arith.maximumf %46, %cst_21 : f32
    %cst_22 = arith.constant 9.99999974E-6 : f32
    %48 = arith.addf %47, %cst_22 : f32
    %49 = math.rsqrt %48 : f32
    %cst_23 = arith.constant 0.000000e+00 : f32
    %50 = vector.broadcast %43 : f32 to vector<1x128xf32>
    %51 = vector.broadcast %cst_23 : f32 to vector<1x128xf32>
    %52 = arith.select %30, %50, %51 : vector<1x128xi1>, vector<1x128xf32>
    %53 = arith.addf %24, %52 : vector<1x128xf32>
    %cst_24 = arith.constant 0.000000e+00 : f32
    %54 = vector.broadcast %49 : f32 to vector<1x128xf32>
    %55 = vector.broadcast %cst_24 : f32 to vector<1x128xf32>
    %56 = arith.select %30, %54, %55 : vector<1x128xi1>, vector<1x128xf32>
    %57 = arith.addf %25, %56 : vector<1x128xf32>
    %c16_i32_25 = arith.constant 16 : i32
    %58 = vector.broadcast %c16_i32_25 : i32 to vector<1x128xi32>
    %59 = arith.cmpi sge, %23, %58 : vector<1x128xi32>
    %c32_i32 = arith.constant 32 : i32
    %60 = vector.broadcast %c32_i32 : i32 to vector<1x128xi32>
    %61 = arith.cmpi slt, %23, %60 : vector<1x128xi32>
    %62 = arith.andi %59, %61 : vector<1x128xi1>
    %cst_26 = arith.constant 0.000000e+00 : f32
    %63 = vector.broadcast %cst_26 : f32 to vector<1x128xf32>
    %64 = arith.select %62, %14, %63 : vector<1x128xi1>, vector<1x128xf32>
    %65 = vector.shape_cast %64 : vector<1x128xf32> to vector<1x1x128xf32>
    %cst_27 = arith.constant dense<0.000000e+00> : vector<1xf32>
    %66 = vector.multi_reduction <add>, %65, %cst_27 [1, 2] : vector<1x1x128xf32> to vector<1xf32>
    %67 = vector.shape_cast %66 : vector<1xf32> to vector<1x1x1xf32>
    %68 = vector.extract %67[0, 0, 0] : f32 from vector<1x1x1xf32>
    %cst_28 = arith.constant 0.000000e+00 : f32
    %69 = vector.broadcast %cst_28 : f32 to vector<1x128xf32>
    %70 = arith.select %62, %22, %69 : vector<1x128xi1>, vector<1x128xf32>
    %71 = vector.shape_cast %70 : vector<1x128xf32> to vector<1x1x128xf32>
    %cst_29 = arith.constant dense<0.000000e+00> : vector<1xf32>
    %72 = vector.multi_reduction <add>, %71, %cst_29 [1, 2] : vector<1x1x128xf32> to vector<1xf32>
    %73 = vector.shape_cast %72 : vector<1xf32> to vector<1x1x1xf32>
    %74 = vector.extract %73[0, 0, 0] : f32 from vector<1x1x1xf32>
    %cst_30 = arith.constant 9.765625E-4 : f32
    %75 = arith.mulf %68, %cst_30 : f32
    %cst_31 = arith.constant 9.765625E-4 : f32
    %76 = arith.mulf %74, %cst_31 : f32
    %77 = arith.mulf %75, %75 : f32
    %78 = arith.subf %76, %77 : f32
    %cst_32 = arith.constant 0.000000e+00 : f32
    %79 = arith.maximumf %78, %cst_32 : f32
    %cst_33 = arith.constant 9.99999974E-6 : f32
    %80 = arith.addf %79, %cst_33 : f32
    %81 = math.rsqrt %80 : f32
    %cst_34 = arith.constant 0.000000e+00 : f32
    %82 = vector.broadcast %75 : f32 to vector<1x128xf32>
    %83 = vector.broadcast %cst_34 : f32 to vector<1x128xf32>
    %84 = arith.select %62, %82, %83 : vector<1x128xi1>, vector<1x128xf32>
    %85 = arith.addf %53, %84 : vector<1x128xf32>
    %cst_35 = arith.constant 0.000000e+00 : f32
    %86 = vector.broadcast %81 : f32 to vector<1x128xf32>
    %87 = vector.broadcast %cst_35 : f32 to vector<1x128xf32>
    %88 = arith.select %62, %86, %87 : vector<1x128xi1>, vector<1x128xf32>
    %89 = arith.addf %57, %88 : vector<1x128xf32>
    %c32_i32_36 = arith.constant 32 : i32
    %90 = vector.broadcast %c32_i32_36 : i32 to vector<1x128xi32>
    %91 = arith.cmpi sge, %23, %90 : vector<1x128xi32>
    %c48_i32 = arith.constant 48 : i32
    %92 = vector.broadcast %c48_i32 : i32 to vector<1x128xi32>
    %93 = arith.cmpi slt, %23, %92 : vector<1x128xi32>
    %94 = arith.andi %91, %93 : vector<1x128xi1>
    %cst_37 = arith.constant 0.000000e+00 : f32
    %95 = vector.broadcast %cst_37 : f32 to vector<1x128xf32>
    %96 = arith.select %94, %14, %95 : vector<1x128xi1>, vector<1x128xf32>
    %97 = vector.shape_cast %96 : vector<1x128xf32> to vector<1x1x128xf32>
    %cst_38 = arith.constant dense<0.000000e+00> : vector<1xf32>
    %98 = vector.multi_reduction <add>, %97, %cst_38 [1, 2] : vector<1x1x128xf32> to vector<1xf32>
    %99 = vector.shape_cast %98 : vector<1xf32> to vector<1x1x1xf32>
    %100 = vector.extract %99[0, 0, 0] : f32 from vector<1x1x1xf32>
    %cst_39 = arith.constant 0.000000e+00 : f32
    %101 = vector.broadcast %cst_39 : f32 to vector<1x128xf32>
    %102 = arith.select %94, %22, %101 : vector<1x128xi1>, vector<1x128xf32>
    %103 = vector.shape_cast %102 : vector<1x128xf32> to vector<1x1x128xf32>
    %cst_40 = arith.constant dense<0.000000e+00> : vector<1xf32>
    %104 = vector.multi_reduction <add>, %103, %cst_40 [1, 2] : vector<1x1x128xf32> to vector<1xf32>
    %105 = vector.shape_cast %104 : vector<1xf32> to vector<1x1x1xf32>
    %106 = vector.extract %105[0, 0, 0] : f32 from vector<1x1x1xf32>
    %cst_41 = arith.constant 9.765625E-4 : f32
    %107 = arith.mulf %100, %cst_41 : f32
    %cst_42 = arith.constant 9.765625E-4 : f32
    %108 = arith.mulf %106, %cst_42 : f32
    %109 = arith.mulf %107, %107 : f32
    %110 = arith.subf %108, %109 : f32
    %cst_43 = arith.constant 0.000000e+00 : f32
    %111 = arith.maximumf %110, %cst_43 : f32
    %cst_44 = arith.constant 9.99999974E-6 : f32
    %112 = arith.addf %111, %cst_44 : f32
    %113 = math.rsqrt %112 : f32
    %cst_45 = arith.constant 0.000000e+00 : f32
    %114 = vector.broadcast %107 : f32 to vector<1x128xf32>
    %115 = vector.broadcast %cst_45 : f32 to vector<1x128xf32>
    %116 = arith.select %94, %114, %115 : vector<1x128xi1>, vector<1x128xf32>
    %117 = arith.addf %85, %116 : vector<1x128xf32>
    %cst_46 = arith.constant 0.000000e+00 : f32
    %118 = vector.broadcast %113 : f32 to vector<1x128xf32>
    %119 = vector.broadcast %cst_46 : f32 to vector<1x128xf32>
    %120 = arith.select %94, %118, %119 : vector<1x128xi1>, vector<1x128xf32>
    %121 = arith.addf %89, %120 : vector<1x128xf32>
    %c48_i32_47 = arith.constant 48 : i32
    %122 = vector.broadcast %c48_i32_47 : i32 to vector<1x128xi32>
    %123 = arith.cmpi sge, %23, %122 : vector<1x128xi32>
    %c64_i32 = arith.constant 64 : i32
    %124 = vector.broadcast %c64_i32 : i32 to vector<1x128xi32>
    %125 = arith.cmpi slt, %23, %124 : vector<1x128xi32>
    %126 = arith.andi %123, %125 : vector<1x128xi1>
    %cst_48 = arith.constant 0.000000e+00 : f32
    %127 = vector.broadcast %cst_48 : f32 to vector<1x128xf32>
    %128 = arith.select %126, %14, %127 : vector<1x128xi1>, vector<1x128xf32>
    %129 = vector.shape_cast %128 : vector<1x128xf32> to vector<1x1x128xf32>
    %cst_49 = arith.constant dense<0.000000e+00> : vector<1xf32>
    %130 = vector.multi_reduction <add>, %129, %cst_49 [1, 2] : vector<1x1x128xf32> to vector<1xf32>
    %131 = vector.shape_cast %130 : vector<1xf32> to vector<1x1x1xf32>
    %132 = vector.extract %131[0, 0, 0] : f32 from vector<1x1x1xf32>
    %cst_50 = arith.constant 0.000000e+00 : f32
    %133 = vector.broadcast %cst_50 : f32 to vector<1x128xf32>
    %134 = arith.select %126, %22, %133 : vector<1x128xi1>, vector<1x128xf32>
    %135 = vector.shape_cast %134 : vector<1x128xf32> to vector<1x1x128xf32>
    %cst_51 = arith.constant dense<0.000000e+00> : vector<1xf32>
    %136 = vector.multi_reduction <add>, %135, %cst_51 [1, 2] : vector<1x1x128xf32> to vector<1xf32>
    %137 = vector.shape_cast %136 : vector<1xf32> to vector<1x1x1xf32>
    %138 = vector.extract %137[0, 0, 0] : f32 from vector<1x1x1xf32>
    %cst_52 = arith.constant 9.765625E-4 : f32
    %139 = arith.mulf %132, %cst_52 : f32
    %cst_53 = arith.constant 9.765625E-4 : f32
    %140 = arith.mulf %138, %cst_53 : f32
    %141 = arith.mulf %139, %139 : f32
    %142 = arith.subf %140, %141 : f32
    %cst_54 = arith.constant 0.000000e+00 : f32
    %143 = arith.maximumf %142, %cst_54 : f32
    %cst_55 = arith.constant 9.99999974E-6 : f32
    %144 = arith.addf %143, %cst_55 : f32
    %145 = math.rsqrt %144 : f32
    %cst_56 = arith.constant 0.000000e+00 : f32
    %146 = vector.broadcast %139 : f32 to vector<1x128xf32>
    %147 = vector.broadcast %cst_56 : f32 to vector<1x128xf32>
    %148 = arith.select %126, %146, %147 : vector<1x128xi1>, vector<1x128xf32>
    %149 = arith.addf %117, %148 : vector<1x128xf32>
    %cst_57 = arith.constant 0.000000e+00 : f32
    %150 = vector.broadcast %145 : f32 to vector<1x128xf32>
    %151 = vector.broadcast %cst_57 : f32 to vector<1x128xf32>
    %152 = arith.select %126, %150, %151 : vector<1x128xi1>, vector<1x128xf32>
    %153 = arith.addf %121, %152 : vector<1x128xf32>
    %154 = arith.mulf %153, %5 : vector<1x128xf32>
    %155 = arith.subf %4, %149 : vector<1x128xf32>
    %156 = arith.mulf %155, %154 : vector<1x128xf32>
    %157 = arith.addf %6, %156 : vector<1x128xf32>
    %158 = vector.broadcast %154 : vector<1x128xf32> to vector<64x128xf32>
    %159 = arith.mulf %3, %158 : vector<64x128xf32>
    %160 = vector.broadcast %157 : vector<1x128xf32> to vector<64x128xf32>
    %161 = arith.addf %159, %160 : vector<64x128xf32>
    %cst_58 = arith.constant 0.000000e+00 : f32
    %162 = vector.broadcast %cst_58 : f32 to vector<64x128xf32>
    %163 = arith.maximumf %161, %162 : vector<64x128xf32>
    %164 = vector.extract_strided_slice %163 {offsets = [0, 0], sizes = [16, 128], strides = [1, 1]} : vector<64x128xf32> to vector<16x128xf32>
    %165 = vector.extract_strided_slice %163 {offsets = [16, 0], sizes = [16, 128], strides = [1, 1]} : vector<64x128xf32> to vector<16x128xf32>
    %166 = arith.maximumf %164, %165 : vector<16x128xf32>
    %167 = vector.extract_strided_slice %163 {offsets = [32, 0], sizes = [16, 128], strides = [1, 1]} : vector<64x128xf32> to vector<16x128xf32>
    %168 = vector.extract_strided_slice %163 {offsets = [48, 0], sizes = [16, 128], strides = [1, 1]} : vector<64x128xf32> to vector<16x128xf32>
    %169 = arith.maximumf %167, %168 : vector<16x128xf32>
    %170 = arith.maximumf %166, %169 : vector<16x128xf32>
    %c0_59 = arith.constant 0 : index
    %c0_60 = arith.constant 0 : index
    %c0_61 = arith.constant 0 : index
    %171 = vector.load %arg4[%c0_59, %c0_60, %c0_61] : memref<1x16x128xf32, #tpu.memory_space<vmem>>, vector<1x16x128xf32>
    %172 = vector.shape_cast %171 : vector<1x16x128xf32> to vector<16x128xf32>
    %173 = vector.shape_cast %170 : vector<16x128xf32> to vector<1x16x128xf32>
    tpu.vector_store %arg4[%c0_59, %c0_60, %c0_61], %173 {strides = array<i32>} : memref<1x16x128xf32, #tpu.memory_space<vmem>>, vector<1x16x128xf32>,
    return
  }
  func.func @transform_0(%arg0: i32) -> (i32, i32, i32) {
    %c0_i32 = arith.constant 0 : i32
    %c0_i32_0 = arith.constant 0 : i32
    %c0_i32_1 = arith.constant 0 : i32
    return %arg0, %c0_i32, %c0_i32_0 : i32, i32, i32
  }
  func.func @transform_1(%arg0: i32) -> (i32, i32) {
    %c0_i32 = arith.constant 0 : i32
    %c0_i32_0 = arith.constant 0 : i32
    %c0_i32_1 = arith.constant 0 : i32
    return %c0_i32, %c0_i32_0 : i32, i32
  }
  func.func @transform_2(%arg0: i32) -> (i32, i32) {
    %c0_i32 = arith.constant 0 : i32
    %c0_i32_0 = arith.constant 0 : i32
    %c0_i32_1 = arith.constant 0 : i32
    return %c0_i32, %c0_i32_0 : i32, i32
  }
  func.func @transform_3(%arg0: i32) -> (i32, i32, i32) {
    %c0_i32 = arith.constant 0 : i32
    %c0_i32_0 = arith.constant 0 : i32
    %c0_i32_1 = arith.constant 0 : i32
    return %arg0, %c0_i32, %c0_i32_0 : i32, i32, i32
  }
}

module attributes {stable_mosaic.version = 11 : i64} {
  func.func @_conv_gn_relu_pool_kernel(%arg0: i32, %arg1: memref<1x4x3200xbf16, #tpu.memory_space<vmem>>, %arg2: memref<3200x128xbf16, #tpu.memory_space<vmem>>, %arg3: memref<3x128xf32, #tpu.memory_space<vmem>>, %arg4: memref<1x1x128xf32, #tpu.memory_space<vmem>>) attributes {dimension_semantics = [#tpu.dimension_semantics<parallel>], iteration_bounds = array<i64: 2>, scalar_prefetch = 0 : i64, scratch_operands = 0 : i64, tpu.core_type = #tpu.core_type<tc>, window_params = [{transform_indices = @transform_0, window_bounds = array<i64: 1, 4, 3200>}, {pipeline_mode = #tpu.pipeline_mode<synchronous>, transform_indices = @transform_1, window_bounds = array<i64: 3200, 128>}, {pipeline_mode = #tpu.pipeline_mode<synchronous>, transform_indices = @transform_2, window_bounds = array<i64: 3, 128>}, {transform_indices = @transform_3, window_bounds = array<i64: 1, 1, 128>}]} {
    %c0 = arith.constant 0 : index
    %c0_0 = arith.constant 0 : index
    %c0_1 = arith.constant 0 : index
    %0 = vector.load %arg1[%c0, %c0_0, %c0_1] : memref<1x4x3200xbf16, #tpu.memory_space<vmem>>, vector<1x4x3200xbf16>
    %1 = vector.shape_cast %0 : vector<1x4x3200xbf16> to vector<4x3200xbf16>
    %c0_2 = arith.constant 0 : index
    %c0_3 = arith.constant 0 : index
    %2 = vector.load %arg2[%c0_2, %c0_3] : memref<3200x128xbf16, #tpu.memory_space<vmem>>, vector<3200x128xbf16>
    %cst = arith.constant dense<0.000000e+00> : vector<4x128xf32>
    %3 = tpu.matmul %1, %2, %cst {dimension_numbers = #tpu.dot_dimension_numbers<[1], [0], [0], [1], [0, 0, 1, 1], [], []>} : vector<4x3200xbf16>, vector<3200x128xbf16>, vector<4x128xf32> -> vector<4x128xf32>
    %c0_4 = arith.constant 0 : index
    %c0_5 = arith.constant 0 : index
    %4 = vector.load %arg3[%c0_4, %c0_5] : memref<3x128xf32, #tpu.memory_space<vmem>>, vector<1x128xf32>
    %c1 = arith.constant 1 : index
    %c0_6 = arith.constant 0 : index
    %5 = vector.load %arg3[%c1, %c0_6] : memref<3x128xf32, #tpu.memory_space<vmem>>, vector<1x128xf32>
    %c2 = arith.constant 2 : index
    %c0_7 = arith.constant 0 : index
    %6 = vector.load %arg3[%c2, %c0_7] : memref<3x128xf32, #tpu.memory_space<vmem>>, vector<1x128xf32>
    %cst_8 = arith.constant dense<0.000000e+00> : vector<128xf32>
    %7 = vector.multi_reduction <add>, %3, %cst_8 [0] : vector<4x128xf32> to vector<128xf32>
    %8 = vector.shape_cast %7 : vector<128xf32> to vector<1x128xf32>
    %9 = arith.mulf %3, %3 : vector<4x128xf32>
    %cst_9 = arith.constant dense<0.000000e+00> : vector<128xf32>
    %10 = vector.multi_reduction <add>, %9, %cst_9 [0] : vector<4x128xf32> to vector<128xf32>
    %11 = vector.shape_cast %10 : vector<128xf32> to vector<1x128xf32>
    %cst_10 = arith.constant 4.000000e+00 : f32
    %12 = vector.broadcast %cst_10 : f32 to vector<1x128xf32>
    %13 = arith.mulf %12, %4 : vector<1x128xf32>
    %14 = arith.addf %8, %13 : vector<1x128xf32>
    %cst_11 = arith.constant 2.000000e+00 : f32
    %15 = vector.broadcast %cst_11 : f32 to vector<1x128xf32>
    %16 = arith.mulf %15, %4 : vector<1x128xf32>
    %17 = arith.mulf %16, %8 : vector<1x128xf32>
    %18 = arith.addf %11, %17 : vector<1x128xf32>
    %cst_12 = arith.constant 4.000000e+00 : f32
    %19 = vector.broadcast %cst_12 : f32 to vector<1x128xf32>
    %20 = arith.mulf %19, %4 : vector<1x128xf32>
    %21 = arith.mulf %20, %4 : vector<1x128xf32>
    %22 = arith.addf %18, %21 : vector<1x128xf32>
    %23 = tpu.iota {dimensions = array<i32: 1>} : vector<1x128xi32>
    %cst_13 = arith.constant 0.000000e+00 : f32
    %24 = vector.broadcast %cst_13 : f32 to vector<1x128xf32>
    %cst_14 = arith.constant 0.000000e+00 : f32
    %25 = vector.broadcast %cst_14 : f32 to vector<1x128xf32>
    %c0_i32 = arith.constant 0 : i32
    %26 = vector.broadcast %c0_i32 : i32 to vector<1x128xi32>
    %27 = arith.cmpi sge, %23, %26 : vector<1x128xi32>
    %c16_i32 = arith.constant 16 : i32
    %28 = vector.broadcast %c16_i32 : i32 to vector<1x128xi32>
    %29 = arith.cmpi slt, %23, %28 : vector<1x128xi32>
    %30 = arith.andi %27, %29 : vector<1x128xi1>
    %cst_15 = arith.constant 0.000000e+00 : f32
    %31 = vector.broadcast %cst_15 : f32 to vector<1x128xf32>
    %32 = arith.select %30, %14, %31 : vector<1x128xi1>, vector<1x128xf32>
    %33 = vector.shape_cast %32 : vector<1x128xf32> to vector<1x1x128xf32>
    %cst_16 = arith.constant dense<0.000000e+00> : vector<1xf32>
    %34 = vector.multi_reduction <add>, %33, %cst_16 [1, 2] : vector<1x1x128xf32> to vector<1xf32>
    %35 = vector.shape_cast %34 : vector<1xf32> to vector<1x1x1xf32>
    %36 = vector.extract %35[0, 0, 0] : f32 from vector<1x1x1xf32>
    %cst_17 = arith.constant 0.000000e+00 : f32
    %37 = vector.broadcast %cst_17 : f32 to vector<1x128xf32>
    %38 = arith.select %30, %22, %37 : vector<1x128xi1>, vector<1x128xf32>
    %39 = vector.shape_cast %38 : vector<1x128xf32> to vector<1x1x128xf32>
    %cst_18 = arith.constant dense<0.000000e+00> : vector<1xf32>
    %40 = vector.multi_reduction <add>, %39, %cst_18 [1, 2] : vector<1x1x128xf32> to vector<1xf32>
    %41 = vector.shape_cast %40 : vector<1xf32> to vector<1x1x1xf32>
    %42 = vector.extract %41[0, 0, 0] : f32 from vector<1x1x1xf32>
    %cst_19 = arith.constant 1.562500e-02 : f32
    %43 = arith.mulf %36, %cst_19 : f32
    %cst_20 = arith.constant 1.562500e-02 : f32
    %44 = arith.mulf %42, %cst_20 : f32
    %45 = arith.mulf %43, %43 : f32
    %46 = arith.subf %44, %45 : f32
    %cst_21 = arith.constant 0.000000e+00 : f32
    %47 = arith.maximumf %46, %cst_21 : f32
    %cst_22 = arith.constant 9.99999974E-6 : f32
    %48 = arith.addf %47, %cst_22 : f32
    %49 = math.rsqrt %48 : f32
    %cst_23 = arith.constant 0.000000e+00 : f32
    %50 = vector.broadcast %43 : f32 to vector<1x128xf32>
    %51 = vector.broadcast %cst_23 : f32 to vector<1x128xf32>
    %52 = arith.select %30, %50, %51 : vector<1x128xi1>, vector<1x128xf32>
    %53 = arith.addf %24, %52 : vector<1x128xf32>
    %cst_24 = arith.constant 0.000000e+00 : f32
    %54 = vector.broadcast %49 : f32 to vector<1x128xf32>
    %55 = vector.broadcast %cst_24 : f32 to vector<1x128xf32>
    %56 = arith.select %30, %54, %55 : vector<1x128xi1>, vector<1x128xf32>
    %57 = arith.addf %25, %56 : vector<1x128xf32>
    %c16_i32_25 = arith.constant 16 : i32
    %58 = vector.broadcast %c16_i32_25 : i32 to vector<1x128xi32>
    %59 = arith.cmpi sge, %23, %58 : vector<1x128xi32>
    %c32_i32 = arith.constant 32 : i32
    %60 = vector.broadcast %c32_i32 : i32 to vector<1x128xi32>
    %61 = arith.cmpi slt, %23, %60 : vector<1x128xi32>
    %62 = arith.andi %59, %61 : vector<1x128xi1>
    %cst_26 = arith.constant 0.000000e+00 : f32
    %63 = vector.broadcast %cst_26 : f32 to vector<1x128xf32>
    %64 = arith.select %62, %14, %63 : vector<1x128xi1>, vector<1x128xf32>
    %65 = vector.shape_cast %64 : vector<1x128xf32> to vector<1x1x128xf32>
    %cst_27 = arith.constant dense<0.000000e+00> : vector<1xf32>
    %66 = vector.multi_reduction <add>, %65, %cst_27 [1, 2] : vector<1x1x128xf32> to vector<1xf32>
    %67 = vector.shape_cast %66 : vector<1xf32> to vector<1x1x1xf32>
    %68 = vector.extract %67[0, 0, 0] : f32 from vector<1x1x1xf32>
    %cst_28 = arith.constant 0.000000e+00 : f32
    %69 = vector.broadcast %cst_28 : f32 to vector<1x128xf32>
    %70 = arith.select %62, %22, %69 : vector<1x128xi1>, vector<1x128xf32>
    %71 = vector.shape_cast %70 : vector<1x128xf32> to vector<1x1x128xf32>
    %cst_29 = arith.constant dense<0.000000e+00> : vector<1xf32>
    %72 = vector.multi_reduction <add>, %71, %cst_29 [1, 2] : vector<1x1x128xf32> to vector<1xf32>
    %73 = vector.shape_cast %72 : vector<1xf32> to vector<1x1x1xf32>
    %74 = vector.extract %73[0, 0, 0] : f32 from vector<1x1x1xf32>
    %cst_30 = arith.constant 1.562500e-02 : f32
    %75 = arith.mulf %68, %cst_30 : f32
    %cst_31 = arith.constant 1.562500e-02 : f32
    %76 = arith.mulf %74, %cst_31 : f32
    %77 = arith.mulf %75, %75 : f32
    %78 = arith.subf %76, %77 : f32
    %cst_32 = arith.constant 0.000000e+00 : f32
    %79 = arith.maximumf %78, %cst_32 : f32
    %cst_33 = arith.constant 9.99999974E-6 : f32
    %80 = arith.addf %79, %cst_33 : f32
    %81 = math.rsqrt %80 : f32
    %cst_34 = arith.constant 0.000000e+00 : f32
    %82 = vector.broadcast %75 : f32 to vector<1x128xf32>
    %83 = vector.broadcast %cst_34 : f32 to vector<1x128xf32>
    %84 = arith.select %62, %82, %83 : vector<1x128xi1>, vector<1x128xf32>
    %85 = arith.addf %53, %84 : vector<1x128xf32>
    %cst_35 = arith.constant 0.000000e+00 : f32
    %86 = vector.broadcast %81 : f32 to vector<1x128xf32>
    %87 = vector.broadcast %cst_35 : f32 to vector<1x128xf32>
    %88 = arith.select %62, %86, %87 : vector<1x128xi1>, vector<1x128xf32>
    %89 = arith.addf %57, %88 : vector<1x128xf32>
    %90 = arith.mulf %89, %5 : vector<1x128xf32>
    %91 = arith.subf %4, %85 : vector<1x128xf32>
    %92 = arith.mulf %91, %90 : vector<1x128xf32>
    %93 = arith.addf %6, %92 : vector<1x128xf32>
    %94 = vector.broadcast %90 : vector<1x128xf32> to vector<4x128xf32>
    %95 = arith.mulf %3, %94 : vector<4x128xf32>
    %96 = vector.broadcast %93 : vector<1x128xf32> to vector<4x128xf32>
    %97 = arith.addf %95, %96 : vector<4x128xf32>
    %cst_36 = arith.constant 0.000000e+00 : f32
    %98 = vector.broadcast %cst_36 : f32 to vector<4x128xf32>
    %99 = arith.maximumf %97, %98 : vector<4x128xf32>
    %100 = vector.extract_strided_slice %99 {offsets = [0, 0], sizes = [1, 128], strides = [1, 1]} : vector<4x128xf32> to vector<1x128xf32>
    %101 = vector.extract_strided_slice %99 {offsets = [1, 0], sizes = [1, 128], strides = [1, 1]} : vector<4x128xf32> to vector<1x128xf32>
    %102 = arith.maximumf %100, %101 : vector<1x128xf32>
    %103 = vector.extract_strided_slice %99 {offsets = [2, 0], sizes = [1, 128], strides = [1, 1]} : vector<4x128xf32> to vector<1x128xf32>
    %104 = vector.extract_strided_slice %99 {offsets = [3, 0], sizes = [1, 128], strides = [1, 1]} : vector<4x128xf32> to vector<1x128xf32>
    %105 = arith.maximumf %103, %104 : vector<1x128xf32>
    %106 = arith.maximumf %102, %105 : vector<1x128xf32>
    %c0_37 = arith.constant 0 : index
    %c0_38 = arith.constant 0 : index
    %c0_39 = arith.constant 0 : index
    %107 = vector.load %arg4[%c0_37, %c0_38, %c0_39] : memref<1x1x128xf32, #tpu.memory_space<vmem>>, vector<1x1x128xf32>
    %108 = vector.shape_cast %107 : vector<1x1x128xf32> to vector<1x128xf32>
    %109 = vector.shape_cast %106 : vector<1x128xf32> to vector<1x1x128xf32>
    tpu.vector_store %arg4[%c0_37, %c0_38, %c0_39], %109 {strides = array<i32>} : memref<1x1x128xf32, #tpu.memory_space<vmem>>, vector<1x1x128xf32>,
    return
  }
  func.func @transform_0(%arg0: i32) -> (i32, i32, i32) {
    %c0_i32 = arith.constant 0 : i32
    %c0_i32_0 = arith.constant 0 : i32
    %c0_i32_1 = arith.constant 0 : i32
    return %arg0, %c0_i32, %c0_i32_0 : i32, i32, i32
  }
  func.func @transform_1(%arg0: i32) -> (i32, i32) {
    %c0_i32 = arith.constant 0 : i32
    %c0_i32_0 = arith.constant 0 : i32
    %c0_i32_1 = arith.constant 0 : i32
    return %c0_i32, %c0_i32_0 : i32, i32
  }
  func.func @transform_2(%arg0: i32) -> (i32, i32) {
    %c0_i32 = arith.constant 0 : i32
    %c0_i32_0 = arith.constant 0 : i32
    %c0_i32_1 = arith.constant 0 : i32
    return %c0_i32, %c0_i32_0 : i32, i32
  }
  func.func @transform_3(%arg0: i32) -> (i32, i32, i32) {
    %c0_i32 = arith.constant 0 : i32
    %c0_i32_0 = arith.constant 0 : i32
    %c0_i32_1 = arith.constant 0 : i32
    return %arg0, %c0_i32, %c0_i32_0 : i32, i32, i32
  }
}

module attributes {stable_mosaic.version = 11 : i64} {
  func.func @_matmul_bias_kernel(%arg0: i32, %arg1: i32, %arg2: i32, %arg3: memref<8x128xbf16, #tpu.memory_space<vmem>>, %arg4: memref<128x128xbf16, #tpu.memory_space<vmem>>, %arg5: memref<1x128xf32, #tpu.memory_space<vmem>>, %arg6: memref<8x128xf32, #tpu.memory_space<vmem>>, %arg7: memref<8x128xf32, #tpu.memory_space<vmem>>) attributes {dimension_semantics = [#tpu.dimension_semantics<parallel>, #tpu.dimension_semantics<parallel>, #tpu.dimension_semantics<arbitrary>], iteration_bounds = array<i64: 1, 1, 1>, scalar_prefetch = 0 : i64, scratch_operands = 1 : i64, tpu.core_type = #tpu.core_type<tc>, window_params = [{transform_indices = @transform_0, window_bounds = array<i64: 8, 128>}, {transform_indices = @transform_1, window_bounds = array<i64: 128, 128>}, {transform_indices = @transform_2, window_bounds = array<i64: 1, 128>}, {transform_indices = @transform_3, window_bounds = array<i64: 8, 128>}]} {
    %c0_i32 = arith.constant 0 : i32
    %0 = arith.cmpi eq, %arg2, %c0_i32 : i32
    %1 = arith.extui %0 : i1 to i32
    %c0_i32_0 = arith.constant 0 : i32
    %2 = arith.cmpi ne, %1, %c0_i32_0 : i32
    scf.if %2 {
      %cst_10 = arith.constant 0.000000e+00 : f32
      %12 = vector.broadcast %cst_10 : f32 to vector<8x128xf32>
      %c0_11 = arith.constant 0 : index
      %c0_12 = arith.constant 0 : index
      %13 = vector.load %arg7[%c0_11, %c0_12] : memref<8x128xf32, #tpu.memory_space<vmem>>, vector<8x128xf32>
      tpu.vector_store %arg7[%c0_11, %c0_12], %12 {strides = array<i32>} : memref<8x128xf32, #tpu.memory_space<vmem>>, vector<8x128xf32>,
    } else {
    }
    %c0 = arith.constant 0 : index
    %c0_1 = arith.constant 0 : index
    %3 = vector.load %arg7[%c0, %c0_1] : memref<8x128xf32, #tpu.memory_space<vmem>>, vector<8x128xf32>
    %c0_2 = arith.constant 0 : index
    %c0_3 = arith.constant 0 : index
    %4 = vector.load %arg3[%c0_2, %c0_3] : memref<8x128xbf16, #tpu.memory_space<vmem>>, vector<8x128xbf16>
    %c0_4 = arith.constant 0 : index
    %c0_5 = arith.constant 0 : index
    %5 = vector.load %arg4[%c0_4, %c0_5] : memref<128x128xbf16, #tpu.memory_space<vmem>>, vector<128x128xbf16>
    %cst = arith.constant dense<0.000000e+00> : vector<8x128xf32>
    %6 = tpu.matmul %4, %5, %cst {dimension_numbers = #tpu.dot_dimension_numbers<[1], [0], [0], [1], [0, 0, 1, 1], [], []>} : vector<8x128xbf16>, vector<128x128xbf16>, vector<8x128xf32> -> vector<8x128xf32>
    %7 = arith.addf %3, %6 : vector<8x128xf32>
    %c0_6 = arith.constant 0 : index
    %c0_7 = arith.constant 0 : index
    %8 = vector.load %arg7[%c0_6, %c0_7] : memref<8x128xf32, #tpu.memory_space<vmem>>, vector<8x128xf32>
    tpu.vector_store %arg7[%c0_6, %c0_7], %7 {strides = array<i32>} : memref<8x128xf32, #tpu.memory_space<vmem>>, vector<8x128xf32>,
    %c0_i32_8 = arith.constant 0 : i32
    %9 = arith.cmpi eq, %arg2, %c0_i32_8 : i32
    %10 = arith.extui %9 : i1 to i32
    %c0_i32_9 = arith.constant 0 : i32
    %11 = arith.cmpi ne, %10, %c0_i32_9 : i32
    scf.if %11 {
      %c0_10 = arith.constant 0 : index
      %c0_11 = arith.constant 0 : index
      %12 = vector.load %arg7[%c0_10, %c0_11] : memref<8x128xf32, #tpu.memory_space<vmem>>, vector<8x128xf32>
      %c0_12 = arith.constant 0 : index
      %c0_13 = arith.constant 0 : index
      %13 = vector.load %arg5[%c0_12, %c0_13] : memref<1x128xf32, #tpu.memory_space<vmem>>, vector<1x128xf32>
      %14 = vector.broadcast %13 : vector<1x128xf32> to vector<8x128xf32>
      %15 = arith.addf %12, %14 : vector<8x128xf32>
      %c0_14 = arith.constant 0 : index
      %c0_15 = arith.constant 0 : index
      %16 = vector.load %arg6[%c0_14, %c0_15] : memref<8x128xf32, #tpu.memory_space<vmem>>, vector<8x128xf32>
      tpu.vector_store %arg6[%c0_14, %c0_15], %15 {strides = array<i32>} : memref<8x128xf32, #tpu.memory_space<vmem>>, vector<8x128xf32>,
    } else {
    }
    return
  }
  func.func @transform_0(%arg0: i32, %arg1: i32, %arg2: i32) -> (i32, i32) {
    %c0_i32 = arith.constant 0 : i32
    return %arg0, %arg2 : i32, i32
  }
  func.func @transform_1(%arg0: i32, %arg1: i32, %arg2: i32) -> (i32, i32) {
    %c0_i32 = arith.constant 0 : i32
    return %arg2, %arg1 : i32, i32
  }
  func.func @transform_2(%arg0: i32, %arg1: i32, %arg2: i32) -> (i32, i32) {
    %c0_i32 = arith.constant 0 : i32
    %c0_i32_0 = arith.constant 0 : i32
    return %c0_i32, %arg1 : i32, i32
  }
  func.func @transform_3(%arg0: i32, %arg1: i32, %arg2: i32) -> (i32, i32) {
    %c0_i32 = arith.constant 0 : i32
    return %arg0, %arg1 : i32, i32
  }
}

module attributes {stable_mosaic.version = 11 : i64} {
  func.func @_weighted_mse_kernel(%arg0: memref<2x36xf32, #tpu.memory_space<vmem>>, %arg1: memref<2x36xf32, #tpu.memory_space<vmem>>, %arg2: memref<2x36xf32, #tpu.memory_space<vmem>>, %arg3: memref<1x1xf32, #tpu.memory_space<smem>>) attributes {dimension_semantics = [], scalar_prefetch = 0 : i64, scratch_operands = 0 : i64, tpu.core_type = #tpu.core_type<tc>} {
    %c0 = arith.constant 0 : index
    %c0_0 = arith.constant 0 : index
    %0 = vector.load %arg0[%c0, %c0_0] : memref<2x36xf32, #tpu.memory_space<vmem>>, vector<2x36xf32>
    %c0_1 = arith.constant 0 : index
    %c0_2 = arith.constant 0 : index
    %1 = vector.load %arg1[%c0_1, %c0_2] : memref<2x36xf32, #tpu.memory_space<vmem>>, vector<2x36xf32>
    %2 = arith.subf %0, %1 : vector<2x36xf32>
    %3 = arith.mulf %2, %2 : vector<2x36xf32>
    %c0_3 = arith.constant 0 : index
    %c0_4 = arith.constant 0 : index
    %4 = vector.load %arg2[%c0_3, %c0_4] : memref<2x36xf32, #tpu.memory_space<vmem>>, vector<2x36xf32>
    %5 = arith.mulf %3, %4 : vector<2x36xf32>
    %6 = vector.shape_cast %5 : vector<2x36xf32> to vector<1x2x36xf32>
    %cst = arith.constant dense<0.000000e+00> : vector<1xf32>
    %7 = vector.multi_reduction <add>, %6, %cst [1, 2] : vector<1x2x36xf32> to vector<1xf32>
    %8 = vector.shape_cast %7 : vector<1xf32> to vector<1x1x1xf32>
    %9 = vector.extract %8[0, 0, 0] : f32 from vector<1x1x1xf32>
    %cst_5 = arith.constant 7.200000e+01 : f32
    %10 = arith.divf %9, %cst_5 : f32
    %c0_6 = arith.constant 0 : index
    %c0_7 = arith.constant 0 : index
    %11 = memref.load %arg3[%c0_6, %c0_7] : memref<1x1xf32, #tpu.memory_space<smem>>
    memref.store %10, %arg3[%c0_6, %c0_7] : memref<1x1xf32, #tpu.memory_space<smem>>
    return
  }
}

</mosaic_0001>

<llo_original>
// kernel: rasterized_planning_forward.4
$region0: #{rasterized_planning_forward.4}
  #allocation0 [shape = 'u32[]', space=smem, size = 0x4, offset = 0x4, fixed_abs, tag = 'smem constant byte address 0x4 - core index']
  #allocation1 [shape = 'u32[72,128]{1,0:T(1,128)}', space=vmem, size = 0x9000, scoped, tag = 'internal scratch']
  %s0 = inlined_call_operand.vmem [shape: bf16[2,64,256], index: 0, kind: input, shape index: {}]
  %s1 = inlined_call_operand.vmem [shape: bf16[256,128], index: 1, kind: input, shape index: {}]
  %s2 = inlined_call_operand.vmem [shape: f32[3,128], index: 2, kind: input, shape index: {}]
  %s3 = inlined_call_operand.vmem [shape: f32[2,16,128], index: 3, kind: output, shape index: {}]
  %s4 = sld [smem:[#allocation0]]
  $region45: #{rasterized_planning_forward.4} parent=0
    _
  %s6 = ssub.s32 1, %s4
  %s7 = scalar_select 0, %s6, %s4
  loop: start=0, step=1, limit=4
  $region2: #{rasterized_planning_forward.4} parent=0 // loop_pre_header
    _
  $region3: #{rasterized_planning_forward.4} parent=0 // loop_header
    %s9 = sphi 0, %s13
    %p10 = scmp.ge.s32.totalorder %s9, 4
    %s19 = sphi 0, %s21
    %s22 = sphi 0, %s19
    %s23 = sphi 0, %s22
    %s39 = sphi 0, %s23
    %s43 = sphi 0, %s43
    %s45 = sphi 0, %s43
    %s46 = sphi 0, %s45
    %s60 = sphi 0, %s46
    %s64 = sphi 0, %s64
    %s66 = sphi 0, %s64
    %s67 = sphi 0, %s66
    %s81 = sphi 0, %s67
    %s87 = sphi 0, %s89
    %s90 = sphi 0, %s87
    %s91 = sphi 0, %s90
    %s107 = sphi 0, %s91
  $region4: #{rasterized_planning_forward.4} parent=0 // loop_header_branch
    %12 = sbr.rel (%p10) target = $region8
  $region5: #{rasterized_planning_forward.4} parent=0 // loop_body
    %s14 = ssub.s32 %s9, 1
    %s15 = ssub.s32 %s9, 2
    %s16 = sadd.s32 %s9, 1
    %s17 = ssub.s32 %s9, %s16
    %p18 = scmp.eq.s32.totalorder %s17, 0
    %s20 = sadd.s32 %s19, 1
    %s21 = scalar_select %p18, %s19, %s20
    %p24 = pneg %p18
    %p25 = scmp.eq.s32.totalorder %s9, 1
    %p26 = por %p24, %p25
    %p27 = scmp.ne.s32.totalorder %s19, %s22
    %p28 = scmp.eq.s32.totalorder %s9, 0
    %p29 = por %p27, %p28
    %p30 = scmp.ne.s32.totalorder %s19, %s22
    %p31 = scmp.eq.s32.totalorder %s14, 1
    %p32 = por %p30, %p31
    %p33 = scmp.ne.s32.totalorder %s22, %s23
    %p34 = scmp.eq.s32.totalorder %s14, 0
    %p35 = por %p33, %p34
    %p36 = scmp.ne.s32.totalorder %s22, %s23
    %p37 = scmp.eq.s32.totalorder %s15, 1
    %p38 = por %p36, %p37
    %p40 = scmp.ne.s32.totalorder %s23, %s39
    %p41 = scmp.eq.s32.totalorder %s15, 0
    %p42 = por %p40, %p41
    %s44 = sadd.s32 %s43, 1
    %p47 = scmp.eq.s32.totalorder %s9, 1
    %p48 = scmp.ne.s32.totalorder %s43, %s45
    %p49 = scmp.eq.s32.totalorder %s9, 0
    %p50 = por %p48, %p49
    %p51 = scmp.ne.s32.totalorder %s43, %s45
    %p52 = scmp.eq.s32.totalorder %s14, 1
    %p53 = por %p51, %p52
    %p54 = scmp.ne.s32.totalorder %s45, %s46
    %p55 = scmp.eq.s32.totalorder %s14, 0
    %p56 = por %p54, %p55
    %p57 = scmp.ne.s32.totalorder %s45, %s46
    %p58 = scmp.eq.s32.totalorder %s15, 1
    %p59 = por %p57, %p58
    %p61 = scmp.ne.s32.totalorder %s46, %s60
    %p62 = scmp.eq.s32.totalorder %s15, 0
    %p63 = por %p61, %p62
    %s65 = sadd.s32 %s64, 1
    %p68 = scmp.eq.s32.totalorder %s9, 1
    %p69 = scmp.ne.s32.totalorder %s64, %s66
    %p70 = scmp.eq.s32.totalorder %s9, 0
    %p71 = por %p69, %p70
    %p72 = scmp.ne.s32.totalorder %s64, %s66
    %p73 = scmp.eq.s32.totalorder %s14, 1
    %p74 = por %p72, %p73
    %p75 = scmp.ne.s32.totalorder %s66, %s67
    %p76 = scmp.eq.s32.totalorder %s14, 0
    %p77 = por %p75, %p76
    %p78 = scmp.ne.s32.totalorder %s66, %s67
    %p79 = scmp.eq.s32.totalorder %s15, 1
    %p80 = por %p78, %p79
    %p82 = scmp.ne.s32.totalorder %s67, %s81
    %p83 = scmp.eq.s32.totalorder %s15, 0
    %p84 = por %p82, %p83
    %s85 = ssub.s32 %s9, %s16
    %p86 = scmp.eq.s32.totalorder %s85, 0
    %s88 = sadd.s32 %s87, 1
    %s89 = scalar_select %p86, %s87, %s88
    %p92 = pneg %p86
    %p93 = scmp.eq.s32.totalorder %s9, 1
    %p94 = por %p92, %p93
    %p95 = scmp.ne.s32.totalorder %s87, %s90
    %p96 = scmp.eq.s32.totalorder %s9, 0
    %p97 = por %p95, %p96
    %p98 = scmp.ne.s32.totalorder %s87, %s90
    %p99 = scmp.eq.s32.totalorder %s14, 1
    %p100 = por %p98, %p99
    %p101 = scmp.ne.s32.totalorder %s90, %s91
    %p102 = scmp.eq.s32.totalorder %s14, 0
    %p103 = por %p101, %p102
    %p104 = scmp.ne.s32.totalorder %s90, %s91
    %p105 = scmp.eq.s32.totalorder %s15, 1
    %p106 = por %p104, %p105
    %p108 = scmp.ne.s32.totalorder %s91, %s107
    %p109 = scmp.eq.s32.totalorder %s15, 0
    %p110 = por %p108, %p109
    %p111 = scmp.le.s32.totalorder 1, %s9
    %p112 = scmp.lt.s32.totalorder %s9, 3
    %p113 = pnand %p111, %p112
    %p114 = pneg %p113
    // Predicated region
    $region9: #{rasterized_planning_forward.4} parent=5 // pred_check
      _
    $region10: #{rasterized_planning_forward.4} parent=5 // pred_check_branch
      %116 = sbr.rel (%p113) target = $region12
    $region11: #{rasterized_planning_forward.4} parent=5 // pred_region
      %s117 = ssub.s32 %s9, 1
      // Predicated region
      $region13: #{rasterized_planning_forward.4} parent=11 // pred_check
        %p118 = pneg %p56
      $region14: #{rasterized_planning_forward.4} parent=11 // pred_check_branch
        %120 = sbr.rel (%p118) target = $region16
      $region15: #{rasterized_planning_forward.4} parent=11 // pred_region
        _
      $region16: #{rasterized_planning_forward.4} parent=11 // pred_fallthru
        _
      // Predicated region
      $region17: #{rasterized_planning_forward.4} parent=11 // pred_check
        %p121 = pneg %p77
      $region18: #{rasterized_planning_forward.4} parent=11 // pred_check_branch
        %123 = sbr.rel (%p121) target = $region20
      $region19: #{rasterized_planning_forward.4} parent=11 // pred_region
        _
      $region20: #{rasterized_planning_forward.4} parent=11 // pred_fallthru
        _
    $region12: #{rasterized_planning_forward.4} parent=5 // pred_fallthru
      _
    %p124 = scmp.lt.s32.totalorder %s9, 2
    // Predicated region
    $region21: #{rasterized_planning_forward.4} parent=5 // pred_check
      %p125 = pneg %p124
    $region22: #{rasterized_planning_forward.4} parent=5 // pred_check_branch
      %127 = sbr.rel (%p125) target = $region24
    $region23: #{rasterized_planning_forward.4} parent=5 // pred_region
      // Predicated region
      $region25: #{rasterized_planning_forward.4} parent=23 // pred_check
        %p128 = pneg %p29
      $region26: #{rasterized_planning_forward.4} parent=23 // pred_check_branch
        %130 = sbr.rel (%p128) target = $region28
      $region27: #{rasterized_planning_forward.4} parent=23 // pred_region
        %p131 = scmp.lt.s32.totalorder %s9, 1
        %s132 = scalar_select %p131, %s9, 1
        %s133 = smul.addr %s132, 16
        %s134 = smul.addr %s133, 4
        %s135 = scalar_lea.vmem %s0, %s134
      $region28: #{rasterized_planning_forward.4} parent=23 // pred_fallthru
        _
    $region24: #{rasterized_planning_forward.4} parent=5 // pred_fallthru
      _
    %p136 = scmp.le.s32.totalorder 1, %s9
    %p137 = scmp.lt.s32.totalorder %s9, 3
    %p138 = pnand %p136, %p137
    %p139 = pneg %p138
    // Predicated region
    $region29: #{rasterized_planning_forward.4} parent=5 // pred_check
      _
    $region30: #{rasterized_planning_forward.4} parent=5 // pred_check_branch
      %141 = sbr.rel (%p138) target = $region32
    $region31: #{rasterized_planning_forward.4} parent=5 // pred_region
      %s142 = ssub.s32 %s9, 1
      %p143 = scmp.lt.s32.totalorder %s14, 1
      %s144 = scalar_select %p143, %s14, 1
      %s145 = smul.addr %s144, 16
      %s146 = smul.addr %s145, 4
      %s147 = scalar_lea.vmem %s0, %s146
      %p148 = pneg %p35
      %p149 = pneg %p32
      %p150 = pneg %p56
      %p151 = pneg %p53
      %p152 = pneg %p77
      %p153 = pneg %p74
      %p154 = pneg %p103
      %p155 = pneg %p100
      %p156 = scmp.lt.s32.totalorder %s14, 1
      %s157 = scalar_select %p156, %s14, 1
      %s158 = smul.addr %s157, 2
      %s159 = smul.addr %s158, 8
      %s160 = scalar_lea.vmem %s3, %s159
      %p161 = scmp.lt.s32.totalorder %s14, 1
      %s162 = scalar_select %p161, %s14, 1
      %s163 = smul.addr %s162, 16
      %s164 = smul.addr %s163, 4
      %s165 = scalar_lea.vmem %s0, %s164
      %p166 = scmp.lt.s32.totalorder %s14, 1
      %s167 = scalar_select %p166, %s14, 1
      %s168 = smul.addr %s167, 2
      %s169 = smul.addr %s168, 8
      %s170 = scalar_lea.vmem %s3, %s169
      %v171 = vld [vmem:[%s165] sm:$0xff]
      %v172 = vld [vmem:[%s165 + $0x8] sm:$0xff]
      %v173 = vld [vmem:[%s165 + $0x10] sm:$0xff]
      %v174 = vld [vmem:[%s165 + $0x18] sm:$0xff]
      %v175 = vld [vmem:[%s165 + $0x20] sm:$0xff]
      %v176 = vld [vmem:[%s165 + $0x28] sm:$0xff]
      %v177 = vld [vmem:[%s165 + $0x30] sm:$0xff]
      %v178 = vld [vmem:[%s165 + $0x38] sm:$0xff]
      %v179 = vld [vmem:[%s1] sm:$0xf]
      %v180 = vld [vmem:[%s1 + $0x4] sm:$0xf]
      %v181 = vld [vmem:[%s1 + $0x8] sm:$0xf]
      %v182 = vld [vmem:[%s1 + $0xc] sm:$0xf]
      %v183 = vld [vmem:[%s1 + $0x10] sm:$0xf]
      %v184 = vld [vmem:[%s1 + $0x14] sm:$0xf]
      %v185 = vld [vmem:[%s1 + $0x18] sm:$0xf]
      %v186 = vld [vmem:[%s1 + $0x1c] sm:$0xf]
      %v187 = vld [vmem:[%s1 + $0x20] sm:$0xf]
      %v188 = vld [vmem:[%s1 + $0x24] sm:$0xf]
      %v189 = vld [vmem:[%s1 + $0x28] sm:$0xf]
      %v190 = vld [vmem:[%s1 + $0x2c] sm:$0xf]
      %v191 = vld [vmem:[%s1 + $0x30] sm:$0xf]
      %v192 = vld [vmem:[%s1 + $0x34] sm:$0xf]
      %v193 = vld [vmem:[%s1 + $0x38] sm:$0xf]
      %v194 = vld [vmem:[%s1 + $0x3c] sm:$0xf]
      %v195 = vld [vmem:[%s1 + $0x40] sm:$0xf]
      %v196 = vld [vmem:[%s1 + $0x44] sm:$0xf]
      %v197 = vld [vmem:[%s1 + $0x48] sm:$0xf]
      %v198 = vld [vmem:[%s1 + $0x4c] sm:$0xf]
      %v199 = vld [vmem:[%s1 + $0x50] sm:$0xf]
      %v200 = vld [vmem:[%s1 + $0x54] sm:$0xf]
      %v201 = vld [vmem:[%s1 + $0x58] sm:$0xf]
      %v202 = vld [vmem:[%s1 + $0x5c] sm:$0xf]
      %v203 = vld [vmem:[%s1 + $0x60] sm:$0xf]
      %v204 = vld [vmem:[%s1 + $0x64] sm:$0xf]
      %v205 = vld [vmem:[%s1 + $0x68] sm:$0xf]
      %v206 = vld [vmem:[%s1 + $0x6c] sm:$0xf]
      %v207 = vld [vmem:[%s1 + $0x70] sm:$0xf]
      %v208 = vld [vmem:[%s1 + $0x74] sm:$0xf]
      %v209 = vld [vmem:[%s1 + $0x78] sm:$0xf]
      %v210 = vld [vmem:[%s1 + $0x7c] sm:$0xf]
      %v219 = vunpack.c.l.b16 %v171
      %v220 = vunpack.c.h.b16 %v171
      %v221 = vunpack.c.l.b16 %v172
      %v222 = vunpack.c.h.b16 %v172
      %v223 = vunpack.c.l.b16 %v173
      %v224 = vunpack.c.h.b16 %v173
      %v225 = vunpack.c.l.b16 %v174
      %v226 = vunpack.c.h.b16 %v174
      %v227 = vunpack.c.l.b16 %v175
      %v228 = vunpack.c.h.b16 %v175
      %v229 = vunpack.c.l.b16 %v176
      %v230 = vunpack.c.h.b16 %v176
      %v231 = vunpack.c.l.b16 %v177
      %v232 = vunpack.c.h.b16 %v177
      %v233 = vunpack.c.l.b16 %v178
      %v234 = vunpack.c.h.b16 %v178
      %v235 = vpack.c.b16 %v221, %v219
      %v236 = vpack.c.b16 %v222, %v220
      %v237 = vpack.c.b16 %v225, %v223
      %v238 = vpack.c.b16 %v226, %v224
      %v239 = vpack.c.b16 %v229, %v227
      %v240 = vpack.c.b16 %v230, %v228
      %v241 = vpack.c.b16 %v233, %v231
      %v242 = vpack.c.b16 %v234, %v232
      %v283 = vunpack.c.l.b16 %v179
      %v284 = vunpack.c.l.b16 %v180
      %v285 = vunpack.c.l.b16 %v181
      %v286 = vunpack.c.l.b16 %v182
      %v287 = vunpack.c.l.b16 %v183
      %v288 = vunpack.c.l.b16 %v184
      %v289 = vunpack.c.l.b16 %v185
      %v290 = vunpack.c.l.b16 %v186
      %v291 = vunpack.c.l.b16 %v187
      %v292 = vunpack.c.l.b16 %v188
      %v293 = vunpack.c.l.b16 %v189
      %v294 = vunpack.c.l.b16 %v190
      %v295 = vunpack.c.l.b16 %v191
      %v296 = vunpack.c.l.b16 %v192
      %v297 = vunpack.c.l.b16 %v193
      %v298 = vunpack.c.l.b16 %v194
      %v299 = vunpack.c.l.b16 %v195
      %v300 = vunpack.c.l.b16 %v196
      %v301 = vunpack.c.l.b16 %v197
      %v302 = vunpack.c.l.b16 %v198
      %v303 = vunpack.c.l.b16 %v199
      %v304 = vunpack.c.l.b16 %v200
      %v305 = vunpack.c.l.b16 %v201
      %v306 = vunpack.c.l.b16 %v202
      %v307 = vunpack.c.l.b16 %v203
      %v308 = vunpack.c.l.b16 %v204
      %v309 = vunpack.c.l.b16 %v205
      %v310 = vunpack.c.l.b16 %v206
      %v311 = vunpack.c.l.b16 %v207
      %v312 = vunpack.c.l.b16 %v208
      %v313 = vunpack.c.l.b16 %v209
      %v314 = vunpack.c.l.b16 %v210
      %v315 = vpack.c.b16 %v284, %v283
      %v316 = vpack.c.b16 %v286, %v285
      %v317 = vpack.c.b16 %v288, %v287
      %v318 = vpack.c.b16 %v290, %v289
      %v319 = vpack.c.b16 %v292, %v291
      %v320 = vpack.c.b16 %v294, %v293
      %v321 = vpack.c.b16 %v296, %v295
      %v322 = vpack.c.b16 %v298, %v297
      %v323 = vpack.c.b16 %v300, %v299
      %v324 = vpack.c.b16 %v302, %v301
      %v325 = vpack.c.b16 %v304, %v303
      %v326 = vpack.c.b16 %v306, %v305
      %v327 = vpack.c.b16 %v308, %v307
      %v328 = vpack.c.b16 %v310, %v309
      %v329 = vpack.c.b16 %v312, %v311
      %v330 = vpack.c.b16 %v314, %v313
      %347 = vmatpush.bf16.msra.mxu0 %v322
      %348 = vmatpush.bf16.msra.mxu0 %v321
      %349 = vmatpush.bf16.msra.mxu0 %v320
      %350 = vmatpush.bf16.msra.mxu0 %v319
      %351 = vmatpush.bf16.msra.mxu0 %v318
      %352 = vmatpush.bf16.msra.mxu0 %v317
      %353 = vmatpush.bf16.msra.mxu0 %v316
      %354 = vmatpush.bf16.msra.mxu0 %v315
      %355 = vmatmul.bf16.gmra.mxu0 %v235
      %v356 = vpop.f32.mrf.mxu0
      %v357 = vadd.f32 0.0, %v356
      %v358 = vpop.f32.mrf.mxu0
      %v359 = vadd.f32 0.0, %v358
      %360 = vmatmul.bf16.gmra.mxu0 %v237
      %v361 = vpop.f32.mrf.mxu0
      %v362 = vadd.f32 0.0, %v361
      %v363 = vpop.f32.mrf.mxu0
      %v364 = vadd.f32 0.0, %v363
      %365 = vmatmul.bf16.gmra.mxu0 %v239
      %v366 = vpop.f32.mrf.mxu0
      %v367 = vadd.f32 0.0, %v366
      %v368 = vpop.f32.mrf.mxu0
      %v369 = vadd.f32 0.0, %v368
      %370 = vmatmul.bf16.gmra.mxu0 %v241
      %v371 = vpop.f32.mrf.mxu0
      %v372 = vadd.f32 0.0, %v371
      %v373 = vpop.f32.mrf.mxu0
      %v374 = vadd.f32 0.0, %v373
      %375 = vdwg.mxu0
      %376 = vmatpush.bf16.msra.mxu0 %v330
      %377 = vmatpush.bf16.msra.mxu0 %v329
      %378 = vmatpush.bf16.msra.mxu0 %v328
      %379 = vmatpush.bf16.msra.mxu0 %v327
      %380 = vmatpush.bf16.msra.mxu0 %v326
      %381 = vmatpush.bf16.msra.mxu0 %v325
      %382 = vmatpush.bf16.msra.mxu0 %v324
      %383 = vmatpush.bf16.msra.mxu0 %v323
      %384 = vmatmul.bf16.gmra.mxu0 %v236
      %v385 = vpop.f32.mrf.mxu0
      %v386 = vadd.f32 %v357, %v385
      %v387 = vpop.f32.mrf.mxu0
      %v388 = vadd.f32 %v359, %v387
      %389 = vmatmul.bf16.gmra.mxu0 %v238
      %v390 = vpop.f32.mrf.mxu0
      %v391 = vadd.f32 %v362, %v390
      %v392 = vpop.f32.mrf.mxu0
      %v393 = vadd.f32 %v364, %v392
      %394 = vmatmul.bf16.gmra.mxu0 %v240
      %v395 = vpop.f32.mrf.mxu0
      %v396 = vadd.f32 %v367, %v395
      %v397 = vpop.f32.mrf.mxu0
      %v398 = vadd.f32 %v369, %v397
      %399 = vmatmul.bf16.gmra.mxu0 %v242
      %v400 = vpop.f32.mrf.mxu0
      %v401 = vadd.f32 %v372, %v400
      %v402 = vpop.f32.mrf.mxu0
      %v403 = vadd.f32 %v374, %v402
      %404 = vdwg.mxu0
      %v405 = vld [vmem:[%s2] sm:$0x1]
      %v406 = vld [vmem:[%s2 + $0x1] sm:$0x1]
      %v407 = vld [vmem:[%s2 + $0x2] sm:$0x1]
      %v408 = vadd.f32 %v386, %v388
      %v409 = vadd.f32 %v408, %v391
      %v410 = vadd.f32 %v409, %v393
      %v411 = vadd.f32 %v410, %v396
      %v412 = vadd.f32 %v411, %v398
      %v413 = vadd.f32 %v412, %v401
      %v414 = vadd.f32 %v413, %v403
      %v415 = vrot.slane %v414, 4
      %v416 = vadd.f32 %v414, %v415
      %v417 = vrot.slane %v416, 2
      %v418 = vadd.f32 %v416, %v417
      %v419 = vrot.slane %v418, 1
      %v420 = vadd.f32 %v418, %v419
      %v421 = vmul.f32 %v386, %v386
      %v422 = vmul.f32 %v388, %v388
      %v423 = vmul.f32 %v391, %v391
      %v424 = vmul.f32 %v393, %v393
      %v425 = vmul.f32 %v396, %v396
      %v426 = vmul.f32 %v398, %v398
      %v427 = vmul.f32 %v401, %v401
      %v428 = vmul.f32 %v403, %v403
      %v429 = vadd.f32 %v421, %v422
      %v430 = vadd.f32 %v429, %v423
      %v431 = vadd.f32 %v430, %v424
      %v432 = vadd.f32 %v431, %v425
      %v433 = vadd.f32 %v432, %v426
      %v434 = vadd.f32 %v433, %v427
      %v435 = vadd.f32 %v434, %v428
      %v436 = vrot.slane %v435, 4
      %v437 = vadd.f32 %v435, %v436
      %v438 = vrot.slane %v437, 2
      %v439 = vadd.f32 %v437, %v438
      %v440 = vrot.slane %v439, 1
      %v441 = vadd.f32 %v439, %v440
      %v442 = vmul.f32 %v405, 64.0
      %v443 = vadd.f32 %v420, %v442
      %v444 = vmul.f32 %v405, 2.0
      %v445 = vmul.f32 %v444, %v420
      %v446 = vadd.f32 %v441, %v445
      %v447 = vmul.f32 %v442, %v405
      %v448 = vadd.f32 %v446, %v447
      %v449 = vlaneseq
      %v450 = vand.u32 %v449, 127
      %vm451 = vcmp.ge.s32.totalorder %v450, 0
      %vm452 = vcmp.lt.s32.totalorder %v450, 16
      %vm453 = vmand %vm451, %vm452
      %v454 = vsel %vm453, %v443, 0.0
      %vm455 = vcmask 1040384
      %v456 = vsel %vm455, %v454, 0.0
      %457 = vadd.xlane.f32.xlu0 %v456
      %v458 = vpop.xlane.xlu0 %457
      %v459 = vrot.slane %v458, 4
      %v460 = vadd.f32 %v458, %v459
      %v461 = vrot.slane %v460, 2
      %v462 = vadd.f32 %v460, %v461
      %v463 = vrot.slane %v462, 1
      %v464 = vadd.f32 %v462, %v463
      %s465 = vtos %v464
      %v466 = vsel %vm453, %v448, 0.0
      %v467 = vsel %vm455, %v466, 0.0
      %468 = vadd.xlane.f32.xlu0 %v467
      %v469 = vpop.xlane.xlu0 %468
      %v470 = vrot.slane %v469, 4
      %v471 = vadd.f32 %v469, %v470
      %v472 = vrot.slane %v471, 2
      %v473 = vadd.f32 %v471, %v472
      %v474 = vrot.slane %v473, 1
      %v475 = vadd.f32 %v473, %v474
      %s476 = vtos %v475
      %s477 = smul.f32 %s465, 0.0009765625
      %s478 = smul.f32 %s476, 0.0009765625
      %s479 = smul.f32 %s477, %s477
      %s480 = ssub.f32 %s478, %s479
      %s481 = smax.f32 %s480, 0.0
      %s482 = sadd.f32 %s481, 1e-05
      %v483 = vstv %s482
      %v484 = vrsqrt.pop %v483
      %v485 = vmul.f32 %v484, %v483
      %v486 = vmul.f32 %v485, %v484
      %v487 = vmul.f32 0.5, %v486
      %v488 = vsub.f32 1.5, %v487
      %v489 = vmul.f32 %v484, %v488
      %vm490 = vweird.f32 %v483
      %vm491 = vweird.f32 %v484
      %vm492 = vmor %vm490, %vm491
      %v493 = vsel %vm492, %v484, %v489
      %s494 = vtos %v493
      %v495 = vstv %s477
      %v496 = vsel %vm453, %v495, 0.0
      %v497 = vadd.f32 %v496, 0.0
      %v498 = vstv %s494
      %v499 = vsel %vm453, %v498, 0.0
      %v500 = vadd.f32 %v499, 0.0
      %vm501 = vcmp.ge.s32.totalorder %v450, 16
      %vm502 = vcmp.lt.s32.totalorder %v450, 32
      %vm503 = vmand %vm501, %vm502
      %v504 = vsel %vm503, %v443, 0.0
      %v505 = vsel %vm455, %v504, 0.0
      %506 = vadd.xlane.f32.xlu0 %v505
      %v507 = vpop.xlane.xlu0 %506
      %v508 = vrot.slane %v507, 4
      %v509 = vadd.f32 %v507, %v508
      %v510 = vrot.slane %v509, 2
      %v511 = vadd.f32 %v509, %v510
      %v512 = vrot.slane %v511, 1
      %v513 = vadd.f32 %v511, %v512
      %s514 = vtos %v513
      %v515 = vsel %vm503, %v448, 0.0
      %v516 = vsel %vm455, %v515, 0.0
      %517 = vadd.xlane.f32.xlu0 %v516
      %v518 = vpop.xlane.xlu0 %517
      %v519 = vrot.slane %v518, 4
      %v520 = vadd.f32 %v518, %v519
      %v521 = vrot.slane %v520, 2
      %v522 = vadd.f32 %v520, %v521
      %v523 = vrot.slane %v522, 1
      %v524 = vadd.f32 %v522, %v523
      %s525 = vtos %v524
      %s526 = smul.f32 %s514, 0.0009765625
      %s527 = smul.f32 %s525, 0.0009765625
      %s528 = smul.f32 %s526, %s526
      %s529 = ssub.f32 %s527, %s528
      %s530 = smax.f32 %s529, 0.0
      %s531 = sadd.f32 %s530, 1e-05
      %v532 = vstv %s531
      %v533 = vrsqrt.pop %v532
      %v534 = vmul.f32 %v533, %v532
      %v535 = vmul.f32 %v534, %v533
      %v536 = vmul.f32 0.5, %v535
      %v537 = vsub.f32 1.5, %v536
      %v538 = vmul.f32 %v533, %v537
      %vm539 = vweird.f32 %v532
      %vm540 = vweird.f32 %v533
      %vm541 = vmor %vm539, %vm540
      %v542 = vsel %vm541, %v533, %v538
      %s543 = vtos %v542
      %v544 = vstv %s526
      %v545 = vsel %vm503, %v544, 0.0
      %v546 = vadd.f32 %v497, %v545
      %v547 = vstv %s543
      %v548 = vsel %vm503, %v547, 0.0
      %v549 = vadd.f32 %v500, %v548
      %vm550 = vcmp.ge.s32.totalorder %v450, 32
      %vm551 = vcmp.lt.s32.totalorder %v450, 48
      %vm552 = vmand %vm550, %vm551
      %v553 = vsel %vm552, %v443, 0.0
      %v554 = vsel %vm455, %v553, 0.0
      %555 = vadd.xlane.f32.xlu0 %v554
      %v556 = vpop.xlane.xlu0 %555
      %v557 = vrot.slane %v556, 4
      %v558 = vadd.f32 %v556, %v557
      %v559 = vrot.slane %v558, 2
      %v560 = vadd.f32 %v558, %v559
      %v561 = vrot.slane %v560, 1
      %v562 = vadd.f32 %v560, %v561
      %s563 = vtos %v562
      %v564 = vsel %vm552, %v448, 0.0
      %v565 = vsel %vm455, %v564, 0.0
      %566 = vadd.xlane.f32.xlu0 %v565
      %v567 = vpop.xlane.xlu0 %566
      %v568 = vrot.slane %v567, 4
      %v569 = vadd.f32 %v567, %v568
      %v570 = vrot.slane %v569, 2
      %v571 = vadd.f32 %v569, %v570
      %v572 = vrot.slane %v571, 1
      %v573 = vadd.f32 %v571, %v572
      %s574 = vtos %v573
      %s575 = smul.f32 %s563, 0.0009765625
      %s576 = smul.f32 %s574, 0.0009765625
      %s577 = smul.f32 %s575, %s575
      %s578 = ssub.f32 %s576, %s577
      %s579 = smax.f32 %s578, 0.0
      %s580 = sadd.f32 %s579, 1e-05
      %v581 = vstv %s580
      %v582 = vrsqrt.pop %v581
      %v583 = vmul.f32 %v582, %v581
      %v584 = vmul.f32 %v583, %v582
      %v585 = vmul.f32 0.5, %v584
      %v586 = vsub.f32 1.5, %v585
      %v587 = vmul.f32 %v582, %v586
      %vm588 = vweird.f32 %v581
      %vm589 = vweird.f32 %v582
      %vm590 = vmor %vm588, %vm589
      %v591 = vsel %vm590, %v582, %v587
      %s592 = vtos %v591
      %v593 = vstv %s575
      %v594 = vsel %vm552, %v593, 0.0
      %v595 = vadd.f32 %v546, %v594
      %v596 = vstv %s592
      %v597 = vsel %vm552, %v596, 0.0
      %v598 = vadd.f32 %v549, %v597
      %vm599 = vcmp.ge.s32.totalorder %v450, 48
      %vm600 = vcmp.lt.s32.totalorder %v450, 64
      %vm601 = vmand %vm599, %vm600
      %v602 = vsel %vm601, %v443, 0.0
      %v603 = vsel %vm455, %v602, 0.0
      %604 = vadd.xlane.f32.xlu0 %v603
      %v605 = vpop.xlane.xlu0 %604
      %v606 = vrot.slane %v605, 4
      %v607 = vadd.f32 %v605, %v606
      %v608 = vrot.slane %v607, 2
      %v609 = vadd.f32 %v607, %v608
      %v610 = vrot.slane %v609, 1
      %v611 = vadd.f32 %v609, %v610
      %s612 = vtos %v611
      %v613 = vsel %vm601, %v448, 0.0
      %v614 = vsel %vm455, %v613, 0.0
      %615 = vadd.xlane.f32.xlu0 %v614
      %v616 = vpop.xlane.xlu0 %615
      %v617 = vrot.slane %v616, 4
      %v618 = vadd.f32 %v616, %v617
      %v619 = vrot.slane %v618, 2
      %v620 = vadd.f32 %v618, %v619
      %v621 = vrot.slane %v620, 1
      %v622 = vadd.f32 %v620, %v621
      %s623 = vtos %v622
      %s624 = smul.f32 %s612, 0.0009765625
      %s625 = smul.f32 %s623, 0.0009765625
      %s626 = smul.f32 %s624, %s624
      %s627 = ssub.f32 %s625, %s626
      %s628 = smax.f32 %s627, 0.0
      %s629 = sadd.f32 %s628, 1e-05
      %v630 = vstv %s629
      %v631 = vrsqrt.pop %v630
      %v632 = vmul.f32 %v631, %v630
      %v633 = vmul.f32 %v632, %v631
      %v634 = vmul.f32 0.5, %v633
      %v635 = vsub.f32 1.5, %v634
      %v636 = vmul.f32 %v631, %v635
      %vm637 = vweird.f32 %v630
      %vm638 = vweird.f32 %v631
      %vm639 = vmor %vm637, %vm638
      %v640 = vsel %vm639, %v631, %v636
      %s641 = vtos %v640
      %v642 = vstv %s624
      %v643 = vsel %vm601, %v642, 0.0
      %v644 = vadd.f32 %v595, %v643
      %v645 = vstv %s641
      %v646 = vsel %vm601, %v645, 0.0
      %v647 = vadd.f32 %v598, %v646
      %v648 = vmul.f32 %v647, %v406
      %v649 = vsub.f32 %v405, %v644
      %v650 = vmul.f32 %v649, %v648
      %v651 = vadd.f32 %v407, %v650
      %v652 = vperm.slane %v648, 0
      %v653 = vmul.f32 %v386, %v652
      %v654 = vmul.f32 %v388, %v652
      %v655 = vmul.f32 %v391, %v652
      %v656 = vmul.f32 %v393, %v652
      %v657 = vmul.f32 %v396, %v652
      %v658 = vmul.f32 %v398, %v652
      %v659 = vmul.f32 %v401, %v652
      %v660 = vmul.f32 %v403, %v652
      %v661 = vperm.slane %v651, 0
      %v662 = vadd.f32 %v653, %v661
      %v663 = vadd.f32 %v654, %v661
      %v664 = vadd.f32 %v655, %v661
      %v665 = vadd.f32 %v656, %v661
      %v666 = vadd.f32 %v657, %v661
      %v667 = vadd.f32 %v658, %v661
      %v668 = vadd.f32 %v659, %v661
      %v669 = vadd.f32 %v660, %v661
      %v670 = vmax.f32 %v662, 0.0
      %v671 = vmax.f32 %v663, 0.0
      %v672 = vmax.f32 %v664, 0.0
      %v673 = vmax.f32 %v665, 0.0
      %v674 = vmax.f32 %v666, 0.0
      %v675 = vmax.f32 %v667, 0.0
      %v676 = vmax.f32 %v668, 0.0
      %v677 = vmax.f32 %v669, 0.0
      %v678 = vmax.f32 %v670, %v672
      %v679 = vmax.f32 %v671, %v673
      %v680 = vmax.f32 %v674, %v676
      %v681 = vmax.f32 %v675, %v677
      %v682 = vmax.f32 %v678, %v680
      %v683 = vmax.f32 %v679, %v681
      %684 = vst [vmem:[%s170] sm:$0xff] %v682
      %685 = vst [vmem:[%s170 + $0x8] sm:$0xff] %v683
      %p686 = scmp.lt.s32.totalorder %s14, 1
      %s687 = scalar_select %p686, %s14, 1
      %s688 = smul.addr %s687, 2
      %s689 = smul.addr %s688, 8
      %s690 = scalar_lea.vmem %s3, %s689
      // Predicated region
      $region33: #{rasterized_planning_forward.4} parent=31 // pred_check
        %p691 = pneg %p100
      $region34: #{rasterized_planning_forward.4} parent=31 // pred_check_branch
        %693 = sbr.rel (%p691) target = $region36
      $region35: #{rasterized_planning_forward.4} parent=31 // pred_region
        _
      $region36: #{rasterized_planning_forward.4} parent=31 // pred_fallthru
        _
    $region32: #{rasterized_planning_forward.4} parent=5 // pred_fallthru
      _
    %p694 = scmp.le.s32.totalorder 2, %s9
    // Predicated region
    $region37: #{rasterized_planning_forward.4} parent=5 // pred_check
      %p695 = pneg %p694
    $region38: #{rasterized_planning_forward.4} parent=5 // pred_check_branch
      %697 = sbr.rel (%p695) target = $region40
    $region39: #{rasterized_planning_forward.4} parent=5 // pred_region
      %s698 = ssub.s32 %s9, 2
      // Predicated region
      $region41: #{rasterized_planning_forward.4} parent=39 // pred_check
        %p699 = pneg %p106
      $region42: #{rasterized_planning_forward.4} parent=39 // pred_check_branch
        %701 = sbr.rel (%p699) target = $region44
      $region43: #{rasterized_planning_forward.4} parent=39 // pred_region
        %p702 = scmp.lt.s32.totalorder %s15, 1
        %s703 = scalar_select %p702, %s15, 1
        %s704 = smul.addr %s703, 2
        %s705 = smul.addr %s704, 8
        %s706 = scalar_lea.vmem %s3, %s705
      $region44: #{rasterized_planning_forward.4} parent=39 // pred_fallthru
        _
    $region40: #{rasterized_planning_forward.4} parent=5 // pred_fallthru
      _
  $region6: #{rasterized_planning_forward.4} parent=0 // loop_footer
    %s13 = sadd.s32 1, %s9
  $region7: #{rasterized_planning_forward.4} parent=0 // loop_footer_branch
    %8 = sbr.rel target = $region3
  $region8: #{rasterized_planning_forward.4} parent=0 // loop_exit
    _

// kernel: rasterized_planning_forward.6
$region0: #{rasterized_planning_forward.6}
  #allocation0 [shape = 'u32[]', space=smem, size = 0x4, offset = 0x4, fixed_abs, tag = 'smem constant byte address 0x4 - core index']
  #allocation1 [shape = 'u32[72,128]{1,0:T(1,128)}', space=vmem, size = 0x9000, scoped, tag = 'internal scratch']
  #allocation2 [shape = 'f32[8,128]{1,0:T(8,128)}', space=vmem, size = 0x1000, scoped, tag = 'scratch operand']
  %s0 = inlined_call_operand.vmem [shape: bf16[8,128], index: 0, kind: input, shape index: {}]
  %s1 = inlined_call_operand.vmem [shape: bf16[128,128], index: 1, kind: input, shape index: {}]
  %s2 = inlined_call_operand.vmem [shape: f32[1,128], index: 2, kind: input, shape index: {}]
  %s3 = inlined_call_operand.vmem [shape: f32[8,128], index: 3, kind: output, shape index: {}]
  %s4 = sld [smem:[#allocation0]]
  $region30: #{rasterized_planning_forward.6} parent=0
    _
  %s6 = ssub.s32 1, %s4
  %s7 = scalar_select 0, %s6, %s4
  // Predicated region
  $region2: #{rasterized_planning_forward.6} parent=0 // pred_check
    _
  $region3: #{rasterized_planning_forward.6} parent=0 // pred_check_branch
    %9 = sbr.rel (0) target = $region5
  $region4: #{rasterized_planning_forward.6} parent=0 // pred_region
    _
  $region5: #{rasterized_planning_forward.6} parent=0 // pred_fallthru
    _
  // Predicated region
  $region6: #{rasterized_planning_forward.6} parent=0 // pred_check
    _
  $region7: #{rasterized_planning_forward.6} parent=0 // pred_check_branch
    %11 = sbr.rel (0) target = $region9
  $region8: #{rasterized_planning_forward.6} parent=0 // pred_region
    _
  $region9: #{rasterized_planning_forward.6} parent=0 // pred_fallthru
    _
  // Predicated region
  $region10: #{rasterized_planning_forward.6} parent=0 // pred_check
    _
  $region11: #{rasterized_planning_forward.6} parent=0 // pred_check_branch
    %13 = sbr.rel (0) target = $region13
  $region12: #{rasterized_planning_forward.6} parent=0 // pred_region
    _
  $region13: #{rasterized_planning_forward.6} parent=0 // pred_fallthru
    _
  %p14 = scmp.eq.s32.totalorder 0, 0
  // Predicated region
  $region14: #{rasterized_planning_forward.6} parent=0 // pred_check
    %p15 = pneg %p14
  $region15: #{rasterized_planning_forward.6} parent=0 // pred_check_branch
    %17 = sbr.rel (%p15) target = $region17
  $region16: #{rasterized_planning_forward.6} parent=0 // pred_region
    %18 = vst [vmem:[#allocation2] sm:$0xff] 0.0
  $region17: #{rasterized_planning_forward.6} parent=0 // pred_fallthru
    _
  %v19 = vld [vmem:[#allocation2] sm:$0xff]
  %v20 = vld [vmem:[%s0] sm:$0xf]
  %v21 = vld [vmem:[%s1] sm:$0xf]
  %v22 = vld [vmem:[%s1 + $0x4] sm:$0xf]
  %v23 = vld [vmem:[%s1 + $0x8] sm:$0xf]
  %v24 = vld [vmem:[%s1 + $0xc] sm:$0xf]
  %v25 = vld [vmem:[%s1 + $0x10] sm:$0xf]
  %v26 = vld [vmem:[%s1 + $0x14] sm:$0xf]
  %v27 = vld [vmem:[%s1 + $0x18] sm:$0xf]
  %v28 = vld [vmem:[%s1 + $0x1c] sm:$0xf]
  %v29 = vld [vmem:[%s1 + $0x20] sm:$0xf]
  %v30 = vld [vmem:[%s1 + $0x24] sm:$0xf]
  %v31 = vld [vmem:[%s1 + $0x28] sm:$0xf]
  %v32 = vld [vmem:[%s1 + $0x2c] sm:$0xf]
  %v33 = vld [vmem:[%s1 + $0x30] sm:$0xf]
  %v34 = vld [vmem:[%s1 + $0x34] sm:$0xf]
  %v35 = vld [vmem:[%s1 + $0x38] sm:$0xf]
  %v36 = vld [vmem:[%s1 + $0x3c] sm:$0xf]
  %v53 = vunpack.c.l.b16 %v21
  %v54 = vunpack.c.l.b16 %v22
  %v55 = vunpack.c.l.b16 %v23
  %v56 = vunpack.c.l.b16 %v24
  %v57 = vunpack.c.l.b16 %v25
  %v58 = vunpack.c.l.b16 %v26
  %v59 = vunpack.c.l.b16 %v27
  %v60 = vunpack.c.l.b16 %v28
  %v61 = vunpack.c.l.b16 %v29
  %v62 = vunpack.c.l.b16 %v30
  %v63 = vunpack.c.l.b16 %v31
  %v64 = vunpack.c.l.b16 %v32
  %v65 = vunpack.c.l.b16 %v33
  %v66 = vunpack.c.l.b16 %v34
  %v67 = vunpack.c.l.b16 %v35
  %v68 = vunpack.c.l.b16 %v36
  %v69 = vpack.c.b16 %v54, %v53
  %v70 = vpack.c.b16 %v56, %v55
  %v71 = vpack.c.b16 %v58, %v57
  %v72 = vpack.c.b16 %v60, %v59
  %v73 = vpack.c.b16 %v62, %v61
  %v74 = vpack.c.b16 %v64, %v63
  %v75 = vpack.c.b16 %v66, %v65
  %v76 = vpack.c.b16 %v68, %v67
  %85 = vmatpush.bf16.msra.mxu0 %v76
  %86 = vmatpush.bf16.msra.mxu0 %v75
  %87 = vmatpush.bf16.msra.mxu0 %v74
  %88 = vmatpush.bf16.msra.mxu0 %v73
  %89 = vmatpush.bf16.msra.mxu0 %v72
  %90 = vmatpush.bf16.msra.mxu0 %v71
  %91 = vmatpush.bf16.msra.mxu0 %v70
  %92 = vmatpush.bf16.msra.mxu0 %v69
  %93 = vmatmul.bf16.gmra.mxu0 %v20
  %v94 = vpop.f32.mrf.mxu0
  %v95 = vadd.f32 0.0, %v94
  %v96 = vpop.f32.mrf.mxu0
  %97 = vdwg.mxu0
  %v98 = vadd.f32 %v19, %v95
  %99 = vst [vmem:[#allocation2] sm:$0xff] %v98
  // Predicated region
  $region18: #{rasterized_planning_forward.6} parent=0 // pred_check
    %p100 = pneg %p14
  $region19: #{rasterized_planning_forward.6} parent=0 // pred_check_branch
    %102 = sbr.rel (%p100) target = $region21
  $region20: #{rasterized_planning_forward.6} parent=0 // pred_region
    %v103 = vld [vmem:[#allocation2] sm:$0xff]
    %v104 = vld [vmem:[%s2] sm:$0x1]
    %v106 = vperm.slane %v104, 0
    %v108 = vadd.f32 %v103, %v106
    %109 = vst [vmem:[%s3] sm:$0xff] %v108
  $region21: #{rasterized_planning_forward.6} parent=0 // pred_fallthru
    _
  // Predicated region
  $region22: #{rasterized_planning_forward.6} parent=0 // pred_check
    _
  $region23: #{rasterized_planning_forward.6} parent=0 // pred_check_branch
    %111 = sbr.rel (0) target = $region25
  $region24: #{rasterized_planning_forward.6} parent=0 // pred_region
    _
  $region25: #{rasterized_planning_forward.6} parent=0 // pred_fallthru
    _
  // Predicated region
  $region26: #{rasterized_planning_forward.6} parent=0 // pred_check
    _
  $region27: #{rasterized_planning_forward.6} parent=0 // pred_check_branch
    %113 = sbr.rel (0) target = $region29
  $region28: #{rasterized_planning_forward.6} parent=0 // pred_region
    _
  $region29: #{rasterized_planning_forward.6} parent=0 // pred_fallthru
    _

// kernel: rasterized_planning_forward.7
$region0: #{rasterized_planning_forward.7}
  #allocation0 [shape = 'u32[]', space=smem, size = 0x4, offset = 0x4, fixed_abs, tag = 'smem constant byte address 0x4 - core index']
  #allocation1 [shape = 'u32[72,128]{1,0:T(1,128)}', space=vmem, size = 0x9000, scoped, tag = 'internal scratch']
  %s0 = inlined_call_operand.vmem [shape: f32[2,36], index: 0, kind: input, shape index: {}]
  %s1 = inlined_call_operand.vmem [shape: f32[2,36], index: 1, kind: input, shape index: {}]
  %s2 = inlined_call_operand.vmem [shape: f32[2,36], index: 2, kind: input, shape index: {}]
  %s3 = inlined_call_operand.hbm [shape: f32[1,1], index: 3, kind: output, shape index: {}]
  %s4 = sld [smem:[#allocation0]]
  $region22: #{rasterized_planning_forward.7} parent=0
    _
  %s6 = ssub.s32 1, %s4
  %s7 = scalar_select 0, %s6, %s4
  $region1: #{rasterized_planning_forward.7} parent=0
    #allocation2 [shape = 'u8[512]{0}', space=smem, size = 0x200, scoped, tag = 'output window, operand 0, single buffered']
    #allocation3 [shape = 's32[1]{0}', space=sflag, size = 0x4, scoped, tag = 'scoped memory for rasterized_planning_forward.7']
    %8 = vsyncpa [#allocation3], 0
    // Predicated region
    $region2: #{rasterized_planning_forward.7} parent=1 // pred_check
      _
    $region3: #{rasterized_planning_forward.7} parent=1 // pred_check_branch
      %10 = sbr.rel (0) target = $region5
    $region4: #{rasterized_planning_forward.7} parent=1 // pred_region
      _
    $region5: #{rasterized_planning_forward.7} parent=1 // pred_fallthru
      _
    // Predicated region
    $region6: #{rasterized_planning_forward.7} parent=1 // pred_check
      _
    $region7: #{rasterized_planning_forward.7} parent=1 // pred_check_branch
      %12 = sbr.rel (0) target = $region9
    $region8: #{rasterized_planning_forward.7} parent=1 // pred_region
      _
    $region9: #{rasterized_planning_forward.7} parent=1 // pred_fallthru
      _
    // Predicated region
    $region10: #{rasterized_planning_forward.7} parent=1 // pred_check
      _
    $region11: #{rasterized_planning_forward.7} parent=1 // pred_check_branch
      %14 = sbr.rel (0) target = $region13
    $region12: #{rasterized_planning_forward.7} parent=1 // pred_region
      _
    $region13: #{rasterized_planning_forward.7} parent=1 // pred_fallthru
      _
    %v15 = vld [vmem:[%s0] sm:$0x3]
    %v16 = vld [vmem:[%s1] sm:$0x3]
    %v17 = vsub.f32 %v15, %v16
    %v18 = vmul.f32 %v17, %v17
    %v19 = vld [vmem:[%s2] sm:$0x3]
    %v20 = vmul.f32 %v18, %v19
    %vm21 = vcmask 287744
    %v22 = vsel %vm21, %v20, 0.0
    %23 = vadd.xlane.f32.xlu0 %v22
    %v24 = vpop.xlane.xlu0 %23
    %v25 = vrot.slane %v24, 4
    %v26 = vadd.f32 %v24, %v25
    %v27 = vrot.slane %v26, 2
    %v28 = vadd.f32 %v26, %v27
    %v29 = vrot.slane %v28, 1
    %v30 = vadd.f32 %v28, %v29
    %s31 = vtos %v30
    %v32 = vrcp.pop 72.0
    %v33 = vmul.f32 72.0, %v32
    %v34 = vsub.f32 1.0, %v33
    %v35 = vmul.f32 %v32, %v34
    %v36 = vadd.f32 %v32, %v35
    %vm37 = vweird.f32 %v32
    %v38 = vsel %vm37, %v32, %v36
    %s39 = vtos %v38
    %s40 = smul.f32 %s31, %s39
    %s41 = scalar_lea.smem [#allocation2], 0
    %42 = sst [smem:[%s41]] %s40
    // Predicated region
    $region14: #{rasterized_planning_forward.7} parent=1 // pred_check
      _
    $region15: #{rasterized_planning_forward.7} parent=1 // pred_check_branch
      %44 = sbr.rel (0) target = $region17
    $region16: #{rasterized_planning_forward.7} parent=1 // pred_region
      %46 = vsyncadd [#allocation3], 0
      %s48 = sshll.u32 %s3, 4
      %s49 = int_to_ptr.hbm [resolvable:$true] %s48
      %51 = dma.smem_to_hbm [#allocation2], 16, %s49, [#allocation3]
    $region17: #{rasterized_planning_forward.7} parent=1 // pred_fallthru
      _
    // Predicated region
    $region18: #{rasterized_planning_forward.7} parent=1 // pred_check
      _
    $region19: #{rasterized_planning_forward.7} parent=1 // pred_check_branch
      %53 = sbr.rel (0) target = $region21
    $region20: #{rasterized_planning_forward.7} parent=1 // pred_region
      %55 = dma.done [#allocation3], 16
    $region21: #{rasterized_planning_forward.7} parent=1 // pred_fallthru
      _
    %56 = sfence
    %57 = vsyncpa [#allocation3], 1

// kernel: rasterized_planning_forward.5
$region0: #{rasterized_planning_forward.5}
  #allocation0 [shape = 'u32[]', space=smem, size = 0x4, offset = 0x4, fixed_abs, tag = 'smem constant byte address 0x4 - core index']
  #allocation1 [shape = 'u32[72,128]{1,0:T(1,128)}', space=vmem, size = 0x9000, scoped, tag = 'internal scratch']
  %s0 = inlined_call_operand.vmem [shape: bf16[2,4,3200], index: 0, kind: input, shape index: {}]
  %s1 = inlined_call_operand.vmem [shape: bf16[3200,128], index: 1, kind: input, shape index: {}]
  %s2 = inlined_call_operand.vmem [shape: f32[3,128], index: 2, kind: input, shape index: {}]
  %s3 = inlined_call_operand.vmem [shape: f32[2,1,128], index: 3, kind: output, shape index: {}]
  %s4 = sld [smem:[#allocation0]]
  $region45: #{rasterized_planning_forward.5} parent=0
    _
  %s6 = ssub.s32 1, %s4
  %s7 = scalar_select 0, %s6, %s4
  loop: start=0, step=1, limit=4
  $region2: #{rasterized_planning_forward.5} parent=0 // loop_pre_header
    _
  $region3: #{rasterized_planning_forward.5} parent=0 // loop_header
    %s9 = sphi 0, %s13
    %p10 = scmp.ge.s32.totalorder %s9, 4
    %s19 = sphi 0, %s21
    %s22 = sphi 0, %s19
    %s23 = sphi 0, %s22
    %s39 = sphi 0, %s23
    %s43 = sphi 0, %s43
    %s45 = sphi 0, %s43
    %s46 = sphi 0, %s45
    %s60 = sphi 0, %s46
    %s64 = sphi 0, %s64
    %s66 = sphi 0, %s64
    %s67 = sphi 0, %s66
    %s81 = sphi 0, %s67
    %s87 = sphi 0, %s89
    %s90 = sphi 0, %s87
    %s91 = sphi 0, %s90
    %s107 = sphi 0, %s91
  $region4: #{rasterized_planning_forward.5} parent=0 // loop_header_branch
    %12 = sbr.rel (%p10) target = $region8
  $region5: #{rasterized_planning_forward.5} parent=0 // loop_body
    %s14 = ssub.s32 %s9, 1
    %s15 = ssub.s32 %s9, 2
    %s16 = sadd.s32 %s9, 1
    %s17 = ssub.s32 %s9, %s16
    %p18 = scmp.eq.s32.totalorder %s17, 0
    %s20 = sadd.s32 %s19, 1
    %s21 = scalar_select %p18, %s19, %s20
    %p24 = pneg %p18
    %p25 = scmp.eq.s32.totalorder %s9, 1
    %p26 = por %p24, %p25
    %p27 = scmp.ne.s32.totalorder %s19, %s22
    %p28 = scmp.eq.s32.totalorder %s9, 0
    %p29 = por %p27, %p28
    %p30 = scmp.ne.s32.totalorder %s19, %s22
    %p31 = scmp.eq.s32.totalorder %s14, 1
    %p32 = por %p30, %p31
    %p33 = scmp.ne.s32.totalorder %s22, %s23
    %p34 = scmp.eq.s32.totalorder %s14, 0
    %p35 = por %p33, %p34
    %p36 = scmp.ne.s32.totalorder %s22, %s23
    %p37 = scmp.eq.s32.totalorder %s15, 1
    %p38 = por %p36, %p37
    %p40 = scmp.ne.s32.totalorder %s23, %s39
    %p41 = scmp.eq.s32.totalorder %s15, 0
    %p42 = por %p40, %p41
    %s44 = sadd.s32 %s43, 1
    %p47 = scmp.eq.s32.totalorder %s9, 1
    %p48 = scmp.ne.s32.totalorder %s43, %s45
    %p49 = scmp.eq.s32.totalorder %s9, 0
    %p50 = por %p48, %p49
    %p51 = scmp.ne.s32.totalorder %s43, %s45
    %p52 = scmp.eq.s32.totalorder %s14, 1
    %p53 = por %p51, %p52
    %p54 = scmp.ne.s32.totalorder %s45, %s46
    %p55 = scmp.eq.s32.totalorder %s14, 0
    %p56 = por %p54, %p55
    %p57 = scmp.ne.s32.totalorder %s45, %s46
    %p58 = scmp.eq.s32.totalorder %s15, 1
    %p59 = por %p57, %p58
    %p61 = scmp.ne.s32.totalorder %s46, %s60
    %p62 = scmp.eq.s32.totalorder %s15, 0
    %p63 = por %p61, %p62
    %s65 = sadd.s32 %s64, 1
    %p68 = scmp.eq.s32.totalorder %s9, 1
    %p69 = scmp.ne.s32.totalorder %s64, %s66
    %p70 = scmp.eq.s32.totalorder %s9, 0
    %p71 = por %p69, %p70
    %p72 = scmp.ne.s32.totalorder %s64, %s66
    %p73 = scmp.eq.s32.totalorder %s14, 1
    %p74 = por %p72, %p73
    %p75 = scmp.ne.s32.totalorder %s66, %s67
    %p76 = scmp.eq.s32.totalorder %s14, 0
    %p77 = por %p75, %p76
    %p78 = scmp.ne.s32.totalorder %s66, %s67
    %p79 = scmp.eq.s32.totalorder %s15, 1
    %p80 = por %p78, %p79
    %p82 = scmp.ne.s32.totalorder %s67, %s81
    %p83 = scmp.eq.s32.totalorder %s15, 0
    %p84 = por %p82, %p83
    %s85 = ssub.s32 %s9, %s16
    %p86 = scmp.eq.s32.totalorder %s85, 0
    %s88 = sadd.s32 %s87, 1
    %s89 = scalar_select %p86, %s87, %s88
    %p92 = pneg %p86
    %p93 = scmp.eq.s32.totalorder %s9, 1
    %p94 = por %p92, %p93
    %p95 = scmp.ne.s32.totalorder %s87, %s90
    %p96 = scmp.eq.s32.totalorder %s9, 0
    %p97 = por %p95, %p96
    %p98 = scmp.ne.s32.totalorder %s87, %s90
    %p99 = scmp.eq.s32.totalorder %s14, 1
    %p100 = por %p98, %p99
    %p101 = scmp.ne.s32.totalorder %s90, %s91
    %p102 = scmp.eq.s32.totalorder %s14, 0
    %p103 = por %p101, %p102
    %p104 = scmp.ne.s32.totalorder %s90, %s91
    %p105 = scmp.eq.s32.totalorder %s15, 1
    %p106 = por %p104, %p105
    %p108 = scmp.ne.s32.totalorder %s91, %s107
    %p109 = scmp.eq.s32.totalorder %s15, 0
    %p110 = por %p108, %p109
    %p111 = scmp.le.s32.totalorder 1, %s9
    %p112 = scmp.lt.s32.totalorder %s9, 3
    %p113 = pnand %p111, %p112
    %p114 = pneg %p113
    // Predicated region
    $region9: #{rasterized_planning_forward.5} parent=5 // pred_check
      _
    $region10: #{rasterized_planning_forward.5} parent=5 // pred_check_branch
      %116 = sbr.rel (%p113) target = $region12
    $region11: #{rasterized_planning_forward.5} parent=5 // pred_region
      %s117 = ssub.s32 %s9, 1
      // Predicated region
      $region13: #{rasterized_planning_forward.5} parent=11 // pred_check
        %p118 = pneg %p56
      $region14: #{rasterized_planning_forward.5} parent=11 // pred_check_branch
        %120 = sbr.rel (%p118) target = $region16
      $region15: #{rasterized_planning_forward.5} parent=11 // pred_region
        _
      $region16: #{rasterized_planning_forward.5} parent=11 // pred_fallthru
        _
      // Predicated region
      $region17: #{rasterized_planning_forward.5} parent=11 // pred_check
        %p121 = pneg %p77
      $region18: #{rasterized_planning_forward.5} parent=11 // pred_check_branch
        %123 = sbr.rel (%p121) target = $region20
      $region19: #{rasterized_planning_forward.5} parent=11 // pred_region
        _
      $region20: #{rasterized_planning_forward.5} parent=11 // pred_fallthru
        _
    $region12: #{rasterized_planning_forward.5} parent=5 // pred_fallthru
      _
    %p124 = scmp.lt.s32.totalorder %s9, 2
    // Predicated region
    $region21: #{rasterized_planning_forward.5} parent=5 // pred_check
      %p125 = pneg %p124
    $region22: #{rasterized_planning_forward.5} parent=5 // pred_check_branch
      %127 = sbr.rel (%p125) target = $region24
    $region23: #{rasterized_planning_forward.5} parent=5 // pred_region
      // Predicated region
      $region25: #{rasterized_planning_forward.5} parent=23 // pred_check
        %p128 = pneg %p29
      $region26: #{rasterized_planning_forward.5} parent=23 // pred_check_branch
        %130 = sbr.rel (%p128) target = $region28
      $region27: #{rasterized_planning_forward.5} parent=23 // pred_region
        %p131 = scmp.lt.s32.totalorder %s9, 1
        %s132 = scalar_select %p131, %s9, 1
        %s133 = smul.addr %s132, 25
        %s134 = smul.addr %s133, 2
        %s135 = scalar_lea.vmem %s0, %s134
      $region28: #{rasterized_planning_forward.5} parent=23 // pred_fallthru
        _
    $region24: #{rasterized_planning_forward.5} parent=5 // pred_fallthru
      _
    %p136 = scmp.le.s32.totalorder 1, %s9
    %p137 = scmp.lt.s32.totalorder %s9, 3
    %p138 = pnand %p136, %p137
    %p139 = pneg %p138
    // Predicated region
    $region29: #{rasterized_planning_forward.5} parent=5 // pred_check
      _
    $region30: #{rasterized_planning_forward.5} parent=5 // pred_check_branch
      %141 = sbr.rel (%p138) target = $region32
    $region31: #{rasterized_planning_forward.5} parent=5 // pred_region
      %s142 = ssub.s32 %s9, 1
      %p143 = scmp.lt.s32.totalorder %s14, 1
      %s144 = scalar_select %p143, %s14, 1
      %s145 = smul.addr %s144, 25
      %s146 = smul.addr %s145, 2
      %s147 = scalar_lea.vmem %s0, %s146
      %p148 = pneg %p35
      %p149 = pneg %p32
      %p150 = pneg %p56
      %p151 = pneg %p53
      %p152 = pneg %p77
      %p153 = pneg %p74
      %p154 = pneg %p103
      %p155 = pneg %p100
      %p156 = scmp.lt.s32.totalorder %s14, 1
      %s157 = scalar_select %p156, %s14, 1
      %s158 = scalar_lea.vmem %s3, %s157
      %p159 = scmp.lt.s32.totalorder %s14, 1
      %s160 = scalar_select %p159, %s14, 1
      %s161 = smul.addr %s160, 25
      %s162 = smul.addr %s161, 2
      %s163 = scalar_lea.vmem %s0, %s162
      %p164 = scmp.lt.s32.totalorder %s14, 1
      %s165 = scalar_select %p164, %s14, 1
      %s166 = scalar_lea.vmem %s3, %s165
      %v167 = vld [vmem:[%s163] sm:$0xff]
      %v168 = vld [vmem:[%s163 + $0x8] sm:$0xff]
      %v169 = vld [vmem:[%s163 + $0x10] sm:$0xff]
      %v170 = vld [vmem:[%s163 + $0x18] sm:$0xff]
      %v171 = vld [vmem:[%s163 + $0x20] sm:$0xff]
      %v172 = vld [vmem:[%s163 + $0x28] sm:$0xff]
      %v173 = vld [vmem:[%s163 + $0x30] sm:$0x3]
      %v174 = vld [vmem:[%s1] sm:$0xf]
      %v175 = vld [vmem:[%s1 + $0x4] sm:$0xf]
      %v176 = vld [vmem:[%s1 + $0x8] sm:$0xf]
      %v177 = vld [vmem:[%s1 + $0xc] sm:$0xf]
      %v178 = vld [vmem:[%s1 + $0x10] sm:$0xf]
      %v179 = vld [vmem:[%s1 + $0x14] sm:$0xf]
      %v180 = vld [vmem:[%s1 + $0x18] sm:$0xf]
      %v181 = vld [vmem:[%s1 + $0x1c] sm:$0xf]
      %v182 = vld [vmem:[%s1 + $0x20] sm:$0xf]
      %v183 = vld [vmem:[%s1 + $0x24] sm:$0xf]
      %v184 = vld [vmem:[%s1 + $0x28] sm:$0xf]
      %v185 = vld [vmem:[%s1 + $0x2c] sm:$0xf]
      %v186 = vld [vmem:[%s1 + $0x30] sm:$0xf]
      %v187 = vld [vmem:[%s1 + $0x34] sm:$0xf]
      %v188 = vld [vmem:[%s1 + $0x38] sm:$0xf]
      %v189 = vld [vmem:[%s1 + $0x3c] sm:$0xf]
      %v190 = vld [vmem:[%s1 + $0x40] sm:$0xf]
      %v191 = vld [vmem:[%s1 + $0x44] sm:$0xf]
      %v192 = vld [vmem:[%s1 + $0x48] sm:$0xf]
      %v193 = vld [vmem:[%s1 + $0x4c] sm:$0xf]
      %v194 = vld [vmem:[%s1 + $0x50] sm:$0xf]
      %v195 = vld [vmem:[%s1 + $0x54] sm:$0xf]
      %v196 = vld [vmem:[%s1 + $0x58] sm:$0xf]
      %v197 = vld [vmem:[%s1 + $0x5c] sm:$0xf]
      %v198 = vld [vmem:[%s1 + $0x60] sm:$0xf]
      %v199 = vld [vmem:[%s1 + $0x64] sm:$0xf]
      %v200 = vld [vmem:[%s1 + $0x68] sm:$0xf]
      %v201 = vld [vmem:[%s1 + $0x6c] sm:$0xf]
      %v202 = vld [vmem:[%s1 + $0x70] sm:$0xf]
      %v203 = vld [vmem:[%s1 + $0x74] sm:$0xf]
      %v204 = vld [vmem:[%s1 + $0x78] sm:$0xf]
      %v205 = vld [vmem:[%s1 + $0x7c] sm:$0xf]
      %v206 = vld [vmem:[%s1 + $0x80] sm:$0xf]
      %v207 = vld [vmem:[%s1 + $0x84] sm:$0xf]
      %v208 = vld [vmem:[%s1 + $0x88] sm:$0xf]
      %v209 = vld [vmem:[%s1 + $0x8c] sm:$0xf]
      %v210 = vld [vmem:[%s1 + $0x90] sm:$0xf]
      %v211 = vld [vmem:[%s1 + $0x94] sm:$0xf]
      %v212 = vld [vmem:[%s1 + $0x98] sm:$0xf]
      %v213 = vld [vmem:[%s1 + $0x9c] sm:$0xf]
      %v214 = vld [vmem:[%s1 + $0xa0] sm:$0xf]
      %v215 = vld [vmem:[%s1 + $0xa4] sm:$0xf]
      %v216 = vld [vmem:[%s1 + $0xa8] sm:$0xf]
      %v217 = vld [vmem:[%s1 + $0xac] sm:$0xf]
      %v218 = vld [vmem:[%s1 + $0xb0] sm:$0xf]
      %v219 = vld [vmem:[%s1 + $0xb4] sm:$0xf]
      %v220 = vld [vmem:[%s1 + $0xb8] sm:$0xf]
      %v221 = vld [vmem:[%s1 + $0xbc] sm:$0xf]
      %v222 = vld [vmem:[%s1 + $0xc0] sm:$0xf]
      %v223 = vld [vmem:[%s1 + $0xc4] sm:$0xf]
      %v224 = vld [vmem:[%s1 + $0xc8] sm:$0xf]
      %v225 = vld [vmem:[%s1 + $0xcc] sm:$0xf]
      %v226 = vld [vmem:[%s1 + $0xd0] sm:$0xf]
      %v227 = vld [vmem:[%s1 + $0xd4] sm:$0xf]
      %v228 = vld [vmem:[%s1 + $0xd8] sm:$0xf]
      %v229 = vld [vmem:[%s1 + $0xdc] sm:$0xf]
      %v230 = vld [vmem:[%s1 + $0xe0] sm:$0xf]
      %v231 = vld [vmem:[%s1 + $0xe4] sm:$0xf]
      %v232 = vld [vmem:[%s1 + $0xe8] sm:$0xf]
      %v233 = vld [vmem:[%s1 + $0xec] sm:$0xf]
      %v234 = vld [vmem:[%s1 + $0xf0] sm:$0xf]
      %v235 = vld [vmem:[%s1 + $0xf4] sm:$0xf]
      %v236 = vld [vmem:[%s1 + $0xf8] sm:$0xf]
      %v237 = vld [vmem:[%s1 + $0xfc] sm:$0xf]
      %v238 = vld [vmem:[%s1 + $0x100] sm:$0xf]
      %v239 = vld [vmem:[%s1 + $0x104] sm:$0xf]
      %v240 = vld [vmem:[%s1 + $0x108] sm:$0xf]
      %v241 = vld [vmem:[%s1 + $0x10c] sm:$0xf]
      %v242 = vld [vmem:[%s1 + $0x110] sm:$0xf]
      %v243 = vld [vmem:[%s1 + $0x114] sm:$0xf]
      %v244 = vld [vmem:[%s1 + $0x118] sm:$0xf]
      %v245 = vld [vmem:[%s1 + $0x11c] sm:$0xf]
      %v246 = vld [vmem:[%s1 + $0x120] sm:$0xf]
      %v247 = vld [vmem:[%s1 + $0x124] sm:$0xf]
      %v248 = vld [vmem:[%s1 + $0x128] sm:$0xf]
      %v249 = vld [vmem:[%s1 + $0x12c] sm:$0xf]
      %v250 = vld [vmem:[%s1 + $0x130] sm:$0xf]
      %v251 = vld [vmem:[%s1 + $0x134] sm:$0xf]
      %v252 = vld [vmem:[%s1 + $0x138] sm:$0xf]
      %v253 = vld [vmem:[%s1 + $0x13c] sm:$0xf]
      %v254 = vld [vmem:[%s1 + $0x140] sm:$0xf]
      %v255 = vld [vmem:[%s1 + $0x144] sm:$0xf]
      %v256 = vld [vmem:[%s1 + $0x148] sm:$0xf]
      %v257 = vld [vmem:[%s1 + $0x14c] sm:$0xf]
      %v258 = vld [vmem:[%s1 + $0x150] sm:$0xf]
      %v259 = vld [vmem:[%s1 + $0x154] sm:$0xf]
      %v260 = vld [vmem:[%s1 + $0x158] sm:$0xf]
      %v261 = vld [vmem:[%s1 + $0x15c] sm:$0xf]
      %v262 = vld [vmem:[%s1 + $0x160] sm:$0xf]
      %v263 = vld [vmem:[%s1 + $0x164] sm:$0xf]
      %v264 = vld [vmem:[%s1 + $0x168] sm:$0xf]
      %v265 = vld [vmem:[%s1 + $0x16c] sm:$0xf]
      %v266 = vld [vmem:[%s1 + $0x170] sm:$0xf]
      %v267 = vld [vmem:[%s1 + $0x174] sm:$0xf]
      %v268 = vld [vmem:[%s1 + $0x178] sm:$0xf]
      %v269 = vld [vmem:[%s1 + $0x17c] sm:$0xf]
      %v270 = vld [vmem:[%s1 + $0x180] sm:$0xf]
      %v271 = vld [vmem:[%s1 + $0x184] sm:$0xf]
      %v272 = vld [vmem:[%s1 + $0x188] sm:$0xf]
      %v273 = vld [vmem:[%s1 + $0x18c] sm:$0xf]
      %v274 = vld [vmem:[%s1 + $0x190] sm:$0xf]
      %v275 = vld [vmem:[%s1 + $0x194] sm:$0xf]
      %v276 = vld [vmem:[%s1 + $0x198] sm:$0xf]
      %v277 = vld [vmem:[%s1 + $0x19c] sm:$0xf]
      %v278 = vld [vmem:[%s1 + $0x1a0] sm:$0xf]
      %v279 = vld [vmem:[%s1 + $0x1a4] sm:$0xf]
      %v280 = vld [vmem:[%s1 + $0x1a8] sm:$0xf]
      %v281 = vld [vmem:[%s1 + $0x1ac] sm:$0xf]
      %v282 = vld [vmem:[%s1 + $0x1b0] sm:$0xf]
      %v283 = vld [vmem:[%s1 + $0x1b4] sm:$0xf]
      %v284 = vld [vmem:[%s1 + $0x1b8] sm:$0xf]
      %v285 = vld [vmem:[%s1 + $0x1bc] sm:$0xf]
      %v286 = vld [vmem:[%s1 + $0x1c0] sm:$0xf]
      %v287 = vld [vmem:[%s1 + $0x1c4] sm:$0xf]
      %v288 = vld [vmem:[%s1 + $0x1c8] sm:$0xf]
      %v289 = vld [vmem:[%s1 + $0x1cc] sm:$0xf]
      %v290 = vld [vmem:[%s1 + $0x1d0] sm:$0xf]
      %v291 = vld [vmem:[%s1 + $0x1d4] sm:$0xf]
      %v292 = vld [vmem:[%s1 + $0x1d8] sm:$0xf]
      %v293 = vld [vmem:[%s1 + $0x1dc] sm:$0xf]
      %v294 = vld [vmem:[%s1 + $0x1e0] sm:$0xf]
      %v295 = vld [vmem:[%s1 + $0x1e4] sm:$0xf]
      %v296 = vld [vmem:[%s1 + $0x1e8] sm:$0xf]
      %v297 = vld [vmem:[%s1 + $0x1ec] sm:$0xf]
      %v298 = vld [vmem:[%s1 + $0x1f0] sm:$0xf]
      %v299 = vld [vmem:[%s1 + $0x1f4] sm:$0xf]
      %v300 = vld [vmem:[%s1 + $0x1f8] sm:$0xf]
      %v301 = vld [vmem:[%s1 + $0x1fc] sm:$0xf]
      %v302 = vld [vmem:[%s1 + $0x200] sm:$0xf]
      %v303 = vld [vmem:[%s1 + $0x204] sm:$0xf]
      %v304 = vld [vmem:[%s1 + $0x208] sm:$0xf]
      %v305 = vld [vmem:[%s1 + $0x20c] sm:$0xf]
      %v306 = vld [vmem:[%s1 + $0x210] sm:$0xf]
      %v307 = vld [vmem:[%s1 + $0x214] sm:$0xf]
      %v308 = vld [vmem:[%s1 + $0x218] sm:$0xf]
      %v309 = vld [vmem:[%s1 + $0x21c] sm:$0xf]
      %v310 = vld [vmem:[%s1 + $0x220] sm:$0xf]
      %v311 = vld [vmem:[%s1 + $0x224] sm:$0xf]
      %v312 = vld [vmem:[%s1 + $0x228] sm:$0xf]
      %v313 = vld [vmem:[%s1 + $0x22c] sm:$0xf]
      %v314 = vld [vmem:[%s1 + $0x230] sm:$0xf]
      %v315 = vld [vmem:[%s1 + $0x234] sm:$0xf]
      %v316 = vld [vmem:[%s1 + $0x238] sm:$0xf]
      %v317 = vld [vmem:[%s1 + $0x23c] sm:$0xf]
      %v318 = vld [vmem:[%s1 + $0x240] sm:$0xf]
      %v319 = vld [vmem:[%s1 + $0x244] sm:$0xf]
      %v320 = vld [vmem:[%s1 + $0x248] sm:$0xf]
      %v321 = vld [vmem:[%s1 + $0x24c] sm:$0xf]
      %v322 = vld [vmem:[%s1 + $0x250] sm:$0xf]
      %v323 = vld [vmem:[%s1 + $0x254] sm:$0xf]
      %v324 = vld [vmem:[%s1 + $0x258] sm:$0xf]
      %v325 = vld [vmem:[%s1 + $0x25c] sm:$0xf]
      %v326 = vld [vmem:[%s1 + $0x260] sm:$0xf]
      %v327 = vld [vmem:[%s1 + $0x264] sm:$0xf]
      %v328 = vld [vmem:[%s1 + $0x268] sm:$0xf]
      %v329 = vld [vmem:[%s1 + $0x26c] sm:$0xf]
      %v330 = vld [vmem:[%s1 + $0x270] sm:$0xf]
      %v331 = vld [vmem:[%s1 + $0x274] sm:$0xf]
      %v332 = vld [vmem:[%s1 + $0x278] sm:$0xf]
      %v333 = vld [vmem:[%s1 + $0x27c] sm:$0xf]
      %v334 = vld [vmem:[%s1 + $0x280] sm:$0xf]
      %v335 = vld [vmem:[%s1 + $0x284] sm:$0xf]
      %v336 = vld [vmem:[%s1 + $0x288] sm:$0xf]
      %v337 = vld [vmem:[%s1 + $0x28c] sm:$0xf]
      %v338 = vld [vmem:[%s1 + $0x290] sm:$0xf]
      %v339 = vld [vmem:[%s1 + $0x294] sm:$0xf]
      %v340 = vld [vmem:[%s1 + $0x298] sm:$0xf]
      %v341 = vld [vmem:[%s1 + $0x29c] sm:$0xf]
      %v342 = vld [vmem:[%s1 + $0x2a0] sm:$0xf]
      %v343 = vld [vmem:[%s1 + $0x2a4] sm:$0xf]
      %v344 = vld [vmem:[%s1 + $0x2a8] sm:$0xf]
      %v345 = vld [vmem:[%s1 + $0x2ac] sm:$0xf]
      %v346 = vld [vmem:[%s1 + $0x2b0] sm:$0xf]
      %v347 = vld [vmem:[%s1 + $0x2b4] sm:$0xf]
      %v348 = vld [vmem:[%s1 + $0x2b8] sm:$0xf]
      %v349 = vld [vmem:[%s1 + $0x2bc] sm:$0xf]
      %v350 = vld [vmem:[%s1 + $0x2c0] sm:$0xf]
      %v351 = vld [vmem:[%s1 + $0x2c4] sm:$0xf]
      %v352 = vld [vmem:[%s1 + $0x2c8] sm:$0xf]
      %v353 = vld [vmem:[%s1 + $0x2cc] sm:$0xf]
      %v354 = vld [vmem:[%s1 + $0x2d0] sm:$0xf]
      %v355 = vld [vmem:[%s1 + $0x2d4] sm:$0xf]
      %v356 = vld [vmem:[%s1 + $0x2d8] sm:$0xf]
      %v357 = vld [vmem:[%s1 + $0x2dc] sm:$0xf]
      %v358 = vld [vmem:[%s1 + $0x2e0] sm:$0xf]
      %v359 = vld [vmem:[%s1 + $0x2e4] sm:$0xf]
      %v360 = vld [vmem:[%s1 + $0x2e8] sm:$0xf]
      %v361 = vld [vmem:[%s1 + $0x2ec] sm:$0xf]
      %v362 = vld [vmem:[%s1 + $0x2f0] sm:$0xf]
      %v363 = vld [vmem:[%s1 + $0x2f4] sm:$0xf]
      %v364 = vld [vmem:[%s1 + $0x2f8] sm:$0xf]
      %v365 = vld [vmem:[%s1 + $0x2fc] sm:$0xf]
      %v366 = vld [vmem:[%s1 + $0x300] sm:$0xf]
      %v367 = vld [vmem:[%s1 + $0x304] sm:$0xf]
      %v368 = vld [vmem:[%s1 + $0x308] sm:$0xf]
      %v369 = vld [vmem:[%s1 + $0x30c] sm:$0xf]
      %v370 = vld [vmem:[%s1 + $0x310] sm:$0xf]
      %v371 = vld [vmem:[%s1 + $0x314] sm:$0xf]
      %v372 = vld [vmem:[%s1 + $0x318] sm:$0xf]
      %v373 = vld [vmem:[%s1 + $0x31c] sm:$0xf]
      %v374 = vld [vmem:[%s1 + $0x320] sm:$0xf]
      %v375 = vld [vmem:[%s1 + $0x324] sm:$0xf]
      %v376 = vld [vmem:[%s1 + $0x328] sm:$0xf]
      %v377 = vld [vmem:[%s1 + $0x32c] sm:$0xf]
      %v378 = vld [vmem:[%s1 + $0x330] sm:$0xf]
      %v379 = vld [vmem:[%s1 + $0x334] sm:$0xf]
      %v380 = vld [vmem:[%s1 + $0x338] sm:$0xf]
      %v381 = vld [vmem:[%s1 + $0x33c] sm:$0xf]
      %v382 = vld [vmem:[%s1 + $0x340] sm:$0xf]
      %v383 = vld [vmem:[%s1 + $0x344] sm:$0xf]
      %v384 = vld [vmem:[%s1 + $0x348] sm:$0xf]
      %v385 = vld [vmem:[%s1 + $0x34c] sm:$0xf]
      %v386 = vld [vmem:[%s1 + $0x350] sm:$0xf]
      %v387 = vld [vmem:[%s1 + $0x354] sm:$0xf]
      %v388 = vld [vmem:[%s1 + $0x358] sm:$0xf]
      %v389 = vld [vmem:[%s1 + $0x35c] sm:$0xf]
      %v390 = vld [vmem:[%s1 + $0x360] sm:$0xf]
      %v391 = vld [vmem:[%s1 + $0x364] sm:$0xf]
      %v392 = vld [vmem:[%s1 + $0x368] sm:$0xf]
      %v393 = vld [vmem:[%s1 + $0x36c] sm:$0xf]
      %v394 = vld [vmem:[%s1 + $0x370] sm:$0xf]
      %v395 = vld [vmem:[%s1 + $0x374] sm:$0xf]
      %v396 = vld [vmem:[%s1 + $0x378] sm:$0xf]
      %v397 = vld [vmem:[%s1 + $0x37c] sm:$0xf]
      %v398 = vld [vmem:[%s1 + $0x380] sm:$0xf]
      %v399 = vld [vmem:[%s1 + $0x384] sm:$0xf]
      %v400 = vld [vmem:[%s1 + $0x388] sm:$0xf]
      %v401 = vld [vmem:[%s1 + $0x38c] sm:$0xf]
      %v402 = vld [vmem:[%s1 + $0x390] sm:$0xf]
      %v403 = vld [vmem:[%s1 + $0x394] sm:$0xf]
      %v404 = vld [vmem:[%s1 + $0x398] sm:$0xf]
      %v405 = vld [vmem:[%s1 + $0x39c] sm:$0xf]
      %v406 = vld [vmem:[%s1 + $0x3a0] sm:$0xf]
      %v407 = vld [vmem:[%s1 + $0x3a4] sm:$0xf]
      %v408 = vld [vmem:[%s1 + $0x3a8] sm:$0xf]
      %v409 = vld [vmem:[%s1 + $0x3ac] sm:$0xf]
      %v410 = vld [vmem:[%s1 + $0x3b0] sm:$0xf]
      %v411 = vld [vmem:[%s1 + $0x3b4] sm:$0xf]
      %v412 = vld [vmem:[%s1 + $0x3b8] sm:$0xf]
      %v413 = vld [vmem:[%s1 + $0x3bc] sm:$0xf]
      %v414 = vld [vmem:[%s1 + $0x3c0] sm:$0xf]
      %v415 = vld [vmem:[%s1 + $0x3c4] sm:$0xf]
      %v416 = vld [vmem:[%s1 + $0x3c8] sm:$0xf]
      %v417 = vld [vmem:[%s1 + $0x3cc] sm:$0xf]
      %v418 = vld [vmem:[%s1 + $0x3d0] sm:$0xf]
      %v419 = vld [vmem:[%s1 + $0x3d4] sm:$0xf]
      %v420 = vld [vmem:[%s1 + $0x3d8] sm:$0xf]
      %v421 = vld [vmem:[%s1 + $0x3dc] sm:$0xf]
      %v422 = vld [vmem:[%s1 + $0x3e0] sm:$0xf]
      %v423 = vld [vmem:[%s1 + $0x3e4] sm:$0xf]
      %v424 = vld [vmem:[%s1 + $0x3e8] sm:$0xf]
      %v425 = vld [vmem:[%s1 + $0x3ec] sm:$0xf]
      %v426 = vld [vmem:[%s1 + $0x3f0] sm:$0xf]
      %v427 = vld [vmem:[%s1 + $0x3f4] sm:$0xf]
      %v428 = vld [vmem:[%s1 + $0x3f8] sm:$0xf]
      %v429 = vld [vmem:[%s1 + $0x3fc] sm:$0xf]
      %v430 = vld [vmem:[%s1 + $0x400] sm:$0xf]
      %v431 = vld [vmem:[%s1 + $0x404] sm:$0xf]
      %v432 = vld [vmem:[%s1 + $0x408] sm:$0xf]
      %v433 = vld [vmem:[%s1 + $0x40c] sm:$0xf]
      %v434 = vld [vmem:[%s1 + $0x410] sm:$0xf]
      %v435 = vld [vmem:[%s1 + $0x414] sm:$0xf]
      %v436 = vld [vmem:[%s1 + $0x418] sm:$0xf]
      %v437 = vld [vmem:[%s1 + $0x41c] sm:$0xf]
      %v438 = vld [vmem:[%s1 + $0x420] sm:$0xf]
      %v439 = vld [vmem:[%s1 + $0x424] sm:$0xf]
      %v440 = vld [vmem:[%s1 + $0x428] sm:$0xf]
      %v441 = vld [vmem:[%s1 + $0x42c] sm:$0xf]
      %v442 = vld [vmem:[%s1 + $0x430] sm:$0xf]
      %v443 = vld [vmem:[%s1 + $0x434] sm:$0xf]
      %v444 = vld [vmem:[%s1 + $0x438] sm:$0xf]
      %v445 = vld [vmem:[%s1 + $0x43c] sm:$0xf]
      %v446 = vld [vmem:[%s1 + $0x440] sm:$0xf]
      %v447 = vld [vmem:[%s1 + $0x444] sm:$0xf]
      %v448 = vld [vmem:[%s1 + $0x448] sm:$0xf]
      %v449 = vld [vmem:[%s1 + $0x44c] sm:$0xf]
      %v450 = vld [vmem:[%s1 + $0x450] sm:$0xf]
      %v451 = vld [vmem:[%s1 + $0x454] sm:$0xf]
      %v452 = vld [vmem:[%s1 + $0x458] sm:$0xf]
      %v453 = vld [vmem:[%s1 + $0x45c] sm:$0xf]
      %v454 = vld [vmem:[%s1 + $0x460] sm:$0xf]
      %v455 = vld [vmem:[%s1 + $0x464] sm:$0xf]
      %v456 = vld [vmem:[%s1 + $0x468] sm:$0xf]
      %v457 = vld [vmem:[%s1 + $0x46c] sm:$0xf]
      %v458 = vld [vmem:[%s1 + $0x470] sm:$0xf]
      %v459 = vld [vmem:[%s1 + $0x474] sm:$0xf]
      %v460 = vld [vmem:[%s1 + $0x478] sm:$0xf]
      %v461 = vld [vmem:[%s1 + $0x47c] sm:$0xf]
      %v462 = vld [vmem:[%s1 + $0x480] sm:$0xf]
      %v463 = vld [vmem:[%s1 + $0x484] sm:$0xf]
      %v464 = vld [vmem:[%s1 + $0x488] sm:$0xf]
      %v465 = vld [vmem:[%s1 + $0x48c] sm:$0xf]
      %v466 = vld [vmem:[%s1 + $0x490] sm:$0xf]
      %v467 = vld [vmem:[%s1 + $0x494] sm:$0xf]
      %v468 = vld [vmem:[%s1 + $0x498] sm:$0xf]
      %v469 = vld [vmem:[%s1 + $0x49c] sm:$0xf]
      %v470 = vld [vmem:[%s1 + $0x4a0] sm:$0xf]
      %v471 = vld [vmem:[%s1 + $0x4a4] sm:$0xf]
      %v472 = vld [vmem:[%s1 + $0x4a8] sm:$0xf]
      %v473 = vld [vmem:[%s1 + $0x4ac] sm:$0xf]
      %v474 = vld [vmem:[%s1 + $0x4b0] sm:$0xf]
      %v475 = vld [vmem:[%s1 + $0x4b4] sm:$0xf]
      %v476 = vld [vmem:[%s1 + $0x4b8] sm:$0xf]
      %v477 = vld [vmem:[%s1 + $0x4bc] sm:$0xf]
      %v478 = vld [vmem:[%s1 + $0x4c0] sm:$0xf]
      %v479 = vld [vmem:[%s1 + $0x4c4] sm:$0xf]
      %v480 = vld [vmem:[%s1 + $0x4c8] sm:$0xf]
      %v481 = vld [vmem:[%s1 + $0x4cc] sm:$0xf]
      %v482 = vld [vmem:[%s1 + $0x4d0] sm:$0xf]
      %v483 = vld [vmem:[%s1 + $0x4d4] sm:$0xf]
      %v484 = vld [vmem:[%s1 + $0x4d8] sm:$0xf]
      %v485 = vld [vmem:[%s1 + $0x4dc] sm:$0xf]
      %v486 = vld [vmem:[%s1 + $0x4e0] sm:$0xf]
      %v487 = vld [vmem:[%s1 + $0x4e4] sm:$0xf]
      %v488 = vld [vmem:[%s1 + $0x4e8] sm:$0xf]
      %v489 = vld [vmem:[%s1 + $0x4ec] sm:$0xf]
      %v490 = vld [vmem:[%s1 + $0x4f0] sm:$0xf]
      %v491 = vld [vmem:[%s1 + $0x4f4] sm:$0xf]
      %v492 = vld [vmem:[%s1 + $0x4f8] sm:$0xf]
      %v493 = vld [vmem:[%s1 + $0x4fc] sm:$0xf]
      %v494 = vld [vmem:[%s1 + $0x500] sm:$0xf]
      %v495 = vld [vmem:[%s1 + $0x504] sm:$0xf]
      %v496 = vld [vmem:[%s1 + $0x508] sm:$0xf]
      %v497 = vld [vmem:[%s1 + $0x50c] sm:$0xf]
      %v498 = vld [vmem:[%s1 + $0x510] sm:$0xf]
      %v499 = vld [vmem:[%s1 + $0x514] sm:$0xf]
      %v500 = vld [vmem:[%s1 + $0x518] sm:$0xf]
      %v501 = vld [vmem:[%s1 + $0x51c] sm:$0xf]
      %v502 = vld [vmem:[%s1 + $0x520] sm:$0xf]
      %v503 = vld [vmem:[%s1 + $0x524] sm:$0xf]
      %v504 = vld [vmem:[%s1 + $0x528] sm:$0xf]
      %v505 = vld [vmem:[%s1 + $0x52c] sm:$0xf]
      %v506 = vld [vmem:[%s1 + $0x530] sm:$0xf]
      %v507 = vld [vmem:[%s1 + $0x534] sm:$0xf]
      %v508 = vld [vmem:[%s1 + $0x538] sm:$0xf]
      %v509 = vld [vmem:[%s1 + $0x53c] sm:$0xf]
      %v510 = vld [vmem:[%s1 + $0x540] sm:$0xf]
      %v511 = vld [vmem:[%s1 + $0x544] sm:$0xf]
      %v512 = vld [vmem:[%s1 + $0x548] sm:$0xf]
      %v513 = vld [vmem:[%s1 + $0x54c] sm:$0xf]
      %v514 = vld [vmem:[%s1 + $0x550] sm:$0xf]
      %v515 = vld [vmem:[%s1 + $0x554] sm:$0xf]
      %v516 = vld [vmem:[%s1 + $0x558] sm:$0xf]
      %v517 = vld [vmem:[%s1 + $0x55c] sm:$0xf]
      %v518 = vld [vmem:[%s1 + $0x560] sm:$0xf]
      %v519 = vld [vmem:[%s1 + $0x564] sm:$0xf]
      %v520 = vld [vmem:[%s1 + $0x568] sm:$0xf]
      %v521 = vld [vmem:[%s1 + $0x56c] sm:$0xf]
      %v522 = vld [vmem:[%s1 + $0x570] sm:$0xf]
      %v523 = vld [vmem:[%s1 + $0x574] sm:$0xf]
      %v524 = vld [vmem:[%s1 + $0x578] sm:$0xf]
      %v525 = vld [vmem:[%s1 + $0x57c] sm:$0xf]
      %v526 = vld [vmem:[%s1 + $0x580] sm:$0xf]
      %v527 = vld [vmem:[%s1 + $0x584] sm:$0xf]
      %v528 = vld [vmem:[%s1 + $0x588] sm:$0xf]
      %v529 = vld [vmem:[%s1 + $0x58c] sm:$0xf]
      %v530 = vld [vmem:[%s1 + $0x590] sm:$0xf]
      %v531 = vld [vmem:[%s1 + $0x594] sm:$0xf]
      %v532 = vld [vmem:[%s1 + $0x598] sm:$0xf]
      %v533 = vld [vmem:[%s1 + $0x59c] sm:$0xf]
      %v534 = vld [vmem:[%s1 + $0x5a0] sm:$0xf]
      %v535 = vld [vmem:[%s1 + $0x5a4] sm:$0xf]
      %v536 = vld [vmem:[%s1 + $0x5a8] sm:$0xf]
      %v537 = vld [vmem:[%s1 + $0x5ac] sm:$0xf]
      %v538 = vld [vmem:[%s1 + $0x5b0] sm:$0xf]
      %v539 = vld [vmem:[%s1 + $0x5b4] sm:$0xf]
      %v540 = vld [vmem:[%s1 + $0x5b8] sm:$0xf]
      %v541 = vld [vmem:[%s1 + $0x5bc] sm:$0xf]
      %v542 = vld [vmem:[%s1 + $0x5c0] sm:$0xf]
      %v543 = vld [vmem:[%s1 + $0x5c4] sm:$0xf]
      %v544 = vld [vmem:[%s1 + $0x5c8] sm:$0xf]
      %v545 = vld [vmem:[%s1 + $0x5cc] sm:$0xf]
      %v546 = vld [vmem:[%s1 + $0x5d0] sm:$0xf]
      %v547 = vld [vmem:[%s1 + $0x5d4] sm:$0xf]
      %v548 = vld [vmem:[%s1 + $0x5d8] sm:$0xf]
      %v549 = vld [vmem:[%s1 + $0x5dc] sm:$0xf]
      %v550 = vld [vmem:[%s1 + $0x5e0] sm:$0xf]
      %v551 = vld [vmem:[%s1 + $0x5e4] sm:$0xf]
      %v552 = vld [vmem:[%s1 + $0x5e8] sm:$0xf]
      %v553 = vld [vmem:[%s1 + $0x5ec] sm:$0xf]
      %v554 = vld [vmem:[%s1 + $0x5f0] sm:$0xf]
      %v555 = vld [vmem:[%s1 + $0x5f4] sm:$0xf]
      %v556 = vld [vmem:[%s1 + $0x5f8] sm:$0xf]
      %v557 = vld [vmem:[%s1 + $0x5fc] sm:$0xf]
      %v558 = vld [vmem:[%s1 + $0x600] sm:$0xf]
      %v559 = vld [vmem:[%s1 + $0x604] sm:$0xf]
      %v560 = vld [vmem:[%s1 + $0x608] sm:$0xf]
      %v561 = vld [vmem:[%s1 + $0x60c] sm:$0xf]
      %v562 = vld [vmem:[%s1 + $0x610] sm:$0xf]
      %v563 = vld [vmem:[%s1 + $0x614] sm:$0xf]
      %v564 = vld [vmem:[%s1 + $0x618] sm:$0xf]
      %v565 = vld [vmem:[%s1 + $0x61c] sm:$0xf]
      %v566 = vld [vmem:[%s1 + $0x620] sm:$0xf]
      %v567 = vld [vmem:[%s1 + $0x624] sm:$0xf]
      %v568 = vld [vmem:[%s1 + $0x628] sm:$0xf]
      %v569 = vld [vmem:[%s1 + $0x62c] sm:$0xf]
      %v570 = vld [vmem:[%s1 + $0x630] sm:$0xf]
      %v571 = vld [vmem:[%s1 + $0x634] sm:$0xf]
      %v572 = vld [vmem:[%s1 + $0x638] sm:$0xf]
      %v573 = vld [vmem:[%s1 + $0x63c] sm:$0xf]
      %575 = vst [vmem:[#allocation1] ss:$4 sm:$0xff] %v167
      %s577 = scalar_lea.vmem [#allocation1], 32
      %578 = vst [vmem:[%s577] ss:$4 sm:$0xff] %v168
      %v579 = vld.sshfl [vmem:[#allocation1] sm:$0xff pattern:$0x73625140]
      %v580 = vld.sshfl [vmem:[#allocation1 + $0x8] sm:$0xff pattern:$0x73625140]
      %v581 = vld.sshfl [vmem:[#allocation1 + $0x10] sm:$0xff pattern:$0x73625140]
      %v582 = vld.sshfl [vmem:[#allocation1 + $0x18] sm:$0xff pattern:$0x73625140]
      %v583 = vld.sshfl [vmem:[#allocation1 + $0x20] sm:$0xff pattern:$0x73625140]
      %v584 = vld.sshfl [vmem:[#allocation1 + $0x28] sm:$0xff pattern:$0x73625140]
      %v585 = vld.sshfl [vmem:[#allocation1 + $0x30] sm:$0xff pattern:$0x73625140]
      %v586 = vld.sshfl [vmem:[#allocation1 + $0x38] sm:$0xff pattern:$0x73625140]
      %588 = vst [vmem:[#allocation1] ss:$4 sm:$0xff] %v169
      %590 = vst [vmem:[%s577] ss:$4 sm:$0xff] %v170
      %v591 = vld.sshfl [vmem:[#allocation1] sm:$0xff pattern:$0x73625140]
      %v592 = vld.sshfl [vmem:[#allocation1 + $0x8] sm:$0xff pattern:$0x73625140]
      %v593 = vld.sshfl [vmem:[#allocation1 + $0x10] sm:$0xff pattern:$0x73625140]
      %v594 = vld.sshfl [vmem:[#allocation1 + $0x18] sm:$0xff pattern:$0x73625140]
      %v595 = vld.sshfl [vmem:[#allocation1 + $0x20] sm:$0xff pattern:$0x73625140]
      %v596 = vld.sshfl [vmem:[#allocation1 + $0x28] sm:$0xff pattern:$0x73625140]
      %v597 = vld.sshfl [vmem:[#allocation1 + $0x30] sm:$0xff pattern:$0x73625140]
      %v598 = vld.sshfl [vmem:[#allocation1 + $0x38] sm:$0xff pattern:$0x73625140]
      %600 = vst [vmem:[#allocation1] ss:$4 sm:$0xff] %v171
      %602 = vst [vmem:[%s577] ss:$4 sm:$0xff] %v172
      %v603 = vld.sshfl [vmem:[#allocation1] sm:$0xff pattern:$0x73625140]
      %v604 = vld.sshfl [vmem:[#allocation1 + $0x8] sm:$0xff pattern:$0x73625140]
      %v605 = vld.sshfl [vmem:[#allocation1 + $0x10] sm:$0xff pattern:$0x73625140]
      %v606 = vld.sshfl [vmem:[#allocation1 + $0x18] sm:$0xff pattern:$0x73625140]
      %v607 = vld.sshfl [vmem:[#allocation1 + $0x20] sm:$0xff pattern:$0x73625140]
      %v608 = vld.sshfl [vmem:[#allocation1 + $0x28] sm:$0xff pattern:$0x73625140]
      %v609 = vld.sshfl [vmem:[#allocation1 + $0x30] sm:$0xff pattern:$0x73625140]
      %v610 = vld.sshfl [vmem:[#allocation1 + $0x38] sm:$0xff pattern:$0x73625140]
      %612 = vst [vmem:[#allocation1] ss:$4 sm:$0xff] %v173
      %v613 = vld.sshfl [vmem:[#allocation1] sm:$0xff pattern:$0x73625140]
      %v1039 = vunpack.c.l.b16 %v174
      %v1040 = vunpack.c.l.b16 %v175
      %v1041 = vunpack.c.l.b16 %v176
      %v1042 = vunpack.c.l.b16 %v177
      %v1043 = vunpack.c.l.b16 %v178
      %v1044 = vunpack.c.l.b16 %v179
      %v1045 = vunpack.c.l.b16 %v180
      %v1046 = vunpack.c.l.b16 %v181
      %v1047 = vunpack.c.l.b16 %v182
      %v1048 = vunpack.c.l.b16 %v183
      %v1049 = vunpack.c.l.b16 %v184
      %v1050 = vunpack.c.l.b16 %v185
      %v1051 = vunpack.c.l.b16 %v186
      %v1052 = vunpack.c.l.b16 %v187
      %v1053 = vunpack.c.l.b16 %v188
      %v1054 = vunpack.c.l.b16 %v189
      %v1055 = vunpack.c.l.b16 %v190
      %v1056 = vunpack.c.l.b16 %v191
      %v1057 = vunpack.c.l.b16 %v192
      %v1058 = vunpack.c.l.b16 %v193
      %v1059 = vunpack.c.l.b16 %v194
      %v1060 = vunpack.c.l.b16 %v195
      %v1061 = vunpack.c.l.b16 %v196
      %v1062 = vunpack.c.l.b16 %v197
      %v1063 = vunpack.c.l.b16 %v198
      %v1064 = vunpack.c.l.b16 %v199
      %v1065 = vunpack.c.l.b16 %v200
      %v1066 = vunpack.c.l.b16 %v201
      %v1067 = vunpack.c.l.b16 %v202
      %v1068 = vunpack.c.l.b16 %v203
      %v1069 = vunpack.c.l.b16 %v204
      %v1070 = vunpack.c.l.b16 %v205
      %v1071 = vunpack.c.l.b16 %v206
      %v1072 = vunpack.c.l.b16 %v207
      %v1073 = vunpack.c.l.b16 %v208
      %v1074 = vunpack.c.l.b16 %v209
      %v1075 = vunpack.c.l.b16 %v210
      %v1076 = vunpack.c.l.b16 %v211
      %v1077 = vunpack.c.l.b16 %v212
      %v1078 = vunpack.c.l.b16 %v213
      %v1079 = vunpack.c.l.b16 %v214
      %v1080 = vunpack.c.l.b16 %v215
      %v1081 = vunpack.c.l.b16 %v216
      %v1082 = vunpack.c.l.b16 %v217
      %v1083 = vunpack.c.l.b16 %v218
      %v1084 = vunpack.c.l.b16 %v219
      %v1085 = vunpack.c.l.b16 %v220
      %v1086 = vunpack.c.l.b16 %v221
      %v1087 = vunpack.c.l.b16 %v222
      %v1088 = vunpack.c.l.b16 %v223
      %v1089 = vunpack.c.l.b16 %v224
      %v1090 = vunpack.c.l.b16 %v225
      %v1091 = vunpack.c.l.b16 %v226
      %v1092 = vunpack.c.l.b16 %v227
      %v1093 = vunpack.c.l.b16 %v228
      %v1094 = vunpack.c.l.b16 %v229
      %v1095 = vunpack.c.l.b16 %v230
      %v1096 = vunpack.c.l.b16 %v231
      %v1097 = vunpack.c.l.b16 %v232
      %v1098 = vunpack.c.l.b16 %v233
      %v1099 = vunpack.c.l.b16 %v234
      %v1100 = vunpack.c.l.b16 %v235
      %v1101 = vunpack.c.l.b16 %v236
      %v1102 = vunpack.c.l.b16 %v237
      %v1103 = vunpack.c.l.b16 %v238
      %v1104 = vunpack.c.l.b16 %v239
      %v1105 = vunpack.c.l.b16 %v240
      %v1106 = vunpack.c.l.b16 %v241
      %v1107 = vunpack.c.l.b16 %v242
      %v1108 = vunpack.c.l.b16 %v243
      %v1109 = vunpack.c.l.b16 %v244
      %v1110 = vunpack.c.l.b16 %v245
      %v1111 = vunpack.c.l.b16 %v246
      %v1112 = vunpack.c.l.b16 %v247
      %v1113 = vunpack.c.l.b16 %v248
      %v1114 = vunpack.c.l.b16 %v249
      %v1115 = vunpack.c.l.b16 %v250
      %v1116 = vunpack.c.l.b16 %v251
      %v1117 = vunpack.c.l.b16 %v252
      %v1118 = vunpack.c.l.b16 %v253
      %v1119 = vunpack.c.l.b16 %v254
      %v1120 = vunpack.c.l.b16 %v255
      %v1121 = vunpack.c.l.b16 %v256
      %v1122 = vunpack.c.l.b16 %v257
      %v1123 = vunpack.c.l.b16 %v258
      %v1124 = vunpack.c.l.b16 %v259
      %v1125 = vunpack.c.l.b16 %v260
      %v1126 = vunpack.c.l.b16 %v261
      %v1127 = vunpack.c.l.b16 %v262
      %v1128 = vunpack.c.l.b16 %v263
      %v1129 = vunpack.c.l.b16 %v264
      %v1130 = vunpack.c.l.b16 %v265
      %v1131 = vunpack.c.l.b16 %v266
      %v1132 = vunpack.c.l.b16 %v267
      %v1133 = vunpack.c.l.b16 %v268
      %v1134 = vunpack.c.l.b16 %v269
      %v1135 = vunpack.c.l.b16 %v270
      %v1136 = vunpack.c.l.b16 %v271
      %v1137 = vunpack.c.l.b16 %v272
      %v1138 = vunpack.c.l.b16 %v273
      %v1139 = vunpack.c.l.b16 %v274
      %v1140 = vunpack.c.l.b16 %v275
      %v1141 = vunpack.c.l.b16 %v276
      %v1142 = vunpack.c.l.b16 %v277
      %v1143 = vunpack.c.l.b16 %v278
      %v1144 = vunpack.c.l.b16 %v279
      %v1145 = vunpack.c.l.b16 %v280
      %v1146 = vunpack.c.l.b16 %v281
      %v1147 = vunpack.c.l.b16 %v282
      %v1148 = vunpack.c.l.b16 %v283
      %v1149 = vunpack.c.l.b16 %v284
      %v1150 = vunpack.c.l.b16 %v285
      %v1151 = vunpack.c.l.b16 %v286
      %v1152 = vunpack.c.l.b16 %v287
      %v1153 = vunpack.c.l.b16 %v288
      %v1154 = vunpack.c.l.b16 %v289
      %v1155 = vunpack.c.l.b16 %v290
      %v1156 = vunpack.c.l.b16 %v291
      %v1157 = vunpack.c.l.b16 %v292
      %v1158 = vunpack.c.l.b16 %v293
      %v1159 = vunpack.c.l.b16 %v294
      %v1160 = vunpack.c.l.b16 %v295
      %v1161 = vunpack.c.l.b16 %v296
      %v1162 = vunpack.c.l.b16 %v297
      %v1163 = vunpack.c.l.b16 %v298
      %v1164 = vunpack.c.l.b16 %v299
      %v1165 = vunpack.c.l.b16 %v300
      %v1166 = vunpack.c.l.b16 %v301
      %v1167 = vunpack.c.l.b16 %v302
      %v1168 = vunpack.c.l.b16 %v303
      %v1169 = vunpack.c.l.b16 %v304
      %v1170 = vunpack.c.l.b16 %v305
      %v1171 = vunpack.c.l.b16 %v306
      %v1172 = vunpack.c.l.b16 %v307
      %v1173 = vunpack.c.l.b16 %v308
      %v1174 = vunpack.c.l.b16 %v309
      %v1175 = vunpack.c.l.b16 %v310
      %v1176 = vunpack.c.l.b16 %v311
      %v1177 = vunpack.c.l.b16 %v312
      %v1178 = vunpack.c.l.b16 %v313
      %v1179 = vunpack.c.l.b16 %v314
      %v1180 = vunpack.c.l.b16 %v315
      %v1181 = vunpack.c.l.b16 %v316
      %v1182 = vunpack.c.l.b16 %v317
      %v1183 = vunpack.c.l.b16 %v318
      %v1184 = vunpack.c.l.b16 %v319
      %v1185 = vunpack.c.l.b16 %v320
      %v1186 = vunpack.c.l.b16 %v321
      %v1187 = vunpack.c.l.b16 %v322
      %v1188 = vunpack.c.l.b16 %v323
      %v1189 = vunpack.c.l.b16 %v324
      %v1190 = vunpack.c.l.b16 %v325
      %v1191 = vunpack.c.l.b16 %v326
      %v1192 = vunpack.c.l.b16 %v327
      %v1193 = vunpack.c.l.b16 %v328
      %v1194 = vunpack.c.l.b16 %v329
      %v1195 = vunpack.c.l.b16 %v330
      %v1196 = vunpack.c.l.b16 %v331
      %v1197 = vunpack.c.l.b16 %v332
      %v1198 = vunpack.c.l.b16 %v333
      %v1199 = vunpack.c.l.b16 %v334
      %v1200 = vunpack.c.l.b16 %v335
      %v1201 = vunpack.c.l.b16 %v336
      %v1202 = vunpack.c.l.b16 %v337
      %v1203 = vunpack.c.l.b16 %v338
      %v1204 = vunpack.c.l.b16 %v339
      %v1205 = vunpack.c.l.b16 %v340
      %v1206 = vunpack.c.l.b16 %v341
      %v1207 = vunpack.c.l.b16 %v342
      %v1208 = vunpack.c.l.b16 %v343
      %v1209 = vunpack.c.l.b16 %v344
      %v1210 = vunpack.c.l.b16 %v345
      %v1211 = vunpack.c.l.b16 %v346
      %v1212 = vunpack.c.l.b16 %v347
      %v1213 = vunpack.c.l.b16 %v348
      %v1214 = vunpack.c.l.b16 %v349
      %v1215 = vunpack.c.l.b16 %v350
      %v1216 = vunpack.c.l.b16 %v351
      %v1217 = vunpack.c.l.b16 %v352
      %v1218 = vunpack.c.l.b16 %v353
      %v1219 = vunpack.c.l.b16 %v354
      %v1220 = vunpack.c.l.b16 %v355
      %v1221 = vunpack.c.l.b16 %v356
      %v1222 = vunpack.c.l.b16 %v357
      %v1223 = vunpack.c.l.b16 %v358
      %v1224 = vunpack.c.l.b16 %v359
      %v1225 = vunpack.c.l.b16 %v360
      %v1226 = vunpack.c.l.b16 %v361
      %v1227 = vunpack.c.l.b16 %v362
      %v1228 = vunpack.c.l.b16 %v363
      %v1229 = vunpack.c.l.b16 %v364
      %v1230 = vunpack.c.l.b16 %v365
      %v1231 = vunpack.c.l.b16 %v366
      %v1232 = vunpack.c.l.b16 %v367
      %v1233 = vunpack.c.l.b16 %v368
      %v1234 = vunpack.c.l.b16 %v369
      %v1235 = vunpack.c.l.b16 %v370
      %v1236 = vunpack.c.l.b16 %v371
      %v1237 = vunpack.c.l.b16 %v372
      %v1238 = vunpack.c.l.b16 %v373
      %v1239 = vunpack.c.l.b16 %v374
      %v1240 = vunpack.c.l.b16 %v375
      %v1241 = vunpack.c.l.b16 %v376
      %v1242 = vunpack.c.l.b16 %v377
      %v1243 = vunpack.c.l.b16 %v378
      %v1244 = vunpack.c.l.b16 %v379
      %v1245 = vunpack.c.l.b16 %v380
      %v1246 = vunpack.c.l.b16 %v381
      %v1247 = vunpack.c.l.b16 %v382
      %v1248 = vunpack.c.l.b16 %v383
      %v1249 = vunpack.c.l.b16 %v384
      %v1250 = vunpack.c.l.b16 %v385
      %v1251 = vunpack.c.l.b16 %v386
      %v1252 = vunpack.c.l.b16 %v387
      %v1253 = vunpack.c.l.b16 %v388
      %v1254 = vunpack.c.l.b16 %v389
      %v1255 = vunpack.c.l.b16 %v390
      %v1256 = vunpack.c.l.b16 %v391
      %v1257 = vunpack.c.l.b16 %v392
      %v1258 = vunpack.c.l.b16 %v393
      %v1259 = vunpack.c.l.b16 %v394
      %v1260 = vunpack.c.l.b16 %v395
      %v1261 = vunpack.c.l.b16 %v396
      %v1262 = vunpack.c.l.b16 %v397
      %v1263 = vunpack.c.l.b16 %v398
      %v1264 = vunpack.c.l.b16 %v399
      %v1265 = vunpack.c.l.b16 %v400
      %v1266 = vunpack.c.l.b16 %v401
      %v1267 = vunpack.c.l.b16 %v402
      %v1268 = vunpack.c.l.b16 %v403
      %v1269 = vunpack.c.l.b16 %v404
      %v1270 = vunpack.c.l.b16 %v405
      %v1271 = vunpack.c.l.b16 %v406
      %v1272 = vunpack.c.l.b16 %v407
      %v1273 = vunpack.c.l.b16 %v408
      %v1274 = vunpack.c.l.b16 %v409
      %v1275 = vunpack.c.l.b16 %v410
      %v1276 = vunpack.c.l.b16 %v411
      %v1277 = vunpack.c.l.b16 %v412
      %v1278 = vunpack.c.l.b16 %v413
      %v1279 = vunpack.c.l.b16 %v414
      %v1280 = vunpack.c.l.b16 %v415
      %v1281 = vunpack.c.l.b16 %v416
      %v1282 = vunpack.c.l.b16 %v417
      %v1283 = vunpack.c.l.b16 %v418
      %v1284 = vunpack.c.l.b16 %v419
      %v1285 = vunpack.c.l.b16 %v420
      %v1286 = vunpack.c.l.b16 %v421
      %v1287 = vunpack.c.l.b16 %v422
      %v1288 = vunpack.c.l.b16 %v423
      %v1289 = vunpack.c.l.b16 %v424
      %v1290 = vunpack.c.l.b16 %v425
      %v1291 = vunpack.c.l.b16 %v426
      %v1292 = vunpack.c.l.b16 %v427
      %v1293 = vunpack.c.l.b16 %v428
      %v1294 = vunpack.c.l.b16 %v429
      %v1295 = vunpack.c.l.b16 %v430
      %v1296 = vunpack.c.l.b16 %v431
      %v1297 = vunpack.c.l.b16 %v432
      %v1298 = vunpack.c.l.b16 %v433
      %v1299 = vunpack.c.l.b16 %v434
      %v1300 = vunpack.c.l.b16 %v435
      %v1301 = vunpack.c.l.b16 %v436
      %v1302 = vunpack.c.l.b16 %v437
      %v1303 = vunpack.c.l.b16 %v438
      %v1304 = vunpack.c.l.b16 %v439
      %v1305 = vunpack.c.l.b16 %v440
      %v1306 = vunpack.c.l.b16 %v441
      %v1307 = vunpack.c.l.b16 %v442
      %v1308 = vunpack.c.l.b16 %v443
      %v1309 = vunpack.c.l.b16 %v444
      %v1310 = vunpack.c.l.b16 %v445
      %v1311 = vunpack.c.l.b16 %v446
      %v1312 = vunpack.c.l.b16 %v447
      %v1313 = vunpack.c.l.b16 %v448
      %v1314 = vunpack.c.l.b16 %v449
      %v1315 = vunpack.c.l.b16 %v450
      %v1316 = vunpack.c.l.b16 %v451
      %v1317 = vunpack.c.l.b16 %v452
      %v1318 = vunpack.c.l.b16 %v453
      %v1319 = vunpack.c.l.b16 %v454
      %v1320 = vunpack.c.l.b16 %v455
      %v1321 = vunpack.c.l.b16 %v456
      %v1322 = vunpack.c.l.b16 %v457
      %v1323 = vunpack.c.l.b16 %v458
      %v1324 = vunpack.c.l.b16 %v459
      %v1325 = vunpack.c.l.b16 %v460
      %v1326 = vunpack.c.l.b16 %v461
      %v1327 = vunpack.c.l.b16 %v462
      %v1328 = vunpack.c.l.b16 %v463
      %v1329 = vunpack.c.l.b16 %v464
      %v1330 = vunpack.c.l.b16 %v465
      %v1331 = vunpack.c.l.b16 %v466
      %v1332 = vunpack.c.l.b16 %v467
      %v1333 = vunpack.c.l.b16 %v468
      %v1334 = vunpack.c.l.b16 %v469
      %v1335 = vunpack.c.l.b16 %v470
      %v1336 = vunpack.c.l.b16 %v471
      %v1337 = vunpack.c.l.b16 %v472
      %v1338 = vunpack.c.l.b16 %v473
      %v1339 = vunpack.c.l.b16 %v474
      %v1340 = vunpack.c.l.b16 %v475
      %v1341 = vunpack.c.l.b16 %v476
      %v1342 = vunpack.c.l.b16 %v477
      %v1343 = vunpack.c.l.b16 %v478
      %v1344 = vunpack.c.l.b16 %v479
      %v1345 = vunpack.c.l.b16 %v480
      %v1346 = vunpack.c.l.b16 %v481
      %v1347 = vunpack.c.l.b16 %v482
      %v1348 = vunpack.c.l.b16 %v483
      %v1349 = vunpack.c.l.b16 %v484
      %v1350 = vunpack.c.l.b16 %v485
      %v1351 = vunpack.c.l.b16 %v486
      %v1352 = vunpack.c.l.b16 %v487
      %v1353 = vunpack.c.l.b16 %v488
      %v1354 = vunpack.c.l.b16 %v489
      %v1355 = vunpack.c.l.b16 %v490
      %v1356 = vunpack.c.l.b16 %v491
      %v1357 = vunpack.c.l.b16 %v492
      %v1358 = vunpack.c.l.b16 %v493
      %v1359 = vunpack.c.l.b16 %v494
      %v1360 = vunpack.c.l.b16 %v495
      %v1361 = vunpack.c.l.b16 %v496
      %v1362 = vunpack.c.l.b16 %v497
      %v1363 = vunpack.c.l.b16 %v498
      %v1364 = vunpack.c.l.b16 %v499
      %v1365 = vunpack.c.l.b16 %v500
      %v1366 = vunpack.c.l.b16 %v501
      %v1367 = vunpack.c.l.b16 %v502
      %v1368 = vunpack.c.l.b16 %v503
      %v1369 = vunpack.c.l.b16 %v504
      %v1370 = vunpack.c.l.b16 %v505
      %v1371 = vunpack.c.l.b16 %v506
      %v1372 = vunpack.c.l.b16 %v507
      %v1373 = vunpack.c.l.b16 %v508
      %v1374 = vunpack.c.l.b16 %v509
      %v1375 = vunpack.c.l.b16 %v510
      %v1376 = vunpack.c.l.b16 %v511
      %v1377 = vunpack.c.l.b16 %v512
      %v1378 = vunpack.c.l.b16 %v513
      %v1379 = vunpack.c.l.b16 %v514
      %v1380 = vunpack.c.l.b16 %v515
      %v1381 = vunpack.c.l.b16 %v516
      %v1382 = vunpack.c.l.b16 %v517
      %v1383 = vunpack.c.l.b16 %v518
      %v1384 = vunpack.c.l.b16 %v519
      %v1385 = vunpack.c.l.b16 %v520
      %v1386 = vunpack.c.l.b16 %v521
      %v1387 = vunpack.c.l.b16 %v522
      %v1388 = vunpack.c.l.b16 %v523
      %v1389 = vunpack.c.l.b16 %v524
      %v1390 = vunpack.c.l.b16 %v525
      %v1391 = vunpack.c.l.b16 %v526
      %v1392 = vunpack.c.l.b16 %v527
      %v1393 = vunpack.c.l.b16 %v528
      %v1394 = vunpack.c.l.b16 %v529
      %v1395 = vunpack.c.l.b16 %v530
      %v1396 = vunpack.c.l.b16 %v531
      %v1397 = vunpack.c.l.b16 %v532
      %v1398 = vunpack.c.l.b16 %v533
      %v1399 = vunpack.c.l.b16 %v534
      %v1400 = vunpack.c.l.b16 %v535
      %v1401 = vunpack.c.l.b16 %v536
      %v1402 = vunpack.c.l.b16 %v537
      %v1403 = vunpack.c.l.b16 %v538
      %v1404 = vunpack.c.l.b16 %v539
      %v1405 = vunpack.c.l.b16 %v540
      %v1406 = vunpack.c.l.b16 %v541
      %v1407 = vunpack.c.l.b16 %v542
      %v1408 = vunpack.c.l.b16 %v543
      %v1409 = vunpack.c.l.b16 %v544
      %v1410 = vunpack.c.l.b16 %v545
      %v1411 = vunpack.c.l.b16 %v546
      %v1412 = vunpack.c.l.b16 %v547
      %v1413 = vunpack.c.l.b16 %v548
      %v1414 = vunpack.c.l.b16 %v549
      %v1415 = vunpack.c.l.b16 %v550
      %v1416 = vunpack.c.l.b16 %v551
      %v1417 = vunpack.c.l.b16 %v552
      %v1418 = vunpack.c.l.b16 %v553
      %v1419 = vunpack.c.l.b16 %v554
      %v1420 = vunpack.c.l.b16 %v555
      %v1421 = vunpack.c.l.b16 %v556
      %v1422 = vunpack.c.l.b16 %v557
      %v1423 = vunpack.c.l.b16 %v558
      %v1424 = vunpack.c.l.b16 %v559
      %v1425 = vunpack.c.l.b16 %v560
      %v1426 = vunpack.c.l.b16 %v561
      %v1427 = vunpack.c.l.b16 %v562
      %v1428 = vunpack.c.l.b16 %v563
      %v1429 = vunpack.c.l.b16 %v564
      %v1430 = vunpack.c.l.b16 %v565
      %v1431 = vunpack.c.l.b16 %v566
      %v1432 = vunpack.c.l.b16 %v567
      %v1433 = vunpack.c.l.b16 %v568
      %v1434 = vunpack.c.l.b16 %v569
      %v1435 = vunpack.c.l.b16 %v570
      %v1436 = vunpack.c.l.b16 %v571
      %v1437 = vunpack.c.l.b16 %v572
      %v1438 = vunpack.c.l.b16 %v573
      %v1439 = vpack.c.b16 %v1040, %v1039
      %v1440 = vpack.c.b16 %v1042, %v1041
      %v1441 = vpack.c.b16 %v1044, %v1043
      %v1442 = vpack.c.b16 %v1046, %v1045
      %v1443 = vpack.c.b16 %v1048, %v1047
      %v1444 = vpack.c.b16 %v1050, %v1049
      %v1445 = vpack.c.b16 %v1052, %v1051
      %v1446 = vpack.c.b16 %v1054, %v1053
      %v1447 = vpack.c.b16 %v1056, %v1055
      %v1448 = vpack.c.b16 %v1058, %v1057
      %v1449 = vpack.c.b16 %v1060, %v1059
      %v1450 = vpack.c.b16 %v1062, %v1061
      %v1451 = vpack.c.b16 %v1064, %v1063
      %v1452 = vpack.c.b16 %v1066, %v1065
      %v1453 = vpack.c.b16 %v1068, %v1067
      %v1454 = vpack.c.b16 %v1070, %v1069
      %v1455 = vpack.c.b16 %v1072, %v1071
      %v1456 = vpack.c.b16 %v1074, %v1073
      %v1457 = vpack.c.b16 %v1076, %v1075
      %v1458 = vpack.c.b16 %v1078, %v1077
      %v1459 = vpack.c.b16 %v1080, %v1079
      %v1460 = vpack.c.b16 %v1082, %v1081
      %v1461 = vpack.c.b16 %v1084, %v1083
      %v1462 = vpack.c.b16 %v1086, %v1085
      %v1463 = vpack.c.b16 %v1088, %v1087
      %v1464 = vpack.c.b16 %v1090, %v1089
      %v1465 = vpack.c.b16 %v1092, %v1091
      %v1466 = vpack.c.b16 %v1094, %v1093
      %v1467 = vpack.c.b16 %v1096, %v1095
      %v1468 = vpack.c.b16 %v1098, %v1097
      %v1469 = vpack.c.b16 %v1100, %v1099
      %v1470 = vpack.c.b16 %v1102, %v1101
      %v1471 = vpack.c.b16 %v1104, %v1103
      %v1472 = vpack.c.b16 %v1106, %v1105
      %v1473 = vpack.c.b16 %v1108, %v1107
      %v1474 = vpack.c.b16 %v1110, %v1109
      %v1475 = vpack.c.b16 %v1112, %v1111
      %v1476 = vpack.c.b16 %v1114, %v1113
      %v1477 = vpack.c.b16 %v1116, %v1115
      %v1478 = vpack.c.b16 %v1118, %v1117
      %v1479 = vpack.c.b16 %v1120, %v1119
      %v1480 = vpack.c.b16 %v1122, %v1121
      %v1481 = vpack.c.b16 %v1124, %v1123
      %v1482 = vpack.c.b16 %v1126, %v1125
      %v1483 = vpack.c.b16 %v1128, %v1127
      %v1484 = vpack.c.b16 %v1130, %v1129
      %v1485 = vpack.c.b16 %v1132, %v1131
      %v1486 = vpack.c.b16 %v1134, %v1133
      %v1487 = vpack.c.b16 %v1136, %v1135
      %v1488 = vpack.c.b16 %v1138, %v1137
      %v1489 = vpack.c.b16 %v1140, %v1139
      %v1490 = vpack.c.b16 %v1142, %v1141
      %v1491 = vpack.c.b16 %v1144, %v1143
      %v1492 = vpack.c.b16 %v1146, %v1145
      %v1493 = vpack.c.b16 %v1148, %v1147
      %v1494 = vpack.c.b16 %v1150, %v1149
      %v1495 = vpack.c.b16 %v1152, %v1151
      %v1496 = vpack.c.b16 %v1154, %v1153
      %v1497 = vpack.c.b16 %v1156, %v1155
      %v1498 = vpack.c.b16 %v1158, %v1157
      %v1499 = vpack.c.b16 %v1160, %v1159
      %v1500 = vpack.c.b16 %v1162, %v1161
      %v1501 = vpack.c.b16 %v1164, %v1163
      %v1502 = vpack.c.b16 %v1166, %v1165
      %v1503 = vpack.c.b16 %v1168, %v1167
      %v1504 = vpack.c.b16 %v1170, %v1169
      %v1505 = vpack.c.b16 %v1172, %v1171
      %v1506 = vpack.c.b16 %v1174, %v1173
      %v1507 = vpack.c.b16 %v1176, %v1175
      %v1508 = vpack.c.b16 %v1178, %v1177
      %v1509 = vpack.c.b16 %v1180, %v1179
      %v1510 = vpack.c.b16 %v1182, %v1181
      %v1511 = vpack.c.b16 %v1184, %v1183
      %v1512 = vpack.c.b16 %v1186, %v1185
      %v1513 = vpack.c.b16 %v1188, %v1187
      %v1514 = vpack.c.b16 %v1190, %v1189
      %v1515 = vpack.c.b16 %v1192, %v1191
      %v1516 = vpack.c.b16 %v1194, %v1193
      %v1517 = vpack.c.b16 %v1196, %v1195
      %v1518 = vpack.c.b16 %v1198, %v1197
      %v1519 = vpack.c.b16 %v1200, %v1199
      %v1520 = vpack.c.b16 %v1202, %v1201
      %v1521 = vpack.c.b16 %v1204, %v1203
      %v1522 = vpack.c.b16 %v1206, %v1205
      %v1523 = vpack.c.b16 %v1208, %v1207
      %v1524 = vpack.c.b16 %v1210, %v1209
      %v1525 = vpack.c.b16 %v1212, %v1211
      %v1526 = vpack.c.b16 %v1214, %v1213
      %v1527 = vpack.c.b16 %v1216, %v1215
      %v1528 = vpack.c.b16 %v1218, %v1217
      %v1529 = vpack.c.b16 %v1220, %v1219
      %v1530 = vpack.c.b16 %v1222, %v1221
      %v1531 = vpack.c.b16 %v1224, %v1223
      %v1532 = vpack.c.b16 %v1226, %v1225
      %v1533 = vpack.c.b16 %v1228, %v1227
      %v1534 = vpack.c.b16 %v1230, %v1229
      %v1535 = vpack.c.b16 %v1232, %v1231
      %v1536 = vpack.c.b16 %v1234, %v1233
      %v1537 = vpack.c.b16 %v1236, %v1235
      %v1538 = vpack.c.b16 %v1238, %v1237
      %v1539 = vpack.c.b16 %v1240, %v1239
      %v1540 = vpack.c.b16 %v1242, %v1241
      %v1541 = vpack.c.b16 %v1244, %v1243
      %v1542 = vpack.c.b16 %v1246, %v1245
      %v1543 = vpack.c.b16 %v1248, %v1247
      %v1544 = vpack.c.b16 %v1250, %v1249
      %v1545 = vpack.c.b16 %v1252, %v1251
      %v1546 = vpack.c.b16 %v1254, %v1253
      %v1547 = vpack.c.b16 %v1256, %v1255
      %v1548 = vpack.c.b16 %v1258, %v1257
      %v1549 = vpack.c.b16 %v1260, %v1259
      %v1550 = vpack.c.b16 %v1262, %v1261
      %v1551 = vpack.c.b16 %v1264, %v1263
      %v1552 = vpack.c.b16 %v1266, %v1265
      %v1553 = vpack.c.b16 %v1268, %v1267
      %v1554 = vpack.c.b16 %v1270, %v1269
      %v1555 = vpack.c.b16 %v1272, %v1271
      %v1556 = vpack.c.b16 %v1274, %v1273
      %v1557 = vpack.c.b16 %v1276, %v1275
      %v1558 = vpack.c.b16 %v1278, %v1277
      %v1559 = vpack.c.b16 %v1280, %v1279
      %v1560 = vpack.c.b16 %v1282, %v1281
      %v1561 = vpack.c.b16 %v1284, %v1283
      %v1562 = vpack.c.b16 %v1286, %v1285
      %v1563 = vpack.c.b16 %v1288, %v1287
      %v1564 = vpack.c.b16 %v1290, %v1289
      %v1565 = vpack.c.b16 %v1292, %v1291
      %v1566 = vpack.c.b16 %v1294, %v1293
      %v1567 = vpack.c.b16 %v1296, %v1295
      %v1568 = vpack.c.b16 %v1298, %v1297
      %v1569 = vpack.c.b16 %v1300, %v1299
      %v1570 = vpack.c.b16 %v1302, %v1301
      %v1571 = vpack.c.b16 %v1304, %v1303
      %v1572 = vpack.c.b16 %v1306, %v1305
      %v1573 = vpack.c.b16 %v1308, %v1307
      %v1574 = vpack.c.b16 %v1310, %v1309
      %v1575 = vpack.c.b16 %v1312, %v1311
      %v1576 = vpack.c.b16 %v1314, %v1313
      %v1577 = vpack.c.b16 %v1316, %v1315
      %v1578 = vpack.c.b16 %v1318, %v1317
      %v1579 = vpack.c.b16 %v1320, %v1319
      %v1580 = vpack.c.b16 %v1322, %v1321
      %v1581 = vpack.c.b16 %v1324, %v1323
      %v1582 = vpack.c.b16 %v1326, %v1325
      %v1583 = vpack.c.b16 %v1328, %v1327
      %v1584 = vpack.c.b16 %v1330, %v1329
      %v1585 = vpack.c.b16 %v1332, %v1331
      %v1586 = vpack.c.b16 %v1334, %v1333
      %v1587 = vpack.c.b16 %v1336, %v1335
      %v1588 = vpack.c.b16 %v1338, %v1337
      %v1589 = vpack.c.b16 %v1340, %v1339
      %v1590 = vpack.c.b16 %v1342, %v1341
      %v1591 = vpack.c.b16 %v1344, %v1343
      %v1592 = vpack.c.b16 %v1346, %v1345
      %v1593 = vpack.c.b16 %v1348, %v1347
      %v1594 = vpack.c.b16 %v1350, %v1349
      %v1595 = vpack.c.b16 %v1352, %v1351
      %v1596 = vpack.c.b16 %v1354, %v1353
      %v1597 = vpack.c.b16 %v1356, %v1355
      %v1598 = vpack.c.b16 %v1358, %v1357
      %v1599 = vpack.c.b16 %v1360, %v1359
      %v1600 = vpack.c.b16 %v1362, %v1361
      %v1601 = vpack.c.b16 %v1364, %v1363
      %v1602 = vpack.c.b16 %v1366, %v1365
      %v1603 = vpack.c.b16 %v1368, %v1367
      %v1604 = vpack.c.b16 %v1370, %v1369
      %v1605 = vpack.c.b16 %v1372, %v1371
      %v1606 = vpack.c.b16 %v1374, %v1373
      %v1607 = vpack.c.b16 %v1376, %v1375
      %v1608 = vpack.c.b16 %v1378, %v1377
      %v1609 = vpack.c.b16 %v1380, %v1379
      %v1610 = vpack.c.b16 %v1382, %v1381
      %v1611 = vpack.c.b16 %v1384, %v1383
      %v1612 = vpack.c.b16 %v1386, %v1385
      %v1613 = vpack.c.b16 %v1388, %v1387
      %v1614 = vpack.c.b16 %v1390, %v1389
      %v1615 = vpack.c.b16 %v1392, %v1391
      %v1616 = vpack.c.b16 %v1394, %v1393
      %v1617 = vpack.c.b16 %v1396, %v1395
      %v1618 = vpack.c.b16 %v1398, %v1397
      %v1619 = vpack.c.b16 %v1400, %v1399
      %v1620 = vpack.c.b16 %v1402, %v1401
      %v1621 = vpack.c.b16 %v1404, %v1403
      %v1622 = vpack.c.b16 %v1406, %v1405
      %v1623 = vpack.c.b16 %v1408, %v1407
      %v1624 = vpack.c.b16 %v1410, %v1409
      %v1625 = vpack.c.b16 %v1412, %v1411
      %v1626 = vpack.c.b16 %v1414, %v1413
      %v1627 = vpack.c.b16 %v1416, %v1415
      %v1628 = vpack.c.b16 %v1418, %v1417
      %v1629 = vpack.c.b16 %v1420, %v1419
      %v1630 = vpack.c.b16 %v1422, %v1421
      %v1631 = vpack.c.b16 %v1424, %v1423
      %v1632 = vpack.c.b16 %v1426, %v1425
      %v1633 = vpack.c.b16 %v1428, %v1427
      %v1634 = vpack.c.b16 %v1430, %v1429
      %v1635 = vpack.c.b16 %v1432, %v1431
      %v1636 = vpack.c.b16 %v1434, %v1433
      %v1637 = vpack.c.b16 %v1436, %v1435
      %v1638 = vpack.c.b16 %v1438, %v1437
      %1839 = vmatpush.bf16.msra.mxu0 %v1446
      %1840 = vmatpush.bf16.msra.mxu0 %v1445
      %1841 = vmatpush.bf16.msra.mxu0 %v1444
      %1842 = vmatpush.bf16.msra.mxu0 %v1443
      %1843 = vmatpush.bf16.msra.mxu0 %v1442
      %1844 = vmatpush.bf16.msra.mxu0 %v1441
      %1845 = vmatpush.bf16.msra.mxu0 %v1440
      %1846 = vmatpush.bf16.msra.mxu0 %v1439
      %1847 = vmatmul.bf16.gmra.mxu0 %v579
      %v1848 = vpop.f32.mrf.mxu0
      %v1849 = vadd.f32 0.0, %v1848
      %v1850 = vpop.f32.mrf.mxu0
      %1851 = vdwg.mxu0
      %1852 = vmatpush.bf16.msra.mxu0 %v1454
      %1853 = vmatpush.bf16.msra.mxu0 %v1453
      %1854 = vmatpush.bf16.msra.mxu0 %v1452
      %1855 = vmatpush.bf16.msra.mxu0 %v1451
      %1856 = vmatpush.bf16.msra.mxu0 %v1450
      %1857 = vmatpush.bf16.msra.mxu0 %v1449
      %1858 = vmatpush.bf16.msra.mxu0 %v1448
      %1859 = vmatpush.bf16.msra.mxu0 %v1447
      %1860 = vmatmul.bf16.gmra.mxu0 %v580
      %v1861 = vpop.f32.mrf.mxu0
      %v1862 = vadd.f32 %v1849, %v1861
      %v1863 = vpop.f32.mrf.mxu0
      %1864 = vdwg.mxu0
      %1865 = vmatpush.bf16.msra.mxu0 %v1462
      %1866 = vmatpush.bf16.msra.mxu0 %v1461
      %1867 = vmatpush.bf16.msra.mxu0 %v1460
      %1868 = vmatpush.bf16.msra.mxu0 %v1459
      %1869 = vmatpush.bf16.msra.mxu0 %v1458
      %1870 = vmatpush.bf16.msra.mxu0 %v1457
      %1871 = vmatpush.bf16.msra.mxu0 %v1456
      %1872 = vmatpush.bf16.msra.mxu0 %v1455
      %1873 = vmatmul.bf16.gmra.mxu0 %v581
      %v1874 = vpop.f32.mrf.mxu0
      %v1875 = vadd.f32 %v1862, %v1874
      %v1876 = vpop.f32.mrf.mxu0
      %1877 = vdwg.mxu0
      %1878 = vmatpush.bf16.msra.mxu0 %v1470
      %1879 = vmatpush.bf16.msra.mxu0 %v1469
      %1880 = vmatpush.bf16.msra.mxu0 %v1468
      %1881 = vmatpush.bf16.msra.mxu0 %v1467
      %1882 = vmatpush.bf16.msra.mxu0 %v1466
      %1883 = vmatpush.bf16.msra.mxu0 %v1465
      %1884 = vmatpush.bf16.msra.mxu0 %v1464
      %1885 = vmatpush.bf16.msra.mxu0 %v1463
      %1886 = vmatmul.bf16.gmra.mxu0 %v582
      %v1887 = vpop.f32.mrf.mxu0
      %v1888 = vadd.f32 %v1875, %v1887
      %v1889 = vpop.f32.mrf.mxu0
      %1890 = vdwg.mxu0
      %1891 = vmatpush.bf16.msra.mxu0 %v1478
      %1892 = vmatpush.bf16.msra.mxu0 %v1477
      %1893 = vmatpush.bf16.msra.mxu0 %v1476
      %1894 = vmatpush.bf16.msra.mxu0 %v1475
      %1895 = vmatpush.bf16.msra.mxu0 %v1474
      %1896 = vmatpush.bf16.msra.mxu0 %v1473
      %1897 = vmatpush.bf16.msra.mxu0 %v1472
      %1898 = vmatpush.bf16.msra.mxu0 %v1471
      %1899 = vmatmul.bf16.gmra.mxu0 %v583
      %v1900 = vpop.f32.mrf.mxu0
      %v1901 = vadd.f32 %v1888, %v1900
      %v1902 = vpop.f32.mrf.mxu0
      %1903 = vdwg.mxu0
      %1904 = vmatpush.bf16.msra.mxu0 %v1486
      %1905 = vmatpush.bf16.msra.mxu0 %v1485
      %1906 = vmatpush.bf16.msra.mxu0 %v1484
      %1907 = vmatpush.bf16.msra.mxu0 %v1483
      %1908 = vmatpush.bf16.msra.mxu0 %v1482
      %1909 = vmatpush.bf16.msra.mxu0 %v1481
      %1910 = vmatpush.bf16.msra.mxu0 %v1480
      %1911 = vmatpush.bf16.msra.mxu0 %v1479
      %1912 = vmatmul.bf16.gmra.mxu0 %v584
      %v1913 = vpop.f32.mrf.mxu0
      %v1914 = vadd.f32 %v1901, %v1913
      %v1915 = vpop.f32.mrf.mxu0
      %1916 = vdwg.mxu0
      %1917 = vmatpush.bf16.msra.mxu0 %v1494
      %1918 = vmatpush.bf16.msra.mxu0 %v1493
      %1919 = vmatpush.bf16.msra.mxu0 %v1492
      %1920 = vmatpush.bf16.msra.mxu0 %v1491
      %1921 = vmatpush.bf16.msra.mxu0 %v1490
      %1922 = vmatpush.bf16.msra.mxu0 %v1489
      %1923 = vmatpush.bf16.msra.mxu0 %v1488
      %1924 = vmatpush.bf16.msra.mxu0 %v1487
      %1925 = vmatmul.bf16.gmra.mxu0 %v585
      %v1926 = vpop.f32.mrf.mxu0
      %v1927 = vadd.f32 %v1914, %v1926
      %v1928 = vpop.f32.mrf.mxu0
      %1929 = vdwg.mxu0
      %1930 = vmatpush.bf16.msra.mxu0 %v1502
      %1931 = vmatpush.bf16.msra.mxu0 %v1501
      %1932 = vmatpush.bf16.msra.mxu0 %v1500
      %1933 = vmatpush.bf16.msra.mxu0 %v1499
      %1934 = vmatpush.bf16.msra.mxu0 %v1498
      %1935 = vmatpush.bf16.msra.mxu0 %v1497
      %1936 = vmatpush.bf16.msra.mxu0 %v1496
      %1937 = vmatpush.bf16.msra.mxu0 %v1495
      %1938 = vmatmul.bf16.gmra.mxu0 %v586
      %v1939 = vpop.f32.mrf.mxu0
      %v1940 = vadd.f32 %v1927, %v1939
      %v1941 = vpop.f32.mrf.mxu0
      %1942 = vdwg.mxu0
      %1943 = vmatpush.bf16.msra.mxu0 %v1510
      %1944 = vmatpush.bf16.msra.mxu0 %v1509
      %1945 = vmatpush.bf16.msra.mxu0 %v1508
      %1946 = vmatpush.bf16.msra.mxu0 %v1507
      %1947 = vmatpush.bf16.msra.mxu0 %v1506
      %1948 = vmatpush.bf16.msra.mxu0 %v1505
      %1949 = vmatpush.bf16.msra.mxu0 %v1504
      %1950 = vmatpush.bf16.msra.mxu0 %v1503
      %1951 = vmatmul.bf16.gmra.mxu0 %v591
      %v1952 = vpop.f32.mrf.mxu0
      %v1953 = vadd.f32 %v1940, %v1952
      %v1954 = vpop.f32.mrf.mxu0
      %1955 = vdwg.mxu0
      %1956 = vmatpush.bf16.msra.mxu0 %v1518
      %1957 = vmatpush.bf16.msra.mxu0 %v1517
      %1958 = vmatpush.bf16.msra.mxu0 %v1516
      %1959 = vmatpush.bf16.msra.mxu0 %v1515
      %1960 = vmatpush.bf16.msra.mxu0 %v1514
      %1961 = vmatpush.bf16.msra.mxu0 %v1513
      %1962 = vmatpush.bf16.msra.mxu0 %v1512
      %1963 = vmatpush.bf16.msra.mxu0 %v1511
      %1964 = vmatmul.bf16.gmra.mxu0 %v592
      %v1965 = vpop.f32.mrf.mxu0
      %v1966 = vadd.f32 %v1953, %v1965
      %v1967 = vpop.f32.mrf.mxu0
      %1968 = vdwg.mxu0
      %1969 = vmatpush.bf16.msra.mxu0 %v1526
      %1970 = vmatpush.bf16.msra.mxu0 %v1525
      %1971 = vmatpush.bf16.msra.mxu0 %v1524
      %1972 = vmatpush.bf16.msra.mxu0 %v1523
      %1973 = vmatpush.bf16.msra.mxu0 %v1522
      %1974 = vmatpush.bf16.msra.mxu0 %v1521
      %1975 = vmatpush.bf16.msra.mxu0 %v1520
      %1976 = vmatpush.bf16.msra.mxu0 %v1519
      %1977 = vmatmul.bf16.gmra.mxu0 %v593
      %v1978 = vpop.f32.mrf.mxu0
      %v1979 = vadd.f32 %v1966, %v1978
      %v1980 = vpop.f32.mrf.mxu0
      %1981 = vdwg.mxu0
      %1982 = vmatpush.bf16.msra.mxu0 %v1534
      %1983 = vmatpush.bf16.msra.mxu0 %v1533
      %1984 = vmatpush.bf16.msra.mxu0 %v1532
      %1985 = vmatpush.bf16.msra.mxu0 %v1531
      %1986 = vmatpush.bf16.msra.mxu0 %v1530
      %1987 = vmatpush.bf16.msra.mxu0 %v1529
      %1988 = vmatpush.bf16.msra.mxu0 %v1528
      %1989 = vmatpush.bf16.msra.mxu0 %v1527
      %1990 = vmatmul.bf16.gmra.mxu0 %v594
      %v1991 = vpop.f32.mrf.mxu0
      %v1992 = vadd.f32 %v1979, %v1991
      %v1993 = vpop.f32.mrf.mxu0
      %1994 = vdwg.mxu0
      %1995 = vmatpush.bf16.msra.mxu0 %v1542
      %1996 = vmatpush.bf16.msra.mxu0 %v1541
      %1997 = vmatpush.bf16.msra.mxu0 %v1540
      %1998 = vmatpush.bf16.msra.mxu0 %v1539
      %1999 = vmatpush.bf16.msra.mxu0 %v1538
      %2000 = vmatpush.bf16.msra.mxu0 %v1537
      %2001 = vmatpush.bf16.msra.mxu0 %v1536
      %2002 = vmatpush.bf16.msra.mxu0 %v1535
      %2003 = vmatmul.bf16.gmra.mxu0 %v595
      %v2004 = vpop.f32.mrf.mxu0
      %v2005 = vadd.f32 %v1992, %v2004
      %v2006 = vpop.f32.mrf.mxu0
      %2007 = vdwg.mxu0
      %2008 = vmatpush.bf16.msra.mxu0 %v1550
      %2009 = vmatpush.bf16.msra.mxu0 %v1549
      %2010 = vmatpush.bf16.msra.mxu0 %v1548
      %2011 = vmatpush.bf16.msra.mxu0 %v1547
      %2012 = vmatpush.bf16.msra.mxu0 %v1546
      %2013 = vmatpush.bf16.msra.mxu0 %v1545
      %2014 = vmatpush.bf16.msra.mxu0 %v1544
      %2015 = vmatpush.bf16.msra.mxu0 %v1543
      %2016 = vmatmul.bf16.gmra.mxu0 %v596
      %v2017 = vpop.f32.mrf.mxu0
      %v2018 = vadd.f32 %v2005, %v2017
      %v2019 = vpop.f32.mrf.mxu0
      %2020 = vdwg.mxu0
      %2021 = vmatpush.bf16.msra.mxu0 %v1558
      %2022 = vmatpush.bf16.msra.mxu0 %v1557
      %2023 = vmatpush.bf16.msra.mxu0 %v1556
      %2024 = vmatpush.bf16.msra.mxu0 %v1555
      %2025 = vmatpush.bf16.msra.mxu0 %v1554
      %2026 = vmatpush.bf16.msra.mxu0 %v1553
      %2027 = vmatpush.bf16.msra.mxu0 %v1552
      %2028 = vmatpush.bf16.msra.mxu0 %v1551
      %2029 = vmatmul.bf16.gmra.mxu0 %v597
      %v2030 = vpop.f32.mrf.mxu0
      %v2031 = vadd.f32 %v2018, %v2030
      %v2032 = vpop.f32.mrf.mxu0
      %2033 = vdwg.mxu0
      %2034 = vmatpush.bf16.msra.mxu0 %v1566
      %2035 = vmatpush.bf16.msra.mxu0 %v1565
      %2036 = vmatpush.bf16.msra.mxu0 %v1564
      %2037 = vmatpush.bf16.msra.mxu0 %v1563
      %2038 = vmatpush.bf16.msra.mxu0 %v1562
      %2039 = vmatpush.bf16.msra.mxu0 %v1561
      %2040 = vmatpush.bf16.msra.mxu0 %v1560
      %2041 = vmatpush.bf16.msra.mxu0 %v1559
      %2042 = vmatmul.bf16.gmra.mxu0 %v598
      %v2043 = vpop.f32.mrf.mxu0
      %v2044 = vadd.f32 %v2031, %v2043
      %v2045 = vpop.f32.mrf.mxu0
      %2046 = vdwg.mxu0
      %2047 = vmatpush.bf16.msra.mxu0 %v1574
      %2048 = vmatpush.bf16.msra.mxu0 %v1573
      %2049 = vmatpush.bf16.msra.mxu0 %v1572
      %2050 = vmatpush.bf16.msra.mxu0 %v1571
      %2051 = vmatpush.bf16.msra.mxu0 %v1570
      %2052 = vmatpush.bf16.msra.mxu0 %v1569
      %2053 = vmatpush.bf16.msra.mxu0 %v1568
      %2054 = vmatpush.bf16.msra.mxu0 %v1567
      %2055 = vmatmul.bf16.gmra.mxu0 %v603
      %v2056 = vpop.f32.mrf.mxu0
      %v2057 = vadd.f32 %v2044, %v2056
      %v2058 = vpop.f32.mrf.mxu0
      %2059 = vdwg.mxu0
      %2060 = vmatpush.bf16.msra.mxu0 %v1582
      %2061 = vmatpush.bf16.msra.mxu0 %v1581
      %2062 = vmatpush.bf16.msra.mxu0 %v1580
      %2063 = vmatpush.bf16.msra.mxu0 %v1579
      %2064 = vmatpush.bf16.msra.mxu0 %v1578
      %2065 = vmatpush.bf16.msra.mxu0 %v1577
      %2066 = vmatpush.bf16.msra.mxu0 %v1576
      %2067 = vmatpush.bf16.msra.mxu0 %v1575
      %2068 = vmatmul.bf16.gmra.mxu0 %v604
      %v2069 = vpop.f32.mrf.mxu0
      %v2070 = vadd.f32 %v2057, %v2069
      %v2071 = vpop.f32.mrf.mxu0
      %2072 = vdwg.mxu0
      %2073 = vmatpush.bf16.msra.mxu0 %v1590
      %2074 = vmatpush.bf16.msra.mxu0 %v1589
      %2075 = vmatpush.bf16.msra.mxu0 %v1588
      %2076 = vmatpush.bf16.msra.mxu0 %v1587
      %2077 = vmatpush.bf16.msra.mxu0 %v1586
      %2078 = vmatpush.bf16.msra.mxu0 %v1585
      %2079 = vmatpush.bf16.msra.mxu0 %v1584
      %2080 = vmatpush.bf16.msra.mxu0 %v1583
      %2081 = vmatmul.bf16.gmra.mxu0 %v605
      %v2082 = vpop.f32.mrf.mxu0
      %v2083 = vadd.f32 %v2070, %v2082
      %v2084 = vpop.f32.mrf.mxu0
      %2085 = vdwg.mxu0
      %2086 = vmatpush.bf16.msra.mxu0 %v1598
      %2087 = vmatpush.bf16.msra.mxu0 %v1597
      %2088 = vmatpush.bf16.msra.mxu0 %v1596
      %2089 = vmatpush.bf16.msra.mxu0 %v1595
      %2090 = vmatpush.bf16.msra.mxu0 %v1594
      %2091 = vmatpush.bf16.msra.mxu0 %v1593
      %2092 = vmatpush.bf16.msra.mxu0 %v1592
      %2093 = vmatpush.bf16.msra.mxu0 %v1591
      %2094 = vmatmul.bf16.gmra.mxu0 %v606
      %v2095 = vpop.f32.mrf.mxu0
      %v2096 = vadd.f32 %v2083, %v2095
      %v2097 = vpop.f32.mrf.mxu0
      %2098 = vdwg.mxu0
      %2099 = vmatpush.bf16.msra.mxu0 %v1606
      %2100 = vmatpush.bf16.msra.mxu0 %v1605
      %2101 = vmatpush.bf16.msra.mxu0 %v1604
      %2102 = vmatpush.bf16.msra.mxu0 %v1603
      %2103 = vmatpush.bf16.msra.mxu0 %v1602
      %2104 = vmatpush.bf16.msra.mxu0 %v1601
      %2105 = vmatpush.bf16.msra.mxu0 %v1600
      %2106 = vmatpush.bf16.msra.mxu0 %v1599
      %2107 = vmatmul.bf16.gmra.mxu0 %v607
      %v2108 = vpop.f32.mrf.mxu0
      %v2109 = vadd.f32 %v2096, %v2108
      %v2110 = vpop.f32.mrf.mxu0
      %2111 = vdwg.mxu0
      %2112 = vmatpush.bf16.msra.mxu0 %v1614
      %2113 = vmatpush.bf16.msra.mxu0 %v1613
      %2114 = vmatpush.bf16.msra.mxu0 %v1612
      %2115 = vmatpush.bf16.msra.mxu0 %v1611
      %2116 = vmatpush.bf16.msra.mxu0 %v1610
      %2117 = vmatpush.bf16.msra.mxu0 %v1609
      %2118 = vmatpush.bf16.msra.mxu0 %v1608
      %2119 = vmatpush.bf16.msra.mxu0 %v1607
      %2120 = vmatmul.bf16.gmra.mxu0 %v608
      %v2121 = vpop.f32.mrf.mxu0
      %v2122 = vadd.f32 %v2109, %v2121
      %v2123 = vpop.f32.mrf.mxu0
      %2124 = vdwg.mxu0
      %2125 = vmatpush.bf16.msra.mxu0 %v1622
      %2126 = vmatpush.bf16.msra.mxu0 %v1621
      %2127 = vmatpush.bf16.msra.mxu0 %v1620
      %2128 = vmatpush.bf16.msra.mxu0 %v1619
      %2129 = vmatpush.bf16.msra.mxu0 %v1618
      %2130 = vmatpush.bf16.msra.mxu0 %v1617
      %2131 = vmatpush.bf16.msra.mxu0 %v1616
      %2132 = vmatpush.bf16.msra.mxu0 %v1615
      %2133 = vmatmul.bf16.gmra.mxu0 %v609
      %v2134 = vpop.f32.mrf.mxu0
      %v2135 = vadd.f32 %v2122, %v2134
      %v2136 = vpop.f32.mrf.mxu0
      %2137 = vdwg.mxu0
      %2138 = vmatpush.bf16.msra.mxu0 %v1630
      %2139 = vmatpush.bf16.msra.mxu0 %v1629
      %2140 = vmatpush.bf16.msra.mxu0 %v1628
      %2141 = vmatpush.bf16.msra.mxu0 %v1627
      %2142 = vmatpush.bf16.msra.mxu0 %v1626
      %2143 = vmatpush.bf16.msra.mxu0 %v1625
      %2144 = vmatpush.bf16.msra.mxu0 %v1624
      %2145 = vmatpush.bf16.msra.mxu0 %v1623
      %2146 = vmatmul.bf16.gmra.mxu0 %v610
      %v2147 = vpop.f32.mrf.mxu0
      %v2148 = vadd.f32 %v2135, %v2147
      %v2149 = vpop.f32.mrf.mxu0
      %2150 = vdwg.mxu0
      %2151 = vmatpush.bf16.msra.mxu0 %v1638
      %2152 = vmatpush.bf16.msra.mxu0 %v1637
      %2153 = vmatpush.bf16.msra.mxu0 %v1636
      %2154 = vmatpush.bf16.msra.mxu0 %v1635
      %2155 = vmatpush.bf16.msra.mxu0 %v1634
      %2156 = vmatpush.bf16.msra.mxu0 %v1633
      %2157 = vmatpush.bf16.msra.mxu0 %v1632
      %2158 = vmatpush.bf16.msra.mxu0 %v1631
      %2159 = vmatmul.bf16.gmra.mxu0 %v613
      %v2160 = vpop.f32.mrf.mxu0
      %v2161 = vadd.f32 %v2148, %v2160
      %v2162 = vpop.f32.mrf.mxu0
      %2163 = vdwg.mxu0
      %v2164 = vld [vmem:[%s2] sm:$0x1]
      %v2165 = vld [vmem:[%s2 + $0x1] sm:$0x1]
      %v2166 = vld [vmem:[%s2 + $0x2] sm:$0x1]
      %vm2167 = vcmask 1043456
      %v2168 = vsel %vm2167, %v2161, 0.0
      %v2169 = vrot.slane %v2168, 4
      %v2170 = vadd.f32 %v2168, %v2169
      %v2171 = vrot.slane %v2170, 2
      %v2172 = vadd.f32 %v2170, %v2171
      %v2173 = vrot.slane %v2172, 1
      %v2174 = vadd.f32 %v2172, %v2173
      %v2175 = vmul.f32 %v2161, %v2161
      %v2176 = vsel %vm2167, %v2175, 0.0
      %v2177 = vrot.slane %v2176, 4
      %v2178 = vadd.f32 %v2176, %v2177
      %v2179 = vrot.slane %v2178, 2
      %v2180 = vadd.f32 %v2178, %v2179
      %v2181 = vrot.slane %v2180, 1
      %v2182 = vadd.f32 %v2180, %v2181
      %v2183 = vmul.f32 %v2164, 4.0
      %v2184 = vadd.f32 %v2174, %v2183
      %v2185 = vmul.f32 %v2164, 2.0
      %v2186 = vmul.f32 %v2185, %v2174
      %v2187 = vadd.f32 %v2182, %v2186
      %v2188 = vmul.f32 %v2183, %v2164
      %v2189 = vadd.f32 %v2187, %v2188
      %v2190 = vlaneseq
      %v2191 = vand.u32 %v2190, 127
      %vm2192 = vcmp.ge.s32.totalorder %v2191, 0
      %vm2193 = vcmp.lt.s32.totalorder %v2191, 16
      %vm2194 = vmand %vm2192, %vm2193
      %v2195 = vsel %vm2194, %v2184, 0.0
      %vm2196 = vcmask 1040384
      %v2197 = vsel %vm2196, %v2195, 0.0
      %2198 = vadd.xlane.f32.xlu0 %v2197
      %v2199 = vpop.xlane.xlu0 %2198
      %v2200 = vrot.slane %v2199, 4
      %v2201 = vadd.f32 %v2199, %v2200
      %v2202 = vrot.slane %v2201, 2
      %v2203 = vadd.f32 %v2201, %v2202
      %v2204 = vrot.slane %v2203, 1
      %v2205 = vadd.f32 %v2203, %v2204
      %s2206 = vtos %v2205
      %v2207 = vsel %vm2194, %v2189, 0.0
      %v2208 = vsel %vm2196, %v2207, 0.0
      %2209 = vadd.xlane.f32.xlu0 %v2208
      %v2210 = vpop.xlane.xlu0 %2209
      %v2211 = vrot.slane %v2210, 4
      %v2212 = vadd.f32 %v2210, %v2211
      %v2213 = vrot.slane %v2212, 2
      %v2214 = vadd.f32 %v2212, %v2213
      %v2215 = vrot.slane %v2214, 1
      %v2216 = vadd.f32 %v2214, %v2215
      %s2217 = vtos %v2216
      %s2218 = smul.f32 %s2206, 0.015625
      %s2219 = smul.f32 %s2217, 0.015625
      %s2220 = smul.f32 %s2218, %s2218
      %s2221 = ssub.f32 %s2219, %s2220
      %s2222 = smax.f32 %s2221, 0.0
      %s2223 = sadd.f32 %s2222, 1e-05
      %v2224 = vstv %s2223
      %v2225 = vrsqrt.pop %v2224
      %v2226 = vmul.f32 %v2225, %v2224
      %v2227 = vmul.f32 %v2226, %v2225
      %v2228 = vmul.f32 0.5, %v2227
      %v2229 = vsub.f32 1.5, %v2228
      %v2230 = vmul.f32 %v2225, %v2229
      %vm2231 = vweird.f32 %v2224
      %vm2232 = vweird.f32 %v2225
      %vm2233 = vmor %vm2231, %vm2232
      %v2234 = vsel %vm2233, %v2225, %v2230
      %s2235 = vtos %v2234
      %v2236 = vstv %s2218
      %v2237 = vsel %vm2194, %v2236, 0.0
      %v2238 = vadd.f32 %v2237, 0.0
      %v2239 = vstv %s2235
      %v2240 = vsel %vm2194, %v2239, 0.0
      %v2241 = vadd.f32 %v2240, 0.0
      %vm2242 = vcmp.ge.s32.totalorder %v2191, 16
      %vm2243 = vcmp.lt.s32.totalorder %v2191, 32
      %vm2244 = vmand %vm2242, %vm2243
      %v2245 = vsel %vm2244, %v2184, 0.0
      %v2246 = vsel %vm2196, %v2245, 0.0
      %2247 = vadd.xlane.f32.xlu0 %v2246
      %v2248 = vpop.xlane.xlu0 %2247
      %v2249 = vrot.slane %v2248, 4
      %v2250 = vadd.f32 %v2248, %v2249
      %v2251 = vrot.slane %v2250, 2
      %v2252 = vadd.f32 %v2250, %v2251
      %v2253 = vrot.slane %v2252, 1
      %v2254 = vadd.f32 %v2252, %v2253
      %s2255 = vtos %v2254
      %v2256 = vsel %vm2244, %v2189, 0.0
      %v2257 = vsel %vm2196, %v2256, 0.0
      %2258 = vadd.xlane.f32.xlu0 %v2257
      %v2259 = vpop.xlane.xlu0 %2258
      %v2260 = vrot.slane %v2259, 4
      %v2261 = vadd.f32 %v2259, %v2260
      %v2262 = vrot.slane %v2261, 2
      %v2263 = vadd.f32 %v2261, %v2262
      %v2264 = vrot.slane %v2263, 1
      %v2265 = vadd.f32 %v2263, %v2264
      %s2266 = vtos %v2265
      %s2267 = smul.f32 %s2255, 0.015625
      %s2268 = smul.f32 %s2266, 0.015625
      %s2269 = smul.f32 %s2267, %s2267
      %s2270 = ssub.f32 %s2268, %s2269
      %s2271 = smax.f32 %s2270, 0.0
      %s2272 = sadd.f32 %s2271, 1e-05
      %v2273 = vstv %s2272
      %v2274 = vrsqrt.pop %v2273
      %v2275 = vmul.f32 %v2274, %v2273
      %v2276 = vmul.f32 %v2275, %v2274
      %v2277 = vmul.f32 0.5, %v2276
      %v2278 = vsub.f32 1.5, %v2277
      %v2279 = vmul.f32 %v2274, %v2278
      %vm2280 = vweird.f32 %v2273
      %vm2281 = vweird.f32 %v2274
      %vm2282 = vmor %vm2280, %vm2281
      %v2283 = vsel %vm2282, %v2274, %v2279
      %s2284 = vtos %v2283
      %v2285 = vstv %s2267
      %v2286 = vsel %vm2244, %v2285, 0.0
      %v2287 = vadd.f32 %v2238, %v2286
      %v2288 = vstv %s2284
      %v2289 = vsel %vm2244, %v2288, 0.0
      %v2290 = vadd.f32 %v2241, %v2289
      %v2291 = vmul.f32 %v2290, %v2165
      %v2292 = vsub.f32 %v2164, %v2287
      %v2293 = vmul.f32 %v2292, %v2291
      %v2294 = vadd.f32 %v2166, %v2293
      %v2295 = vperm.slane %v2291, 0
      %v2296 = vmul.f32 %v2161, %v2295
      %v2297 = vperm.slane %v2294, 0
      %v2298 = vadd.f32 %v2296, %v2297
      %v2299 = vmax.f32 %v2298, 0.0
      %v2301 = vrot.slane %v2299, 1
      %v2303 = vmax.f32 %v2299, %v2301
      %v2305 = vrot.slane %v2303, 2
      %v2307 = vmax.f32 %v2303, %v2305
      %2308 = vst [vmem:[%s166] sm:$0x1] %v2307
      %p2309 = scmp.lt.s32.totalorder %s14, 1
      %s2310 = scalar_select %p2309, %s14, 1
      %s2311 = scalar_lea.vmem %s3, %s2310
      // Predicated region
      $region33: #{rasterized_planning_forward.5} parent=31 // pred_check
        %p2312 = pneg %p100
      $region34: #{rasterized_planning_forward.5} parent=31 // pred_check_branch
        %2314 = sbr.rel (%p2312) target = $region36
      $region35: #{rasterized_planning_forward.5} parent=31 // pred_region
        _
      $region36: #{rasterized_planning_forward.5} parent=31 // pred_fallthru
        _
    $region32: #{rasterized_planning_forward.5} parent=5 // pred_fallthru
      _
    %p2315 = scmp.le.s32.totalorder 2, %s9
    // Predicated region
    $region37: #{rasterized_planning_forward.5} parent=5 // pred_check
      %p2316 = pneg %p2315
    $region38: #{rasterized_planning_forward.5} parent=5 // pred_check_branch
      %2318 = sbr.rel (%p2316) target = $region40
    $region39: #{rasterized_planning_forward.5} parent=5 // pred_region
      %s2319 = ssub.s32 %s9, 2
      // Predicated region
      $region41: #{rasterized_planning_forward.5} parent=39 // pred_check
        %p2320 = pneg %p106
      $region42: #{rasterized_planning_forward.5} parent=39 // pred_check_branch
        %2322 = sbr.rel (%p2320) target = $region44
      $region43: #{rasterized_planning_forward.5} parent=39 // pred_region
        %p2323 = scmp.lt.s32.totalorder %s15, 1
        %s2324 = scalar_select %p2323, %s15, 1
        %s2325 = scalar_lea.vmem %s3, %s2324
      $region44: #{rasterized_planning_forward.5} parent=39 // pred_fallthru
        _
    $region40: #{rasterized_planning_forward.5} parent=5 // pred_fallthru
      _
  $region6: #{rasterized_planning_forward.5} parent=0 // loop_footer
    %s13 = sadd.s32 1, %s9
  $region7: #{rasterized_planning_forward.5} parent=0 // loop_footer_branch
    %8 = sbr.rel target = $region3
  $region8: #{rasterized_planning_forward.5} parent=0 // loop_exit
    _

</llo_original>
